<compile_context>
chip_gen: v6e
topology: v6e:2x2x1
jax: 0.10.0
libtpu: 0.0.40
codegen_flags: <defaults>
</compile_context>

<pallas_src>
import numpy as np
import jax
import jax.numpy as jnp
from jax.experimental import pallas as pl
from jax.experimental.pallas import tpu as pltpu


# ---------------------------------------------------------------------------
# One-time parameter preparation (outside jit): im2col folded into weights.
# ---------------------------------------------------------------------------
def prepare_params(params):
    w1 = np.asarray(params["conv1_w"], np.float32)   # (6, 1, 5, 5)
    b1 = np.asarray(params["conv1_b"], np.float32)
    w2 = np.asarray(params["conv2_w"], np.float32)   # (16, 6, 5, 5)
    b2 = np.asarray(params["conv2_b"], np.float32)
    f1w = np.asarray(params["fc1_w"], np.float32)    # (120, 256) torch [out, in]
    f1b = np.asarray(params["fc1_b"], np.float32)
    f2w = np.asarray(params["fc2_w"], np.float32)    # (84, 120)
    f2b = np.asarray(params["fc2_b"], np.float32)
    f3w = np.asarray(params["fc3_w"], np.float32)    # (10, 84)
    f3b = np.asarray(params["fc3_b"], np.float32)

    # conv1 as ONE banded matmul: a1[(b,oh), kh*28+iw] = x[b, oh+kh, iw]
    #   c1[(b,oh), c*24+ow] = a1 @ B1f,  B1f[kh*28+iw, c*24+ow] = w1[c,0,kh,iw-ow]
    B1 = np.zeros((5, 28, 6, 24), np.float32)
    for kh in range(5):
        for kw in range(5):
            for ow in range(24):
                B1[kh, ow + kw, :, ow] = w1[:, 0, kh, kw]
    B1f = B1.reshape(140, 144)
    b1_t = np.repeat(b1, 24).reshape(1, 144)

    # pool1 column-parity gather matrices on the (·, 144) conv1 activation.
    Sc = np.zeros((2, 144, 72), np.float32)
    for d in range(2):
        for c in range(6):
            for j in range(12):
                Sc[d, c * 24 + 2 * j + d, c * 12 + j] = 1.0

    # conv2 as ONE banded matmul on the (·, 360) row-window-stacked pool1 act.
    B2 = np.zeros((5, 6, 12, 16, 8), np.float32)
    for kh in range(5):
        for kw in range(5):
            for ow in range(8):
                B2[kh, :, ow + kw, :, ow] = w2[:, :, kh, kw].T   # (cin, cout)
    B2f = B2.reshape(360, 128)
    b2_t = np.repeat(b2, 8).reshape(1, 128)

    # pool2 column-parity gather matrices on the (·, 128) conv2 activation.
    Tc = np.zeros((2, 128, 64), np.float32)
    for d in range(2):
        for f in range(16):
            for j in range(4):
                Tc[d, f * 8 + 2 * j + d, f * 4 + j] = 1.0

    # fc1 regrouped so the pooled (·, 64) row-h slice (cols = (f, w)) is
    # contracted without transpose; torch flatten idx = f*16 + h*4 + w.
    W1h = np.zeros((4, 64, 120), np.float32)
    for h in range(4):
        for f in range(16):
            for w in range(4):
                W1h[h, f * 4 + w, :] = f1w[:, f * 16 + h * 4 + w]

    # fc3 padded to 128 output lanes -> dense (TB, 128) writeback.
    W3p = np.zeros((84, 128), np.float32)
    W3p[:, :10] = f3w.T
    f3bp = np.zeros((1, 128), np.float32)
    f3bp[0, :10] = f3b

    prep = {
        "B1": B1f, "b1": b1_t, "Sc0": Sc[0], "Sc1": Sc[1],
        "B2": B2f, "b2": b2_t, "Tc0": Tc[0], "Tc1": Tc[1],
        "W1h": W1h, "f1b": f1b.reshape(1, 120),
        "W2": np.ascontiguousarray(f2w.T), "f2b": f2b.reshape(1, 84),
        "W3": W3p, "f3b": f3bp,
    }
    return {k: jnp.asarray(v) for k, v in prep.items()}


# ---------------------------------------------------------------------------
# Fused LeNet kernel: TB images per grid step, everything resident on-chip.
# ---------------------------------------------------------------------------
def _lenet_kernel(x_ref, b1m_ref, b1b_ref, sc0_ref, sc1_ref,
                  b2m_ref, b2b_ref, tc0_ref, tc1_ref,
                  w1h_ref, f1b_ref, w2_ref, f2b_ref, w3_ref, f3b_ref,
                  out_ref, m1_ref, m2_ref):
    f32 = jnp.float32
    tb = x_ref.shape[0]

    # ---- conv1 (5x5 valid) fused along K + bias + ReLU ----------------------
    # a1 rows = (b, oh) stacked on sublanes (24 rows/image, %8==0 -> free merge)
    a1 = jnp.concatenate(
        [x_ref[:, kh:kh + 24, :].reshape(tb * 24, 28) for kh in range(5)],
        axis=1)                                                   # (tb*24, 140)
    c1 = jnp.dot(a1, b1m_ref[...], preferred_element_type=f32) + b1b_ref[...]
    c1 = jnp.maximum(c1, 0.0)                                     # (tb*24, 144)

    # ---- maxpool1 columns: exact 0/1 gathers on the MXU ---------------------
    m1 = jnp.maximum(jnp.dot(c1, sc0_ref[...], preferred_element_type=f32),
                     jnp.dot(c1, sc1_ref[...], preferred_element_type=f32))
    # Scratch round trip is intentional: sublane-strided reads (pool1 rows
    # fused with conv2 window extraction) are only available on refs.
    m1_ref[...] = m1.reshape(tb, 24, 72)                          # (tb, 24, 72)

    # ---- maxpool1 rows + conv2 row windows, fused along K -------------------
    # window kh, output row t: max over parity d of m1[b, 2*(kh+t)+d, :]
    a2 = jnp.concatenate(
        [jnp.maximum(
            m1_ref[:, pl.ds(2 * kh, 8, stride=2), :],
            m1_ref[:, pl.ds(2 * kh + 1, 8, stride=2), :]).reshape(tb * 8, 72)
         for kh in range(5)],
        axis=1)                                                   # (tb*8, 360)

    # ---- conv2 (5x5 valid) + bias + ReLU ------------------------------------
    c2 = jnp.dot(a2, b2m_ref[...], preferred_element_type=f32) + b2b_ref[...]
    c2 = jnp.maximum(c2, 0.0)                                     # (tb*8, 128)

    # ---- maxpool2 columns ----------------------------------------------------
    m2 = jnp.maximum(jnp.dot(c2, tc0_ref[...], preferred_element_type=f32),
                     jnp.dot(c2, tc1_ref[...], preferred_element_type=f32))
    m2_ref[...] = m2.reshape(tb, 8, 64)                           # (tb, 8, 64)

    # ---- maxpool2 rows fused with fc1 (NCHW flatten folded into W1h) --------
    h1 = f1b_ref[...]                                             # (1, 120)
    for h in range(4):
        p2h = jnp.maximum(m2_ref[:, 2 * h, :], m2_ref[:, 2 * h + 1, :])  # (tb,64)
        h1 = h1 + jnp.dot(p2h, w1h_ref[h], preferred_element_type=f32)
    h1 = jnp.maximum(h1, 0.0)                                     # (tb, 120)

    # ---- fc2 + ReLU, fc3 (padded to 128 lanes -> dense writeback) -----------
    h2 = jnp.maximum(
        jnp.dot(h1, w2_ref[...], preferred_element_type=f32) + f2b_ref[...],
        0.0)                                                      # (tb, 84)
    out_ref[...] = (jnp.dot(h2, w3_ref[...], preferred_element_type=f32)
                    + f3b_ref[...]).astype(out_ref.dtype)         # (tb, 128)


def lenet_forward(x_nchw, prep, tb=None):
    B = x_nchw.shape[0]
    assert x_nchw.shape[1:] == (1, 28, 28), "LeNet expects (B, 1, 28, 28) input"
    if tb is None:
        # Multiple of 8 (sublane-friendly output block), <=128 (VMEM-safe on
        # v7x), and >=2 grid steps once B>=16 so both v7x TensorCores get work.
        tb = min(128, 8 * pl.cdiv(B, 16))
    n_steps = pl.cdiv(B, tb)
    Bp = n_steps * tb

    x = x_nchw.reshape(B, 28, 28).astype(jnp.float32)
    if Bp != B:
        x = jnp.concatenate([x, jnp.zeros((Bp - B, 28, 28), jnp.float32)], 0)

    def w2d(a):
        return pl.BlockSpec(a.shape, lambda i: (0, 0))

    def w3d(a):
        return pl.BlockSpec(a.shape, lambda i: (0, 0, 0))

    weight_bytes = int(sum(int(np.prod(v.shape)) * 4 for v in prep.values()))
    cost = pl.CostEstimate(
        flops=int(3.1e6) * Bp,
        transcendentals=0,
        bytes_accessed=Bp * (28 * 28 * 4 + 128 * 4) + weight_bytes)

    out = pl.pallas_call(
        _lenet_kernel,
        out_shape=jax.ShapeDtypeStruct((Bp, 128), jnp.float32),
        grid=(n_steps,),
        in_specs=[
            pl.BlockSpec((tb, 28, 28), lambda i: (i, 0, 0)),
            w2d(prep["B1"]), w2d(prep["b1"]),
            w2d(prep["Sc0"]), w2d(prep["Sc1"]),
            w2d(prep["B2"]), w2d(prep["b2"]),
            w2d(prep["Tc0"]), w2d(prep["Tc1"]),
            w3d(prep["W1h"]), w2d(prep["f1b"]),
            w2d(prep["W2"]), w2d(prep["f2b"]),
            w2d(prep["W3"]), w2d(prep["f3b"]),
        ],
        out_specs=pl.BlockSpec((tb, 128), lambda i: (i, 0)),
        scratch_shapes=[
            pltpu.VMEM((tb, 24, 72), jnp.float32),   # pooled-cols conv1 act
            pltpu.VMEM((tb, 8, 64), jnp.float32),    # pooled-cols conv2 act
        ],
        compiler_params=pltpu.CompilerParams(
            dimension_semantics=("parallel",)),
        cost_estimate=cost,
    )(x, prep["B1"], prep["b1"], prep["Sc0"], prep["Sc1"], prep["B2"],
      prep["b2"], prep["Tc0"], prep["Tc1"], prep["W1h"], prep["f1b"],
      prep["W2"], prep["f2b"], prep["W3"], prep["f3b"])

    return out[:B, :10]


# ---------------------------------------------------------------------------
# Pure-JAX reference of the PyTorch module (correctness checking only).
# ---------------------------------------------------------------------------
def lenet_reference(x_nchw, params):
    x = x_nchw.astype(jnp.float32)
    y = jax.lax.conv_general_dilated(
        x, params["conv1_w"], window_strides=(1, 1), padding="VALID",
        dimension_numbers=("NCHW", "OIHW", "NCHW"))
    y = jnp.maximum(y + params["conv1_b"].reshape(1, -1, 1, 1), 0.0)
    y = jax.lax.reduce_window(y, -jnp.inf, jax.lax.max,
                              (1, 1, 2, 2), (1, 1, 2, 2), "VALID")
    y = jax.lax.conv_general_dilated(
        y, params["conv2_w"], window_strides=(1, 1), padding="VALID",
        dimension_numbers=("NCHW", "OIHW", "NCHW"))
    y = jnp.maximum(y + params["conv2_b"].reshape(1, -1, 1, 1), 0.0)
    y = jax.lax.reduce_window(y, -jnp.inf, jax.lax.max,
                              (1, 1, 2, 2), (1, 1, 2, 2), "VALID")
    y = y.reshape(y.shape[0], -1)
    y = jnp.maximum(y @ params["fc1_w"].T + params["fc1_b"], 0.0)
    y = jnp.maximum(y @ params["fc2_w"].T + params["fc2_b"], 0.0)
    return y @ params["fc3_w"].T + params["fc3_b"]


# ---------------------------------------------------------------------------
# Main
# ---------------------------------------------------------------------------
if __name__ == "__main__":
    key = jax.random.PRNGKey(0)
    ks = jax.random.split(key, 11)

    def rnd(k, shape, scale=0.1):
        return jax.random.normal(k, shape, dtype=jnp.float32) * scale

    # PyTorch-convention parameters: conv (O, I, KH, KW), fc weight (out, in).
    params = {
        "conv1_w": rnd(ks[0], (6, 1, 5, 5)),
        "conv1_b": rnd(ks[1], (6,)),
        "conv2_w": rnd(ks[2], (16, 6, 5, 5)),
        "conv2_b": rnd(ks[3], (16,)),
        "fc1_w": rnd(ks[4], (120, 256)),
        "fc1_b": rnd(ks[5], (120,)),
        "fc2_w": rnd(ks[6], (84, 120)),
        "fc2_b": rnd(ks[7], (84,)),
        "fc3_w": rnd(ks[8], (10, 84)),
        "fc3_b": rnd(ks[9], (10,)),
    }
    # LeNet geometry (fc1 expects 16*4*4) implies 28x28 single-channel input.
    B = 16
    x = jax.random.normal(ks[10], (B, 1, 28, 28), dtype=jnp.float32)

    prep = prepare_params(params)           # one-time weight preprocessing
    fwd = jax.jit(lenet_forward)
    out = jax.block_until_ready(fwd(x, prep))

    assert out.shape == (B, 10)
    assert bool(jnp.all(jnp.isfinite(out)))

    # Correctness vs. pure-JAX reference.  Tolerance tightened vs. the old 1e-1
    # (the kernel is exact in f32 up to reassociation); the remaining headroom
    # covers default-precision (bf16-pass) MXU rounding on both sides.
    ref = lenet_reference(x, params)
    err = float(jnp.max(jnp.abs(out - ref)))
    assert err < 3e-2, f"kernel mismatch vs reference (max abs err {err})"

    print("KERNEL_OK")
</pallas_src>

<mosaic_0001>
module attributes {stable_mosaic.version = 11 : i64} {
  func.func @_lenet_kernel(%arg0: i32, %arg1: memref<8x28x28xf32, #tpu.memory_space<vmem>>, %arg2: memref<140x144xf32, #tpu.memory_space<vmem>>, %arg3: memref<1x144xf32, #tpu.memory_space<vmem>>, %arg4: memref<144x72xf32, #tpu.memory_space<vmem>>, %arg5: memref<144x72xf32, #tpu.memory_space<vmem>>, %arg6: memref<360x128xf32, #tpu.memory_space<vmem>>, %arg7: memref<1x128xf32, #tpu.memory_space<vmem>>, %arg8: memref<128x64xf32, #tpu.memory_space<vmem>>, %arg9: memref<128x64xf32, #tpu.memory_space<vmem>>, %arg10: memref<4x64x120xf32, #tpu.memory_space<vmem>>, %arg11: memref<1x120xf32, #tpu.memory_space<vmem>>, %arg12: memref<120x84xf32, #tpu.memory_space<vmem>>, %arg13: memref<1x84xf32, #tpu.memory_space<vmem>>, %arg14: memref<84x128xf32, #tpu.memory_space<vmem>>, %arg15: memref<1x128xf32, #tpu.memory_space<vmem>>, %arg16: memref<8x128xf32, #tpu.memory_space<vmem>>, %arg17: memref<8x24x72xf32, #tpu.memory_space<vmem>>, %arg18: memref<8x8x64xf32, #tpu.memory_space<vmem>>) attributes {dimension_semantics = [#tpu.dimension_semantics<parallel>], iteration_bounds = array<i64: 2>, scalar_prefetch = 0 : i64, scratch_operands = 2 : i64, tpu.core_type = #tpu.core_type<tc>, window_params = [{transform_indices = @transform_0, window_bounds = array<i64: 8, 28, 28>}, {pipeline_mode = #tpu.pipeline_mode<synchronous>, transform_indices = @transform_1, window_bounds = array<i64: 140, 144>}, {pipeline_mode = #tpu.pipeline_mode<synchronous>, transform_indices = @transform_2, window_bounds = array<i64: 1, 144>}, {pipeline_mode = #tpu.pipeline_mode<synchronous>, transform_indices = @transform_3, window_bounds = array<i64: 144, 72>}, {pipeline_mode = #tpu.pipeline_mode<synchronous>, transform_indices = @transform_4, window_bounds = array<i64: 144, 72>}, {pipeline_mode = #tpu.pipeline_mode<synchronous>, transform_indices = @transform_5, window_bounds = array<i64: 360, 128>}, {pipeline_mode = #tpu.pipeline_mode<synchronous>, transform_indices = @transform_6, window_bounds = array<i64: 1, 128>}, {pipeline_mode = #tpu.pipeline_mode<synchronous>, transform_indices = @transform_7, window_bounds = array<i64: 128, 64>}, {pipeline_mode = #tpu.pipeline_mode<synchronous>, transform_indices = @transform_8, window_bounds = array<i64: 128, 64>}, {pipeline_mode = #tpu.pipeline_mode<synchronous>, transform_indices = @transform_9, window_bounds = array<i64: 4, 64, 120>}, {pipeline_mode = #tpu.pipeline_mode<synchronous>, transform_indices = @transform_10, window_bounds = array<i64: 1, 120>}, {pipeline_mode = #tpu.pipeline_mode<synchronous>, transform_indices = @transform_11, window_bounds = array<i64: 120, 84>}, {pipeline_mode = #tpu.pipeline_mode<synchronous>, transform_indices = @transform_12, window_bounds = array<i64: 1, 84>}, {pipeline_mode = #tpu.pipeline_mode<synchronous>, transform_indices = @transform_13, window_bounds = array<i64: 84, 128>}, {pipeline_mode = #tpu.pipeline_mode<synchronous>, transform_indices = @transform_14, window_bounds = array<i64: 1, 128>}, {transform_indices = @transform_15, window_bounds = array<i64: 8, 128>}]} {
    %c0 = arith.constant 0 : index
    %c0_0 = arith.constant 0 : index
    %c0_1 = arith.constant 0 : index
    %0 = vector.load %arg1[%c0, %c0_0, %c0_1] : memref<8x28x28xf32, #tpu.memory_space<vmem>>, vector<8x24x28xf32>
    %1 = vector.shape_cast %0 : vector<8x24x28xf32> to vector<192x28xf32>
    %c0_2 = arith.constant 0 : index
    %c1 = arith.constant 1 : index
    %c0_3 = arith.constant 0 : index
    %2 = vector.load %arg1[%c0_2, %c1, %c0_3] : memref<8x28x28xf32, #tpu.memory_space<vmem>>, vector<8x24x28xf32>
    %3 = vector.shape_cast %2 : vector<8x24x28xf32> to vector<192x28xf32>
    %c0_4 = arith.constant 0 : index
    %c2 = arith.constant 2 : index
    %c0_5 = arith.constant 0 : index
    %4 = vector.load %arg1[%c0_4, %c2, %c0_5] : memref<8x28x28xf32, #tpu.memory_space<vmem>>, vector<8x24x28xf32>
    %5 = vector.shape_cast %4 : vector<8x24x28xf32> to vector<192x28xf32>
    %c0_6 = arith.constant 0 : index
    %c3 = arith.constant 3 : index
    %c0_7 = arith.constant 0 : index
    %6 = vector.load %arg1[%c0_6, %c3, %c0_7] : memref<8x28x28xf32, #tpu.memory_space<vmem>>, vector<8x24x28xf32>
    %7 = vector.shape_cast %6 : vector<8x24x28xf32> to vector<192x28xf32>
    %c0_8 = arith.constant 0 : index
    %c4 = arith.constant 4 : index
    %c0_9 = arith.constant 0 : index
    %8 = vector.load %arg1[%c0_8, %c4, %c0_9] : memref<8x28x28xf32, #tpu.memory_space<vmem>>, vector<8x24x28xf32>
    %9 = vector.shape_cast %8 : vector<8x24x28xf32> to vector<192x28xf32>
    %10 = tpu.concatenate %1, %3, %5, %7, %9 in 1 : vector<192x28xf32>, vector<192x28xf32>, vector<192x28xf32>, vector<192x28xf32>, vector<192x28xf32> -> vector<192x140xf32>
    %c0_10 = arith.constant 0 : index
    %c0_11 = arith.constant 0 : index
    %11 = vector.load %arg2[%c0_10, %c0_11] : memref<140x144xf32, #tpu.memory_space<vmem>>, vector<140x144xf32>
    %cst = arith.constant dense<0.000000e+00> : vector<192x144xf32>
    %12 = tpu.matmul %10, %11, %cst {dimension_numbers = #tpu.dot_dimension_numbers<[1], [0], [0], [1], [0, 0, 1, 1], [], []>} : vector<192x140xf32>, vector<140x144xf32>, vector<192x144xf32> -> vector<192x144xf32>
    %c0_12 = arith.constant 0 : index
    %c0_13 = arith.constant 0 : index
    %13 = vector.load %arg3[%c0_12, %c0_13] : memref<1x144xf32, #tpu.memory_space<vmem>>, vector<1x144xf32>
    %14 = vector.broadcast %13 : vector<1x144xf32> to vector<192x144xf32>
    %15 = arith.addf %12, %14 : vector<192x144xf32>
    %cst_14 = arith.constant 0.000000e+00 : f32
    %16 = vector.broadcast %cst_14 : f32 to vector<192x144xf32>
    %17 = arith.maximumf %15, %16 : vector<192x144xf32>
    %c0_15 = arith.constant 0 : index
    %c0_16 = arith.constant 0 : index
    %18 = vector.load %arg4[%c0_15, %c0_16] : memref<144x72xf32, #tpu.memory_space<vmem>>, vector<144x72xf32>
    %cst_17 = arith.constant dense<0.000000e+00> : vector<192x72xf32>
    %19 = tpu.matmul %17, %18, %cst_17 {dimension_numbers = #tpu.dot_dimension_numbers<[1], [0], [0], [1], [0, 0, 1, 1], [], []>} : vector<192x144xf32>, vector<144x72xf32>, vector<192x72xf32> -> vector<192x72xf32>
    %c0_18 = arith.constant 0 : index
    %c0_19 = arith.constant 0 : index
    %20 = vector.load %arg5[%c0_18, %c0_19] : memref<144x72xf32, #tpu.memory_space<vmem>>, vector<144x72xf32>
    %cst_20 = arith.constant dense<0.000000e+00> : vector<192x72xf32>
    %21 = tpu.matmul %17, %20, %cst_20 {dimension_numbers = #tpu.dot_dimension_numbers<[1], [0], [0], [1], [0, 0, 1, 1], [], []>} : vector<192x144xf32>, vector<144x72xf32>, vector<192x72xf32> -> vector<192x72xf32>
    %22 = arith.maximumf %19, %21 : vector<192x72xf32>
    %23 = vector.shape_cast %22 : vector<192x72xf32> to vector<8x24x72xf32>
    %c0_21 = arith.constant 0 : index
    %c0_22 = arith.constant 0 : index
    %c0_23 = arith.constant 0 : index
    %24 = vector.load %arg17[%c0_21, %c0_22, %c0_23] : memref<8x24x72xf32, #tpu.memory_space<vmem>>, vector<8x24x72xf32>
    tpu.vector_store %arg17[%c0_21, %c0_22, %c0_23], %23 {strides = array<i32>} : memref<8x24x72xf32, #tpu.memory_space<vmem>>, vector<8x24x72xf32>,
    %c0_24 = arith.constant 0 : index
    %c0_25 = arith.constant 0 : index
    %c0_26 = arith.constant 0 : index
    %25 = tpu.strided_load %arg17[%c0_24, %c0_25, %c0_26] {strides = array<i32: 1, 2, 1>} : memref<8x24x72xf32, #tpu.memory_space<vmem>>, vector<8x8x72xf32>
    %c0_27 = arith.constant 0 : index
    %c1_28 = arith.constant 1 : index
    %c0_29 = arith.constant 0 : index
    %26 = tpu.strided_load %arg17[%c0_27, %c1_28, %c0_29] {strides = array<i32: 1, 2, 1>} : memref<8x24x72xf32, #tpu.memory_space<vmem>>, vector<8x8x72xf32>
    %27 = arith.maximumf %25, %26 : vector<8x8x72xf32>
    %28 = vector.shape_cast %27 : vector<8x8x72xf32> to vector<64x72xf32>
    %c0_30 = arith.constant 0 : index
    %c2_31 = arith.constant 2 : index
    %c0_32 = arith.constant 0 : index
    %29 = tpu.strided_load %arg17[%c0_30, %c2_31, %c0_32] {strides = array<i32: 1, 2, 1>} : memref<8x24x72xf32, #tpu.memory_space<vmem>>, vector<8x8x72xf32>
    %c0_33 = arith.constant 0 : index
    %c3_34 = arith.constant 3 : index
    %c0_35 = arith.constant 0 : index
    %30 = tpu.strided_load %arg17[%c0_33, %c3_34, %c0_35] {strides = array<i32: 1, 2, 1>} : memref<8x24x72xf32, #tpu.memory_space<vmem>>, vector<8x8x72xf32>
    %31 = arith.maximumf %29, %30 : vector<8x8x72xf32>
    %32 = vector.shape_cast %31 : vector<8x8x72xf32> to vector<64x72xf32>
    %c0_36 = arith.constant 0 : index
    %c4_37 = arith.constant 4 : index
    %c0_38 = arith.constant 0 : index
    %33 = tpu.strided_load %arg17[%c0_36, %c4_37, %c0_38] {strides = array<i32: 1, 2, 1>} : memref<8x24x72xf32, #tpu.memory_space<vmem>>, vector<8x8x72xf32>
    %c0_39 = arith.constant 0 : index
    %c5 = arith.constant 5 : index
    %c0_40 = arith.constant 0 : index
    %34 = tpu.strided_load %arg17[%c0_39, %c5, %c0_40] {strides = array<i32: 1, 2, 1>} : memref<8x24x72xf32, #tpu.memory_space<vmem>>, vector<8x8x72xf32>
    %35 = arith.maximumf %33, %34 : vector<8x8x72xf32>
    %36 = vector.shape_cast %35 : vector<8x8x72xf32> to vector<64x72xf32>
    %c0_41 = arith.constant 0 : index
    %c6 = arith.constant 6 : index
    %c0_42 = arith.constant 0 : index
    %37 = tpu.strided_load %arg17[%c0_41, %c6, %c0_42] {strides = array<i32: 1, 2, 1>} : memref<8x24x72xf32, #tpu.memory_space<vmem>>, vector<8x8x72xf32>
    %c0_43 = arith.constant 0 : index
    %c7 = arith.constant 7 : index
    %c0_44 = arith.constant 0 : index
    %38 = tpu.strided_load %arg17[%c0_43, %c7, %c0_44] {strides = array<i32: 1, 2, 1>} : memref<8x24x72xf32, #tpu.memory_space<vmem>>, vector<8x8x72xf32>
    %39 = arith.maximumf %37, %38 : vector<8x8x72xf32>
    %40 = vector.shape_cast %39 : vector<8x8x72xf32> to vector<64x72xf32>
    %c0_45 = arith.constant 0 : index
    %c8 = arith.constant 8 : index
    %c0_46 = arith.constant 0 : index
    %41 = tpu.strided_load %arg17[%c0_45, %c8, %c0_46] {strides = array<i32: 1, 2, 1>} : memref<8x24x72xf32, #tpu.memory_space<vmem>>, vector<8x8x72xf32>
    %c0_47 = arith.constant 0 : index
    %c9 = arith.constant 9 : index
    %c0_48 = arith.constant 0 : index
    %42 = tpu.strided_load %arg17[%c0_47, %c9, %c0_48] {strides = array<i32: 1, 2, 1>} : memref<8x24x72xf32, #tpu.memory_space<vmem>>, vector<8x8x72xf32>
    %43 = arith.maximumf %41, %42 : vector<8x8x72xf32>
    %44 = vector.shape_cast %43 : vector<8x8x72xf32> to vector<64x72xf32>
    %45 = tpu.concatenate %28, %32, %36, %40, %44 in 1 : vector<64x72xf32>, vector<64x72xf32>, vector<64x72xf32>, vector<64x72xf32>, vector<64x72xf32> -> vector<64x360xf32>
    %c0_49 = arith.constant 0 : index
    %c0_50 = arith.constant 0 : index
    %46 = vector.load %arg6[%c0_49, %c0_50] : memref<360x128xf32, #tpu.memory_space<vmem>>, vector<360x128xf32>
    %cst_51 = arith.constant dense<0.000000e+00> : vector<64x128xf32>
    %47 = tpu.matmul %45, %46, %cst_51 {dimension_numbers = #tpu.dot_dimension_numbers<[1], [0], [0], [1], [0, 0, 1, 1], [], []>} : vector<64x360xf32>, vector<360x128xf32>, vector<64x128xf32> -> vector<64x128xf32>
    %c0_52 = arith.constant 0 : index
    %c0_53 = arith.constant 0 : index
    %48 = vector.load %arg7[%c0_52, %c0_53] : memref<1x128xf32, #tpu.memory_space<vmem>>, vector<1x128xf32>
    %49 = vector.broadcast %48 : vector<1x128xf32> to vector<64x128xf32>
    %50 = arith.addf %47, %49 : vector<64x128xf32>
    %cst_54 = arith.constant 0.000000e+00 : f32
    %51 = vector.broadcast %cst_54 : f32 to vector<64x128xf32>
    %52 = arith.maximumf %50, %51 : vector<64x128xf32>
    %c0_55 = arith.constant 0 : index
    %c0_56 = arith.constant 0 : index
    %53 = vector.load %arg8[%c0_55, %c0_56] : memref<128x64xf32, #tpu.memory_space<vmem>>, vector<128x64xf32>
    %cst_57 = arith.constant dense<0.000000e+00> : vector<64x64xf32>
    %54 = tpu.matmul %52, %53, %cst_57 {dimension_numbers = #tpu.dot_dimension_numbers<[1], [0], [0], [1], [0, 0, 1, 1], [], []>} : vector<64x128xf32>, vector<128x64xf32>, vector<64x64xf32> -> vector<64x64xf32>
    %c0_58 = arith.constant 0 : index
    %c0_59 = arith.constant 0 : index
    %55 = vector.load %arg9[%c0_58, %c0_59] : memref<128x64xf32, #tpu.memory_space<vmem>>, vector<128x64xf32>
    %cst_60 = arith.constant dense<0.000000e+00> : vector<64x64xf32>
    %56 = tpu.matmul %52, %55, %cst_60 {dimension_numbers = #tpu.dot_dimension_numbers<[1], [0], [0], [1], [0, 0, 1, 1], [], []>} : vector<64x128xf32>, vector<128x64xf32>, vector<64x64xf32> -> vector<64x64xf32>
    %57 = arith.maximumf %54, %56 : vector<64x64xf32>
    %58 = vector.shape_cast %57 : vector<64x64xf32> to vector<8x8x64xf32>
    %c0_61 = arith.constant 0 : index
    %c0_62 = arith.constant 0 : index
    %c0_63 = arith.constant 0 : index
    %59 = vector.load %arg18[%c0_61, %c0_62, %c0_63] : memref<8x8x64xf32, #tpu.memory_space<vmem>>, vector<8x8x64xf32>
    tpu.vector_store %arg18[%c0_61, %c0_62, %c0_63], %58 {strides = array<i32>} : memref<8x8x64xf32, #tpu.memory_space<vmem>>, vector<8x8x64xf32>,
    %c0_64 = arith.constant 0 : index
    %c0_65 = arith.constant 0 : index
    %60 = vector.load %arg11[%c0_64, %c0_65] : memref<1x120xf32, #tpu.memory_space<vmem>>, vector<1x120xf32>
    %c0_66 = arith.constant 0 : index
    %c0_67 = arith.constant 0 : index
    %c0_68 = arith.constant 0 : index
    %61 = vector.load %arg18[%c0_66, %c0_67, %c0_68] : memref<8x8x64xf32, #tpu.memory_space<vmem>>, vector<8x1x64xf32>
    %62 = vector.shape_cast %61 : vector<8x1x64xf32> to vector<8x64xf32>
    %c0_69 = arith.constant 0 : index
    %c1_70 = arith.constant 1 : index
    %c0_71 = arith.constant 0 : index
    %63 = vector.load %arg18[%c0_69, %c1_70, %c0_71] : memref<8x8x64xf32, #tpu.memory_space<vmem>>, vector<8x1x64xf32>
    %64 = vector.shape_cast %63 : vector<8x1x64xf32> to vector<8x64xf32>
    %65 = arith.maximumf %62, %64 : vector<8x64xf32>
    %c0_72 = arith.constant 0 : index
    %c0_73 = arith.constant 0 : index
    %c0_74 = arith.constant 0 : index
    %66 = vector.load %arg10[%c0_72, %c0_73, %c0_74] : memref<4x64x120xf32, #tpu.memory_space<vmem>>, vector<1x64x120xf32>
    %67 = vector.shape_cast %66 : vector<1x64x120xf32> to vector<64x120xf32>
    %cst_75 = arith.constant dense<0.000000e+00> : vector<8x120xf32>
    %68 = tpu.matmul %65, %67, %cst_75 {dimension_numbers = #tpu.dot_dimension_numbers<[1], [0], [0], [1], [0, 0, 1, 1], [], []>} : vector<8x64xf32>, vector<64x120xf32>, vector<8x120xf32> -> vector<8x120xf32>
    %69 = vector.broadcast %60 : vector<1x120xf32> to vector<8x120xf32>
    %70 = arith.addf %69, %68 : vector<8x120xf32>
    %c0_76 = arith.constant 0 : index
    %c2_77 = arith.constant 2 : index
    %c0_78 = arith.constant 0 : index
    %71 = vector.load %arg18[%c0_76, %c2_77, %c0_78] : memref<8x8x64xf32, #tpu.memory_space<vmem>>, vector<8x1x64xf32>
    %72 = vector.shape_cast %71 : vector<8x1x64xf32> to vector<8x64xf32>
    %c0_79 = arith.constant 0 : index
    %c3_80 = arith.constant 3 : index
    %c0_81 = arith.constant 0 : index
    %73 = vector.load %arg18[%c0_79, %c3_80, %c0_81] : memref<8x8x64xf32, #tpu.memory_space<vmem>>, vector<8x1x64xf32>
    %74 = vector.shape_cast %73 : vector<8x1x64xf32> to vector<8x64xf32>
    %75 = arith.maximumf %72, %74 : vector<8x64xf32>
    %c1_82 = arith.constant 1 : index
    %c0_83 = arith.constant 0 : index
    %c0_84 = arith.constant 0 : index
    %76 = vector.load %arg10[%c1_82, %c0_83, %c0_84] : memref<4x64x120xf32, #tpu.memory_space<vmem>>, vector<1x64x120xf32>
    %77 = vector.shape_cast %76 : vector<1x64x120xf32> to vector<64x120xf32>
    %cst_85 = arith.constant dense<0.000000e+00> : vector<8x120xf32>
    %78 = tpu.matmul %75, %77, %cst_85 {dimension_numbers = #tpu.dot_dimension_numbers<[1], [0], [0], [1], [0, 0, 1, 1], [], []>} : vector<8x64xf32>, vector<64x120xf32>, vector<8x120xf32> -> vector<8x120xf32>
    %79 = arith.addf %70, %78 : vector<8x120xf32>
    %c0_86 = arith.constant 0 : index
    %c4_87 = arith.constant 4 : index
    %c0_88 = arith.constant 0 : index
    %80 = vector.load %arg18[%c0_86, %c4_87, %c0_88] : memref<8x8x64xf32, #tpu.memory_space<vmem>>, vector<8x1x64xf32>
    %81 = vector.shape_cast %80 : vector<8x1x64xf32> to vector<8x64xf32>
    %c0_89 = arith.constant 0 : index
    %c5_90 = arith.constant 5 : index
    %c0_91 = arith.constant 0 : index
    %82 = vector.load %arg18[%c0_89, %c5_90, %c0_91] : memref<8x8x64xf32, #tpu.memory_space<vmem>>, vector<8x1x64xf32>
    %83 = vector.shape_cast %82 : vector<8x1x64xf32> to vector<8x64xf32>
    %84 = arith.maximumf %81, %83 : vector<8x64xf32>
    %c2_92 = arith.constant 2 : index
    %c0_93 = arith.constant 0 : index
    %c0_94 = arith.constant 0 : index
    %85 = vector.load %arg10[%c2_92, %c0_93, %c0_94] : memref<4x64x120xf32, #tpu.memory_space<vmem>>, vector<1x64x120xf32>
    %86 = vector.shape_cast %85 : vector<1x64x120xf32> to vector<64x120xf32>
    %cst_95 = arith.constant dense<0.000000e+00> : vector<8x120xf32>
    %87 = tpu.matmul %84, %86, %cst_95 {dimension_numbers = #tpu.dot_dimension_numbers<[1], [0], [0], [1], [0, 0, 1, 1], [], []>} : vector<8x64xf32>, vector<64x120xf32>, vector<8x120xf32> -> vector<8x120xf32>
    %88 = arith.addf %79, %87 : vector<8x120xf32>
    %c0_96 = arith.constant 0 : index
    %c6_97 = arith.constant 6 : index
    %c0_98 = arith.constant 0 : index
    %89 = vector.load %arg18[%c0_96, %c6_97, %c0_98] : memref<8x8x64xf32, #tpu.memory_space<vmem>>, vector<8x1x64xf32>
    %90 = vector.shape_cast %89 : vector<8x1x64xf32> to vector<8x64xf32>
    %c0_99 = arith.constant 0 : index
    %c7_100 = arith.constant 7 : index
    %c0_101 = arith.constant 0 : index
    %91 = vector.load %arg18[%c0_99, %c7_100, %c0_101] : memref<8x8x64xf32, #tpu.memory_space<vmem>>, vector<8x1x64xf32>
    %92 = vector.shape_cast %91 : vector<8x1x64xf32> to vector<8x64xf32>
    %93 = arith.maximumf %90, %92 : vector<8x64xf32>
    %c3_102 = arith.constant 3 : index
    %c0_103 = arith.constant 0 : index
    %c0_104 = arith.constant 0 : index
    %94 = vector.load %arg10[%c3_102, %c0_103, %c0_104] : memref<4x64x120xf32, #tpu.memory_space<vmem>>, vector<1x64x120xf32>
    %95 = vector.shape_cast %94 : vector<1x64x120xf32> to vector<64x120xf32>
    %cst_105 = arith.constant dense<0.000000e+00> : vector<8x120xf32>
    %96 = tpu.matmul %93, %95, %cst_105 {dimension_numbers = #tpu.dot_dimension_numbers<[1], [0], [0], [1], [0, 0, 1, 1], [], []>} : vector<8x64xf32>, vector<64x120xf32>, vector<8x120xf32> -> vector<8x120xf32>
    %97 = arith.addf %88, %96 : vector<8x120xf32>
    %cst_106 = arith.constant 0.000000e+00 : f32
    %98 = vector.broadcast %cst_106 : f32 to vector<8x120xf32>
    %99 = arith.maximumf %97, %98 : vector<8x120xf32>
    %c0_107 = arith.constant 0 : index
    %c0_108 = arith.constant 0 : index
    %100 = vector.load %arg12[%c0_107, %c0_108] : memref<120x84xf32, #tpu.memory_space<vmem>>, vector<120x84xf32>
    %cst_109 = arith.constant dense<0.000000e+00> : vector<8x84xf32>
    %101 = tpu.matmul %99, %100, %cst_109 {dimension_numbers = #tpu.dot_dimension_numbers<[1], [0], [0], [1], [0, 0, 1, 1], [], []>} : vector<8x120xf32>, vector<120x84xf32>, vector<8x84xf32> -> vector<8x84xf32>
    %c0_110 = arith.constant 0 : index
    %c0_111 = arith.constant 0 : index
    %102 = vector.load %arg13[%c0_110, %c0_111] : memref<1x84xf32, #tpu.memory_space<vmem>>, vector<1x84xf32>
    %103 = vector.broadcast %102 : vector<1x84xf32> to vector<8x84xf32>
    %104 = arith.addf %101, %103 : vector<8x84xf32>
    %cst_112 = arith.constant 0.000000e+00 : f32
    %105 = vector.broadcast %cst_112 : f32 to vector<8x84xf32>
    %106 = arith.maximumf %104, %105 : vector<8x84xf32>
    %c0_113 = arith.constant 0 : index
    %c0_114 = arith.constant 0 : index
    %107 = vector.load %arg14[%c0_113, %c0_114] : memref<84x128xf32, #tpu.memory_space<vmem>>, vector<84x128xf32>
    %cst_115 = arith.constant dense<0.000000e+00> : vector<8x128xf32>
    %108 = tpu.matmul %106, %107, %cst_115 {dimension_numbers = #tpu.dot_dimension_numbers<[1], [0], [0], [1], [0, 0, 1, 1], [], []>} : vector<8x84xf32>, vector<84x128xf32>, vector<8x128xf32> -> vector<8x128xf32>
    %c0_116 = arith.constant 0 : index
    %c0_117 = arith.constant 0 : index
    %109 = vector.load %arg15[%c0_116, %c0_117] : memref<1x128xf32, #tpu.memory_space<vmem>>, vector<1x128xf32>
    %110 = vector.broadcast %109 : vector<1x128xf32> to vector<8x128xf32>
    %111 = arith.addf %108, %110 : vector<8x128xf32>
    %c0_118 = arith.constant 0 : index
    %c0_119 = arith.constant 0 : index
    %112 = vector.load %arg16[%c0_118, %c0_119] : memref<8x128xf32, #tpu.memory_space<vmem>>, vector<8x128xf32>
    tpu.vector_store %arg16[%c0_118, %c0_119], %111 {strides = array<i32>} : memref<8x128xf32, #tpu.memory_space<vmem>>, vector<8x128xf32>,
    return
  }
  func.func @transform_0(%arg0: i32) -> (i32, i32, i32) {
    %c0_i32 = arith.constant 0 : i32
    %c0_i32_0 = arith.constant 0 : i32
    %c0_i32_1 = arith.constant 0 : i32
    return %arg0, %c0_i32, %c0_i32_0 : i32, i32, i32
  }
  func.func @transform_1(%arg0: i32) -> (i32, i32) {
    %c0_i32 = arith.constant 0 : i32
    %c0_i32_0 = arith.constant 0 : i32
    %c0_i32_1 = arith.constant 0 : i32
    return %c0_i32, %c0_i32_0 : i32, i32
  }
  func.func @transform_2(%arg0: i32) -> (i32, i32) {
    %c0_i32 = arith.constant 0 : i32
    %c0_i32_0 = arith.constant 0 : i32
    %c0_i32_1 = arith.constant 0 : i32
    return %c0_i32, %c0_i32_0 : i32, i32
  }
  func.func @transform_3(%arg0: i32) -> (i32, i32) {
    %c0_i32 = arith.constant 0 : i32
    %c0_i32_0 = arith.constant 0 : i32
    %c0_i32_1 = arith.constant 0 : i32
    return %c0_i32, %c0_i32_0 : i32, i32
  }
  func.func @transform_4(%arg0: i32) -> (i32, i32) {
    %c0_i32 = arith.constant 0 : i32
    %c0_i32_0 = arith.constant 0 : i32
    %c0_i32_1 = arith.constant 0 : i32
    return %c0_i32, %c0_i32_0 : i32, i32
  }
  func.func @transform_5(%arg0: i32) -> (i32, i32) {
    %c0_i32 = arith.constant 0 : i32
    %c0_i32_0 = arith.constant 0 : i32
    %c0_i32_1 = arith.constant 0 : i32
    return %c0_i32, %c0_i32_0 : i32, i32
  }
  func.func @transform_6(%arg0: i32) -> (i32, i32) {
    %c0_i32 = arith.constant 0 : i32
    %c0_i32_0 = arith.constant 0 : i32
    %c0_i32_1 = arith.constant 0 : i32
    return %c0_i32, %c0_i32_0 : i32, i32
  }
  func.func @transform_7(%arg0: i32) -> (i32, i32) {
    %c0_i32 = arith.constant 0 : i32
    %c0_i32_0 = arith.constant 0 : i32
    %c0_i32_1 = arith.constant 0 : i32
    return %c0_i32, %c0_i32_0 : i32, i32
  }
  func.func @transform_8(%arg0: i32) -> (i32, i32) {
    %c0_i32 = arith.constant 0 : i32
    %c0_i32_0 = arith.constant 0 : i32
    %c0_i32_1 = arith.constant 0 : i32
    return %c0_i32, %c0_i32_0 : i32, i32
  }
  func.func @transform_9(%arg0: i32) -> (i32, i32, i32) {
    %c0_i32 = arith.constant 0 : i32
    %c0_i32_0 = arith.constant 0 : i32
    %c0_i32_1 = arith.constant 0 : i32
    %c0_i32_2 = arith.constant 0 : i32
    return %c0_i32, %c0_i32_0, %c0_i32_1 : i32, i32, i32
  }
  func.func @transform_10(%arg0: i32) -> (i32, i32) {
    %c0_i32 = arith.constant 0 : i32
    %c0_i32_0 = arith.constant 0 : i32
    %c0_i32_1 = arith.constant 0 : i32
    return %c0_i32, %c0_i32_0 : i32, i32
  }
  func.func @transform_11(%arg0: i32) -> (i32, i32) {
    %c0_i32 = arith.constant 0 : i32
    %c0_i32_0 = arith.constant 0 : i32
    %c0_i32_1 = arith.constant 0 : i32
    return %c0_i32, %c0_i32_0 : i32, i32
  }
  func.func @transform_12(%arg0: i32) -> (i32, i32) {
    %c0_i32 = arith.constant 0 : i32
    %c0_i32_0 = arith.constant 0 : i32
    %c0_i32_1 = arith.constant 0 : i32
    return %c0_i32, %c0_i32_0 : i32, i32
  }
  func.func @transform_13(%arg0: i32) -> (i32, i32) {
    %c0_i32 = arith.constant 0 : i32
    %c0_i32_0 = arith.constant 0 : i32
    %c0_i32_1 = arith.constant 0 : i32
    return %c0_i32, %c0_i32_0 : i32, i32
  }
  func.func @transform_14(%arg0: i32) -> (i32, i32) {
    %c0_i32 = arith.constant 0 : i32
    %c0_i32_0 = arith.constant 0 : i32
    %c0_i32_1 = arith.constant 0 : i32
    return %c0_i32, %c0_i32_0 : i32, i32
  }
  func.func @transform_15(%arg0: i32) -> (i32, i32) {
    %c0_i32 = arith.constant 0 : i32
    %c0_i32_0 = arith.constant 0 : i32
    return %arg0, %c0_i32 : i32, i32
  }
}

</mosaic_0001>

<llo_original>
// kernel: lenet_forward.1
$region0: #{lenet_forward.1}
  #allocation0 [shape = 'u32[]', space=smem, size = 0x4, offset = 0x4, fixed_abs, tag = 'smem constant byte address 0x4 - core index']
  #allocation1 [shape = 'u32[144,128]{1,0:T(1,128)}', space=vmem, size = 0x12000, scoped, tag = 'internal scratch']
  #allocation2 [shape = 'f32[8,24,72]{2,1,0:T(8,128)}', space=vmem, size = 0x18000, scoped, tag = 'scratch operand']
  #allocation3 [shape = 'f32[8,8,64]{2,1,0:T(8,128)}', space=vmem, size = 0x8000, scoped, tag = 'scratch operand']
  %s0 = inlined_call_operand.vmem [shape: f32[16,28,28], index: 0, kind: input, shape index: {}]
  %s1 = inlined_call_operand.vmem [shape: f32[140,144], index: 1, kind: input, shape index: {}]
  %s2 = inlined_call_operand.vmem [shape: f32[1,144], index: 2, kind: input, shape index: {}]
  %s3 = inlined_call_operand.vmem [shape: f32[144,72], index: 3, kind: input, shape index: {}]
  %s4 = inlined_call_operand.hbm [shape: f32[144,72], index: 4, kind: input, shape index: {}]
  %s5 = inlined_call_operand.vmem [shape: f32[360,128], index: 5, kind: input, shape index: {}]
  %s6 = inlined_call_operand.vmem [shape: f32[1,128], index: 6, kind: input, shape index: {}]
  %s7 = inlined_call_operand.vmem [shape: f32[128,64], index: 7, kind: input, shape index: {}]
  %s8 = inlined_call_operand.vmem [shape: f32[128,64], index: 8, kind: input, shape index: {}]
  %s9 = inlined_call_operand.vmem [shape: f32[4,64,120], index: 9, kind: input, shape index: {}]
  %s10 = inlined_call_operand.vmem [shape: f32[1,120], index: 10, kind: input, shape index: {}]
  %s11 = inlined_call_operand.vmem [shape: f32[120,84], index: 11, kind: input, shape index: {}]
  %s12 = inlined_call_operand.vmem [shape: f32[1,84], index: 12, kind: input, shape index: {}]
  %s13 = inlined_call_operand.hbm [shape: f32[84,128], index: 13, kind: input, shape index: {}]
  %s14 = inlined_call_operand.vmem [shape: f32[1,128], index: 14, kind: input, shape index: {}]
  %s15 = inlined_call_operand.hbm [shape: f32[16,128], index: 15, kind: output, shape index: {}]
  %s16 = sld [smem:[#allocation0]]
  $region101: #{lenet_forward.1} parent=0
    _
  %s18 = ssub.s32 1, %s16
  %s19 = scalar_select 0, %s18, %s16
  $region1: #{lenet_forward.1} parent=0
    #allocation4 [shape = 'u8[73728]{0}', space=vmem, size = 0x12000, scoped, tag = 'input window, operand 4, single buffered']
    #allocation5 [shape = 's32[2]{0}', space=sflag, size = 0x8, scoped, tag = 'scoped memory for lenet_forward.1']
    #allocation6 [shape = 's32[2]{0}', space=sflag, size = 0x8, scoped, tag = 'scoped memory for lenet_forward.1']
    #allocation7 [shape = 'u8[45056]{0}', space=vmem, size = 0xb000, scoped, tag = 'input window, operand 13, single buffered']
    #allocation8 [shape = 's32[1]{0}', space=sflag, size = 0x4, scoped, tag = 'scoped memory for lenet_forward.1']
    #allocation9 [shape = 'u8[8192]{0}', space=vmem, size = 0x2000, scoped, tag = 'output window, operand 0']
    %20 = vsyncpa [#allocation5], 0
    %21 = vsyncpa [#allocation8], 0
    %22 = vsyncpa [#allocation6], 0
    %s23 = scalar_lea.sflag [#allocation6], 1
    %24 = vsyncpa %s23, 0
    loop: start=0, step=1, limit=4
    $region2: #{lenet_forward.1} parent=1 // loop_pre_header
      _
    $region3: #{lenet_forward.1} parent=1 // loop_header
      %s26 = sphi 0, %s30
      %p27 = scmp.ge.s32.totalorder %s26, 4
      %s36 = sphi 0, %s38
      %s39 = sphi 0, %s36
      %s40 = sphi 0, %s39
      %s56 = sphi 0, %s40
      %s60 = sphi 0, %s60
      %s62 = sphi 0, %s60
      %s63 = sphi 0, %s62
      %s77 = sphi 0, %s63
      %s81 = sphi 0, %s81
      %s83 = sphi 0, %s81
      %s84 = sphi 0, %s83
      %s98 = sphi 0, %s84
      %s102 = sphi 0, %s102
      %s104 = sphi 0, %s102
      %s105 = sphi 0, %s104
      %s119 = sphi 0, %s105
      %s123 = sphi 0, %s123
      %s125 = sphi 0, %s123
      %s126 = sphi 0, %s125
      %s140 = sphi 0, %s126
      %s144 = sphi 0, %s144
      %s146 = sphi 0, %s144
      %s147 = sphi 0, %s146
      %s161 = sphi 0, %s147
      %s165 = sphi 0, %s165
      %s167 = sphi 0, %s165
      %s168 = sphi 0, %s167
      %s182 = sphi 0, %s168
      %s186 = sphi 0, %s186
      %s188 = sphi 0, %s186
      %s189 = sphi 0, %s188
      %s203 = sphi 0, %s189
      %s207 = sphi 0, %s207
      %s209 = sphi 0, %s207
      %s210 = sphi 0, %s209
      %s224 = sphi 0, %s210
      %s228 = sphi 0, %s228
      %s230 = sphi 0, %s228
      %s231 = sphi 0, %s230
      %s245 = sphi 0, %s231
      %s249 = sphi 0, %s249
      %s251 = sphi 0, %s249
      %s252 = sphi 0, %s251
      %s266 = sphi 0, %s252
      %s270 = sphi 0, %s270
      %s272 = sphi 0, %s270
      %s273 = sphi 0, %s272
      %s287 = sphi 0, %s273
      %s291 = sphi 0, %s291
      %s293 = sphi 0, %s291
      %s294 = sphi 0, %s293
      %s308 = sphi 0, %s294
      %s312 = sphi 0, %s312
      %s314 = sphi 0, %s312
      %s315 = sphi 0, %s314
      %s329 = sphi 0, %s315
      %s333 = sphi 0, %s333
      %s335 = sphi 0, %s333
      %s336 = sphi 0, %s335
      %s350 = sphi 0, %s336
      %s356 = sphi 0, %s358
      %s359 = sphi 0, %s356
      %s360 = sphi 0, %s359
      %s376 = sphi 0, %s360
    $region4: #{lenet_forward.1} parent=1 // loop_header_branch
      %29 = sbr.rel (%p27) target = $region8
    $region5: #{lenet_forward.1} parent=1 // loop_body
      %s31 = ssub.s32 %s26, 1
      %s32 = ssub.s32 %s26, 2
      %s33 = sadd.s32 %s26, 1
      %s34 = ssub.s32 %s26, %s33
      %p35 = scmp.eq.s32.totalorder %s34, 0
      %s37 = sadd.s32 %s36, 1
      %s38 = scalar_select %p35, %s36, %s37
      %p41 = pneg %p35
      %p42 = scmp.eq.s32.totalorder %s26, 1
      %p43 = por %p41, %p42
      %p44 = scmp.ne.s32.totalorder %s36, %s39
      %p45 = scmp.eq.s32.totalorder %s26, 0
      %p46 = por %p44, %p45
      %p47 = scmp.ne.s32.totalorder %s36, %s39
      %p48 = scmp.eq.s32.totalorder %s31, 1
      %p49 = por %p47, %p48
      %p50 = scmp.ne.s32.totalorder %s39, %s40
      %p51 = scmp.eq.s32.totalorder %s31, 0
      %p52 = por %p50, %p51
      %p53 = scmp.ne.s32.totalorder %s39, %s40
      %p54 = scmp.eq.s32.totalorder %s32, 1
      %p55 = por %p53, %p54
      %p57 = scmp.ne.s32.totalorder %s40, %s56
      %p58 = scmp.eq.s32.totalorder %s32, 0
      %p59 = por %p57, %p58
      %s61 = sadd.s32 %s60, 1
      %p64 = scmp.eq.s32.totalorder %s26, 1
      %p65 = scmp.ne.s32.totalorder %s60, %s62
      %p66 = scmp.eq.s32.totalorder %s26, 0
      %p67 = por %p65, %p66
      %p68 = scmp.ne.s32.totalorder %s60, %s62
      %p69 = scmp.eq.s32.totalorder %s31, 1
      %p70 = por %p68, %p69
      %p71 = scmp.ne.s32.totalorder %s62, %s63
      %p72 = scmp.eq.s32.totalorder %s31, 0
      %p73 = por %p71, %p72
      %p74 = scmp.ne.s32.totalorder %s62, %s63
      %p75 = scmp.eq.s32.totalorder %s32, 1
      %p76 = por %p74, %p75
      %p78 = scmp.ne.s32.totalorder %s63, %s77
      %p79 = scmp.eq.s32.totalorder %s32, 0
      %p80 = por %p78, %p79
      %s82 = sadd.s32 %s81, 1
      %p85 = scmp.eq.s32.totalorder %s26, 1
      %p86 = scmp.ne.s32.totalorder %s81, %s83
      %p87 = scmp.eq.s32.totalorder %s26, 0
      %p88 = por %p86, %p87
      %p89 = scmp.ne.s32.totalorder %s81, %s83
      %p90 = scmp.eq.s32.totalorder %s31, 1
      %p91 = por %p89, %p90
      %p92 = scmp.ne.s32.totalorder %s83, %s84
      %p93 = scmp.eq.s32.totalorder %s31, 0
      %p94 = por %p92, %p93
      %p95 = scmp.ne.s32.totalorder %s83, %s84
      %p96 = scmp.eq.s32.totalorder %s32, 1
      %p97 = por %p95, %p96
      %p99 = scmp.ne.s32.totalorder %s84, %s98
      %p100 = scmp.eq.s32.totalorder %s32, 0
      %p101 = por %p99, %p100
      %s103 = sadd.s32 %s102, 1
      %p106 = scmp.eq.s32.totalorder %s26, 1
      %p107 = scmp.ne.s32.totalorder %s102, %s104
      %p108 = scmp.eq.s32.totalorder %s26, 0
      %p109 = por %p107, %p108
      %p110 = scmp.ne.s32.totalorder %s102, %s104
      %p111 = scmp.eq.s32.totalorder %s31, 1
      %p112 = por %p110, %p111
      %p113 = scmp.ne.s32.totalorder %s104, %s105
      %p114 = scmp.eq.s32.totalorder %s31, 0
      %p115 = por %p113, %p114
      %p116 = scmp.ne.s32.totalorder %s104, %s105
      %p117 = scmp.eq.s32.totalorder %s32, 1
      %p118 = por %p116, %p117
      %p120 = scmp.ne.s32.totalorder %s105, %s119
      %p121 = scmp.eq.s32.totalorder %s32, 0
      %p122 = por %p120, %p121
      %s124 = sadd.s32 %s123, 1
      %p127 = scmp.eq.s32.totalorder %s26, 1
      %p128 = scmp.ne.s32.totalorder %s123, %s125
      %p129 = scmp.eq.s32.totalorder %s26, 0
      %p130 = por %p128, %p129
      %p131 = scmp.ne.s32.totalorder %s123, %s125
      %p132 = scmp.eq.s32.totalorder %s31, 1
      %p133 = por %p131, %p132
      %p134 = scmp.ne.s32.totalorder %s125, %s126
      %p135 = scmp.eq.s32.totalorder %s31, 0
      %p136 = por %p134, %p135
      %p137 = scmp.ne.s32.totalorder %s125, %s126
      %p138 = scmp.eq.s32.totalorder %s32, 1
      %p139 = por %p137, %p138
      %p141 = scmp.ne.s32.totalorder %s126, %s140
      %p142 = scmp.eq.s32.totalorder %s32, 0
      %p143 = por %p141, %p142
      %s145 = sadd.s32 %s144, 1
      %p148 = scmp.eq.s32.totalorder %s26, 1
      %p149 = scmp.ne.s32.totalorder %s144, %s146
      %p150 = scmp.eq.s32.totalorder %s26, 0
      %p151 = por %p149, %p150
      %p152 = scmp.ne.s32.totalorder %s144, %s146
      %p153 = scmp.eq.s32.totalorder %s31, 1
      %p154 = por %p152, %p153
      %p155 = scmp.ne.s32.totalorder %s146, %s147
      %p156 = scmp.eq.s32.totalorder %s31, 0
      %p157 = por %p155, %p156
      %p158 = scmp.ne.s32.totalorder %s146, %s147
      %p159 = scmp.eq.s32.totalorder %s32, 1
      %p160 = por %p158, %p159
      %p162 = scmp.ne.s32.totalorder %s147, %s161
      %p163 = scmp.eq.s32.totalorder %s32, 0
      %p164 = por %p162, %p163
      %s166 = sadd.s32 %s165, 1
      %p169 = scmp.eq.s32.totalorder %s26, 1
      %p170 = scmp.ne.s32.totalorder %s165, %s167
      %p171 = scmp.eq.s32.totalorder %s26, 0
      %p172 = por %p170, %p171
      %p173 = scmp.ne.s32.totalorder %s165, %s167
      %p174 = scmp.eq.s32.totalorder %s31, 1
      %p175 = por %p173, %p174
      %p176 = scmp.ne.s32.totalorder %s167, %s168
      %p177 = scmp.eq.s32.totalorder %s31, 0
      %p178 = por %p176, %p177
      %p179 = scmp.ne.s32.totalorder %s167, %s168
      %p180 = scmp.eq.s32.totalorder %s32, 1
      %p181 = por %p179, %p180
      %p183 = scmp.ne.s32.totalorder %s168, %s182
      %p184 = scmp.eq.s32.totalorder %s32, 0
      %p185 = por %p183, %p184
      %s187 = sadd.s32 %s186, 1
      %p190 = scmp.eq.s32.totalorder %s26, 1
      %p191 = scmp.ne.s32.totalorder %s186, %s188
      %p192 = scmp.eq.s32.totalorder %s26, 0
      %p193 = por %p191, %p192
      %p194 = scmp.ne.s32.totalorder %s186, %s188
      %p195 = scmp.eq.s32.totalorder %s31, 1
      %p196 = por %p194, %p195
      %p197 = scmp.ne.s32.totalorder %s188, %s189
      %p198 = scmp.eq.s32.totalorder %s31, 0
      %p199 = por %p197, %p198
      %p200 = scmp.ne.s32.totalorder %s188, %s189
      %p201 = scmp.eq.s32.totalorder %s32, 1
      %p202 = por %p200, %p201
      %p204 = scmp.ne.s32.totalorder %s189, %s203
      %p205 = scmp.eq.s32.totalorder %s32, 0
      %p206 = por %p204, %p205
      %s208 = sadd.s32 %s207, 1
      %p211 = scmp.eq.s32.totalorder %s26, 1
      %p212 = scmp.ne.s32.totalorder %s207, %s209
      %p213 = scmp.eq.s32.totalorder %s26, 0
      %p214 = por %p212, %p213
      %p215 = scmp.ne.s32.totalorder %s207, %s209
      %p216 = scmp.eq.s32.totalorder %s31, 1
      %p217 = por %p215, %p216
      %p218 = scmp.ne.s32.totalorder %s209, %s210
      %p219 = scmp.eq.s32.totalorder %s31, 0
      %p220 = por %p218, %p219
      %p221 = scmp.ne.s32.totalorder %s209, %s210
      %p222 = scmp.eq.s32.totalorder %s32, 1
      %p223 = por %p221, %p222
      %p225 = scmp.ne.s32.totalorder %s210, %s224
      %p226 = scmp.eq.s32.totalorder %s32, 0
      %p227 = por %p225, %p226
      %s229 = sadd.s32 %s228, 1
      %p232 = scmp.eq.s32.totalorder %s26, 1
      %p233 = scmp.ne.s32.totalorder %s228, %s230
      %p234 = scmp.eq.s32.totalorder %s26, 0
      %p235 = por %p233, %p234
      %p236 = scmp.ne.s32.totalorder %s228, %s230
      %p237 = scmp.eq.s32.totalorder %s31, 1
      %p238 = por %p236, %p237
      %p239 = scmp.ne.s32.totalorder %s230, %s231
      %p240 = scmp.eq.s32.totalorder %s31, 0
      %p241 = por %p239, %p240
      %p242 = scmp.ne.s32.totalorder %s230, %s231
      %p243 = scmp.eq.s32.totalorder %s32, 1
      %p244 = por %p242, %p243
      %p246 = scmp.ne.s32.totalorder %s231, %s245
      %p247 = scmp.eq.s32.totalorder %s32, 0
      %p248 = por %p246, %p247
      %s250 = sadd.s32 %s249, 1
      %p253 = scmp.eq.s32.totalorder %s26, 1
      %p254 = scmp.ne.s32.totalorder %s249, %s251
      %p255 = scmp.eq.s32.totalorder %s26, 0
      %p256 = por %p254, %p255
      %p257 = scmp.ne.s32.totalorder %s249, %s251
      %p258 = scmp.eq.s32.totalorder %s31, 1
      %p259 = por %p257, %p258
      %p260 = scmp.ne.s32.totalorder %s251, %s252
      %p261 = scmp.eq.s32.totalorder %s31, 0
      %p262 = por %p260, %p261
      %p263 = scmp.ne.s32.totalorder %s251, %s252
      %p264 = scmp.eq.s32.totalorder %s32, 1
      %p265 = por %p263, %p264
      %p267 = scmp.ne.s32.totalorder %s252, %s266
      %p268 = scmp.eq.s32.totalorder %s32, 0
      %p269 = por %p267, %p268
      %s271 = sadd.s32 %s270, 1
      %p274 = scmp.eq.s32.totalorder %s26, 1
      %p275 = scmp.ne.s32.totalorder %s270, %s272
      %p276 = scmp.eq.s32.totalorder %s26, 0
      %p277 = por %p275, %p276
      %p278 = scmp.ne.s32.totalorder %s270, %s272
      %p279 = scmp.eq.s32.totalorder %s31, 1
      %p280 = por %p278, %p279
      %p281 = scmp.ne.s32.totalorder %s272, %s273
      %p282 = scmp.eq.s32.totalorder %s31, 0
      %p283 = por %p281, %p282
      %p284 = scmp.ne.s32.totalorder %s272, %s273
      %p285 = scmp.eq.s32.totalorder %s32, 1
      %p286 = por %p284, %p285
      %p288 = scmp.ne.s32.totalorder %s273, %s287
      %p289 = scmp.eq.s32.totalorder %s32, 0
      %p290 = por %p288, %p289
      %s292 = sadd.s32 %s291, 1
      %p295 = scmp.eq.s32.totalorder %s26, 1
      %p296 = scmp.ne.s32.totalorder %s291, %s293
      %p297 = scmp.eq.s32.totalorder %s26, 0
      %p298 = por %p296, %p297
      %p299 = scmp.ne.s32.totalorder %s291, %s293
      %p300 = scmp.eq.s32.totalorder %s31, 1
      %p301 = por %p299, %p300
      %p302 = scmp.ne.s32.totalorder %s293, %s294
      %p303 = scmp.eq.s32.totalorder %s31, 0
      %p304 = por %p302, %p303
      %p305 = scmp.ne.s32.totalorder %s293, %s294
      %p306 = scmp.eq.s32.totalorder %s32, 1
      %p307 = por %p305, %p306
      %p309 = scmp.ne.s32.totalorder %s294, %s308
      %p310 = scmp.eq.s32.totalorder %s32, 0
      %p311 = por %p309, %p310
      %s313 = sadd.s32 %s312, 1
      %p316 = scmp.eq.s32.totalorder %s26, 1
      %p317 = scmp.ne.s32.totalorder %s312, %s314
      %p318 = scmp.eq.s32.totalorder %s26, 0
      %p319 = por %p317, %p318
      %p320 = scmp.ne.s32.totalorder %s312, %s314
      %p321 = scmp.eq.s32.totalorder %s31, 1
      %p322 = por %p320, %p321
      %p323 = scmp.ne.s32.totalorder %s314, %s315
      %p324 = scmp.eq.s32.totalorder %s31, 0
      %p325 = por %p323, %p324
      %p326 = scmp.ne.s32.totalorder %s314, %s315
      %p327 = scmp.eq.s32.totalorder %s32, 1
      %p328 = por %p326, %p327
      %p330 = scmp.ne.s32.totalorder %s315, %s329
      %p331 = scmp.eq.s32.totalorder %s32, 0
      %p332 = por %p330, %p331
      %s334 = sadd.s32 %s333, 1
      %p337 = scmp.eq.s32.totalorder %s26, 1
      %p338 = scmp.ne.s32.totalorder %s333, %s335
      %p339 = scmp.eq.s32.totalorder %s26, 0
      %p340 = por %p338, %p339
      %p341 = scmp.ne.s32.totalorder %s333, %s335
      %p342 = scmp.eq.s32.totalorder %s31, 1
      %p343 = por %p341, %p342
      %p344 = scmp.ne.s32.totalorder %s335, %s336
      %p345 = scmp.eq.s32.totalorder %s31, 0
      %p346 = por %p344, %p345
      %p347 = scmp.ne.s32.totalorder %s335, %s336
      %p348 = scmp.eq.s32.totalorder %s32, 1
      %p349 = por %p347, %p348
      %p351 = scmp.ne.s32.totalorder %s336, %s350
      %p352 = scmp.eq.s32.totalorder %s32, 0
      %p353 = por %p351, %p352
      %s354 = ssub.s32 %s26, %s33
      %p355 = scmp.eq.s32.totalorder %s354, 0
      %s357 = sadd.s32 %s356, 1
      %s358 = scalar_select %p355, %s356, %s357
      %p361 = pneg %p355
      %p362 = scmp.eq.s32.totalorder %s26, 1
      %p363 = por %p361, %p362
      %p364 = scmp.ne.s32.totalorder %s356, %s359
      %p365 = scmp.eq.s32.totalorder %s26, 0
      %p366 = por %p364, %p365
      %p367 = scmp.ne.s32.totalorder %s356, %s359
      %p368 = scmp.eq.s32.totalorder %s31, 1
      %p369 = por %p367, %p368
      %p370 = scmp.ne.s32.totalorder %s359, %s360
      %p371 = scmp.eq.s32.totalorder %s31, 0
      %p372 = por %p370, %p371
      %p373 = scmp.ne.s32.totalorder %s359, %s360
      %p374 = scmp.eq.s32.totalorder %s32, 1
      %p375 = por %p373, %p374
      %p377 = scmp.ne.s32.totalorder %s360, %s376
      %p378 = scmp.eq.s32.totalorder %s32, 0
      %p379 = por %p377, %p378
      %p380 = scmp.le.s32.totalorder 1, %s26
      %p381 = scmp.lt.s32.totalorder %s26, 3
      %p382 = pnand %p380, %p381
      %p383 = pneg %p382
      // Predicated region
      $region9: #{lenet_forward.1} parent=5 // pred_check
        _
      $region10: #{lenet_forward.1} parent=5 // pred_check_branch
        %385 = sbr.rel (%p382) target = $region12
      $region11: #{lenet_forward.1} parent=5 // pred_region
        %s386 = ssub.s32 %s26, 1
        // Predicated region
        $region13: #{lenet_forward.1} parent=11 // pred_check
          %p387 = pneg %p73
        $region14: #{lenet_forward.1} parent=11 // pred_check_branch
          %389 = sbr.rel (%p387) target = $region16
        $region15: #{lenet_forward.1} parent=11 // pred_region
          _
        $region16: #{lenet_forward.1} parent=11 // pred_fallthru
          _
        // Predicated region
        $region17: #{lenet_forward.1} parent=11 // pred_check
          %p390 = pneg %p94
        $region18: #{lenet_forward.1} parent=11 // pred_check_branch
          %392 = sbr.rel (%p390) target = $region20
        $region19: #{lenet_forward.1} parent=11 // pred_region
          _
        $region20: #{lenet_forward.1} parent=11 // pred_fallthru
          _
        // Predicated region
        $region21: #{lenet_forward.1} parent=11 // pred_check
          %p393 = pneg %p115
        $region22: #{lenet_forward.1} parent=11 // pred_check_branch
          %395 = sbr.rel (%p393) target = $region24
        $region23: #{lenet_forward.1} parent=11 // pred_region
          _
        $region24: #{lenet_forward.1} parent=11 // pred_fallthru
          _
        // Predicated region
        $region25: #{lenet_forward.1} parent=11 // pred_check
          %p396 = pneg %p136
        $region26: #{lenet_forward.1} parent=11 // pred_check_branch
          %398 = sbr.rel (%p396) target = $region28
        $region27: #{lenet_forward.1} parent=11 // pred_region
          %s400 = ssub.s32 2304, 2304
          %401 = vsyncadd [#allocation5], %s400
          %s402 = sshll.u32 [#allocation4], 4
          %s403 = int_to_ptr.vmem [resolvable:$true] %s402
          %408 = dma.hbm_to_vmem [thread:$0]  %s4, 2304, %s403, [#allocation5], 128, 128, 8
        $region28: #{lenet_forward.1} parent=11 // pred_fallthru
          _
        // Predicated region
        $region29: #{lenet_forward.1} parent=11 // pred_check
          %p409 = pneg %p157
        $region30: #{lenet_forward.1} parent=11 // pred_check_branch
          %411 = sbr.rel (%p409) target = $region32
        $region31: #{lenet_forward.1} parent=11 // pred_region
          _
        $region32: #{lenet_forward.1} parent=11 // pred_fallthru
          _
        // Predicated region
        $region33: #{lenet_forward.1} parent=11 // pred_check
          %p412 = pneg %p178
        $region34: #{lenet_forward.1} parent=11 // pred_check_branch
          %414 = sbr.rel (%p412) target = $region36
        $region35: #{lenet_forward.1} parent=11 // pred_region
          _
        $region36: #{lenet_forward.1} parent=11 // pred_fallthru
          _
        // Predicated region
        $region37: #{lenet_forward.1} parent=11 // pred_check
          %p415 = pneg %p199
        $region38: #{lenet_forward.1} parent=11 // pred_check_branch
          %417 = sbr.rel (%p415) target = $region40
        $region39: #{lenet_forward.1} parent=11 // pred_region
          _
        $region40: #{lenet_forward.1} parent=11 // pred_fallthru
          _
        // Predicated region
        $region41: #{lenet_forward.1} parent=11 // pred_check
          %p418 = pneg %p220
        $region42: #{lenet_forward.1} parent=11 // pred_check_branch
          %420 = sbr.rel (%p418) target = $region44
        $region43: #{lenet_forward.1} parent=11 // pred_region
          _
        $region44: #{lenet_forward.1} parent=11 // pred_fallthru
          _
        // Predicated region
        $region45: #{lenet_forward.1} parent=11 // pred_check
          %p421 = pneg %p241
        $region46: #{lenet_forward.1} parent=11 // pred_check_branch
          %423 = sbr.rel (%p421) target = $region48
        $region47: #{lenet_forward.1} parent=11 // pred_region
          _
        $region48: #{lenet_forward.1} parent=11 // pred_fallthru
          _
        // Predicated region
        $region49: #{lenet_forward.1} parent=11 // pred_check
          %p424 = pneg %p262
        $region50: #{lenet_forward.1} parent=11 // pred_check_branch
          %426 = sbr.rel (%p424) target = $region52
        $region51: #{lenet_forward.1} parent=11 // pred_region
          _
        $region52: #{lenet_forward.1} parent=11 // pred_fallthru
          _
        // Predicated region
        $region53: #{lenet_forward.1} parent=11 // pred_check
          %p427 = pneg %p283
        $region54: #{lenet_forward.1} parent=11 // pred_check_branch
          %429 = sbr.rel (%p427) target = $region56
        $region55: #{lenet_forward.1} parent=11 // pred_region
          _
        $region56: #{lenet_forward.1} parent=11 // pred_fallthru
          _
        // Predicated region
        $region57: #{lenet_forward.1} parent=11 // pred_check
          %p430 = pneg %p304
        $region58: #{lenet_forward.1} parent=11 // pred_check_branch
          %432 = sbr.rel (%p430) target = $region60
        $region59: #{lenet_forward.1} parent=11 // pred_region
          _
        $region60: #{lenet_forward.1} parent=11 // pred_fallthru
          _
        // Predicated region
        $region61: #{lenet_forward.1} parent=11 // pred_check
          %p433 = pneg %p325
        $region62: #{lenet_forward.1} parent=11 // pred_check_branch
          %435 = sbr.rel (%p433) target = $region64
        $region63: #{lenet_forward.1} parent=11 // pred_region
          %s437 = ssub.s32 1408, 1408
          %438 = vsyncadd [#allocation8], %s437
          %s439 = sshll.u32 [#allocation7], 4
          %s440 = int_to_ptr.vmem [resolvable:$true] %s439
          %445 = dma.hbm_to_vmem [thread:$0]  %s13, 1408, %s440, [#allocation8], 128, 128, 8
        $region64: #{lenet_forward.1} parent=11 // pred_fallthru
          _
        // Predicated region
        $region65: #{lenet_forward.1} parent=11 // pred_check
          %p446 = pneg %p346
        $region66: #{lenet_forward.1} parent=11 // pred_check_branch
          %448 = sbr.rel (%p446) target = $region68
        $region67: #{lenet_forward.1} parent=11 // pred_region
          _
        $region68: #{lenet_forward.1} parent=11 // pred_fallthru
          _
      $region12: #{lenet_forward.1} parent=5 // pred_fallthru
        _
      %p449 = scmp.lt.s32.totalorder %s26, 2
      // Predicated region
      $region69: #{lenet_forward.1} parent=5 // pred_check
        %p450 = pneg %p449
      $region70: #{lenet_forward.1} parent=5 // pred_check_branch
        %452 = sbr.rel (%p450) target = $region72
      $region71: #{lenet_forward.1} parent=5 // pred_region
        // Predicated region
        $region73: #{lenet_forward.1} parent=71 // pred_check
          %p453 = pneg %p46
        $region74: #{lenet_forward.1} parent=71 // pred_check_branch
          %455 = sbr.rel (%p453) target = $region76
        $region75: #{lenet_forward.1} parent=71 // pred_region
          %s456 = smul.u32 8, %s26
          %p457 = scmp.lt.s32.totalorder %s456, 15
          %s458 = scalar_select %p457, %s456, 15
          %s459 = smul.addr %s458, 4
          %s460 = smul.addr %s459, 8
          %s461 = scalar_lea.vmem %s0, %s460
          %s462 = smul.u32 8, %s26
        $region76: #{lenet_forward.1} parent=71 // pred_fallthru
          _
      $region72: #{lenet_forward.1} parent=5 // pred_fallthru
        _
      %p463 = scmp.le.s32.totalorder 1, %s26
      %p464 = scmp.lt.s32.totalorder %s26, 3
      %p465 = pnand %p463, %p464
      %p466 = pneg %p465
      // Predicated region
      $region77: #{lenet_forward.1} parent=5 // pred_check
        _
      $region78: #{lenet_forward.1} parent=5 // pred_check_branch
        %468 = sbr.rel (%p465) target = $region80
      $region79: #{lenet_forward.1} parent=5 // pred_region
        %s469 = ssub.s32 %s26, 1
        // Predicated region
        $region81: #{lenet_forward.1} parent=79 // pred_check
          %p470 = pneg %p136
        $region82: #{lenet_forward.1} parent=79 // pred_check_branch
          %472 = sbr.rel (%p470) target = $region84
        $region83: #{lenet_forward.1} parent=79 // pred_region
          %473 = dma.done [#allocation5], 2304
        $region84: #{lenet_forward.1} parent=79 // pred_fallthru
          _
        // Predicated region
        $region85: #{lenet_forward.1} parent=79 // pred_check
          %p474 = pneg %p325
        $region86: #{lenet_forward.1} parent=79 // pred_check_branch
          %476 = sbr.rel (%p474) target = $region88
        $region87: #{lenet_forward.1} parent=79 // pred_region
          %477 = dma.done [#allocation8], 1408
        $region88: #{lenet_forward.1} parent=79 // pred_fallthru
          _
        %s478 = smul.u32 8, %s31
        %p479 = scmp.lt.s32.totalorder %s478, 15
        %s480 = scalar_select %p479, %s478, 15
        %s481 = smul.addr %s480, 4
        %s482 = smul.addr %s481, 8
        %s483 = scalar_lea.vmem %s0, %s482
        %p484 = pneg %p52
        %p485 = pneg %p49
        %p486 = pneg %p73
        %p487 = pneg %p70
        %p488 = pneg %p94
        %p489 = pneg %p91
        %p490 = pneg %p115
        %p491 = pneg %p112
        %p492 = pneg %p136
        %p493 = pneg %p133
        %p494 = pneg %p157
        %p495 = pneg %p154
        %p496 = pneg %p178
        %p497 = pneg %p175
        %p498 = pneg %p199
        %p499 = pneg %p196
        %p500 = pneg %p220
        %p501 = pneg %p217
        %p502 = pneg %p241
        %p503 = pneg %p238
        %p504 = pneg %p262
        %p505 = pneg %p259
        %p506 = pneg %p283
        %p507 = pneg %p280
        %p508 = pneg %p304
        %p509 = pneg %p301
        %p510 = pneg %p325
        %p511 = pneg %p322
        %p512 = pneg %p346
        %p513 = pneg %p343
        %p514 = pneg %p372
        %p515 = pneg %p369
        %s516 = sand.u32 %s359, 1
        %s517 = scalar_lea.sflag [#allocation6], %s516
        %s518 = sand.u32 %s359, 1
        %s519 = smul.addr %s518, 8
        %s520 = scalar_lea.vmem [#allocation9], %s519
        %s521 = smul.u32 8, %s31
        %p522 = scmp.lt.s32.totalorder %s521, 15
        %s523 = scalar_select %p522, %s521, 15
        %s524 = smul.addr %s523, 4
        %s525 = smul.addr %s524, 8
        %s526 = scalar_lea.vmem %s0, %s525
        %s527 = smul.u32 8, %s31
        %v528 = vld [vmem:[%s526] sm:$0xff]
        %v529 = vld [vmem:[%s526 + $0x8] sm:$0xff]
        %v530 = vld [vmem:[%s526 + $0x10] sm:$0xff]
        %v531 = vld [vmem:[%s526 + $0x20] sm:$0xff]
        %v532 = vld [vmem:[%s526 + $0x28] sm:$0xff]
        %v533 = vld [vmem:[%s526 + $0x30] sm:$0xff]
        %v534 = vld [vmem:[%s526 + $0x40] sm:$0xff]
        %v535 = vld [vmem:[%s526 + $0x48] sm:$0xff]
        %v536 = vld [vmem:[%s526 + $0x50] sm:$0xff]
        %v537 = vld [vmem:[%s526 + $0x60] sm:$0xff]
        %v538 = vld [vmem:[%s526 + $0x68] sm:$0xff]
        %v539 = vld [vmem:[%s526 + $0x70] sm:$0xff]
        %v540 = vld [vmem:[%s526 + $0x80] sm:$0xff]
        %v541 = vld [vmem:[%s526 + $0x88] sm:$0xff]
        %v542 = vld [vmem:[%s526 + $0x90] sm:$0xff]
        %v543 = vld [vmem:[%s526 + $0xa0] sm:$0xff]
        %v544 = vld [vmem:[%s526 + $0xa8] sm:$0xff]
        %v545 = vld [vmem:[%s526 + $0xb0] sm:$0xff]
        %v546 = vld [vmem:[%s526 + $0xc0] sm:$0xff]
        %v547 = vld [vmem:[%s526 + $0xc8] sm:$0xff]
        %v548 = vld [vmem:[%s526 + $0xd0] sm:$0xff]
        %v549 = vld [vmem:[%s526 + $0xe0] sm:$0xff]
        %v550 = vld [vmem:[%s526 + $0xe8] sm:$0xff]
        %v551 = vld [vmem:[%s526 + $0xf0] sm:$0xff]
        %v552 = vld [vmem:[%s526 + $0x1] sm:$0xff]
        %v553 = vld [vmem:[%s526 + $0x9] sm:$0xff]
        %v554 = vld [vmem:[%s526 + $0x11] sm:$0xff]
        %v555 = vld [vmem:[%s526 + $0x21] sm:$0xff]
        %v556 = vld [vmem:[%s526 + $0x29] sm:$0xff]
        %v557 = vld [vmem:[%s526 + $0x31] sm:$0xff]
        %v558 = vld [vmem:[%s526 + $0x41] sm:$0xff]
        %v559 = vld [vmem:[%s526 + $0x49] sm:$0xff]
        %v560 = vld [vmem:[%s526 + $0x51] sm:$0xff]
        %v561 = vld [vmem:[%s526 + $0x61] sm:$0xff]
        %v562 = vld [vmem:[%s526 + $0x69] sm:$0xff]
        %v563 = vld [vmem:[%s526 + $0x71] sm:$0xff]
        %v564 = vld [vmem:[%s526 + $0x81] sm:$0xff]
        %v565 = vld [vmem:[%s526 + $0x89] sm:$0xff]
        %v566 = vld [vmem:[%s526 + $0x91] sm:$0xff]
        %v567 = vld [vmem:[%s526 + $0xa1] sm:$0xff]
        %v568 = vld [vmem:[%s526 + $0xa9] sm:$0xff]
        %v569 = vld [vmem:[%s526 + $0xb1] sm:$0xff]
        %v570 = vld [vmem:[%s526 + $0xc1] sm:$0xff]
        %v571 = vld [vmem:[%s526 + $0xc9] sm:$0xff]
        %v572 = vld [vmem:[%s526 + $0xd1] sm:$0xff]
        %v573 = vld [vmem:[%s526 + $0xe1] sm:$0xff]
        %v574 = vld [vmem:[%s526 + $0xe9] sm:$0xff]
        %v575 = vld [vmem:[%s526 + $0xf1] sm:$0xff]
        %v576 = vld [vmem:[%s526 + $0x2] sm:$0xff]
        %v577 = vld [vmem:[%s526 + $0xa] sm:$0xff]
        %v578 = vld [vmem:[%s526 + $0x12] sm:$0xff]
        %v579 = vld [vmem:[%s526 + $0x22] sm:$0xff]
        %v580 = vld [vmem:[%s526 + $0x2a] sm:$0xff]
        %v581 = vld [vmem:[%s526 + $0x32] sm:$0xff]
        %v582 = vld [vmem:[%s526 + $0x42] sm:$0xff]
        %v583 = vld [vmem:[%s526 + $0x4a] sm:$0xff]
        %v584 = vld [vmem:[%s526 + $0x52] sm:$0xff]
        %v585 = vld [vmem:[%s526 + $0x62] sm:$0xff]
        %v586 = vld [vmem:[%s526 + $0x6a] sm:$0xff]
        %v587 = vld [vmem:[%s526 + $0x72] sm:$0xff]
        %v588 = vld [vmem:[%s526 + $0x82] sm:$0xff]
        %v589 = vld [vmem:[%s526 + $0x8a] sm:$0xff]
        %v590 = vld [vmem:[%s526 + $0x92] sm:$0xff]
        %v591 = vld [vmem:[%s526 + $0xa2] sm:$0xff]
        %v592 = vld [vmem:[%s526 + $0xaa] sm:$0xff]
        %v593 = vld [vmem:[%s526 + $0xb2] sm:$0xff]
        %v594 = vld [vmem:[%s526 + $0xc2] sm:$0xff]
        %v595 = vld [vmem:[%s526 + $0xca] sm:$0xff]
        %v596 = vld [vmem:[%s526 + $0xd2] sm:$0xff]
        %v597 = vld [vmem:[%s526 + $0xe2] sm:$0xff]
        %v598 = vld [vmem:[%s526 + $0xea] sm:$0xff]
        %v599 = vld [vmem:[%s526 + $0xf2] sm:$0xff]
        %v600 = vld [vmem:[%s526 + $0x3] sm:$0xff]
        %v601 = vld [vmem:[%s526 + $0xb] sm:$0xff]
        %v602 = vld [vmem:[%s526 + $0x13] sm:$0xff]
        %v603 = vld [vmem:[%s526 + $0x23] sm:$0xff]
        %v604 = vld [vmem:[%s526 + $0x2b] sm:$0xff]
        %v605 = vld [vmem:[%s526 + $0x33] sm:$0xff]
        %v606 = vld [vmem:[%s526 + $0x43] sm:$0xff]
        %v607 = vld [vmem:[%s526 + $0x4b] sm:$0xff]
        %v608 = vld [vmem:[%s526 + $0x53] sm:$0xff]
        %v609 = vld [vmem:[%s526 + $0x63] sm:$0xff]
        %v610 = vld [vmem:[%s526 + $0x6b] sm:$0xff]
        %v611 = vld [vmem:[%s526 + $0x73] sm:$0xff]
        %v612 = vld [vmem:[%s526 + $0x83] sm:$0xff]
        %v613 = vld [vmem:[%s526 + $0x8b] sm:$0xff]
        %v614 = vld [vmem:[%s526 + $0x93] sm:$0xff]
        %v615 = vld [vmem:[%s526 + $0xa3] sm:$0xff]
        %v616 = vld [vmem:[%s526 + $0xab] sm:$0xff]
        %v617 = vld [vmem:[%s526 + $0xb3] sm:$0xff]
        %v618 = vld [vmem:[%s526 + $0xc3] sm:$0xff]
        %v619 = vld [vmem:[%s526 + $0xcb] sm:$0xff]
        %v620 = vld [vmem:[%s526 + $0xd3] sm:$0xff]
        %v621 = vld [vmem:[%s526 + $0xe3] sm:$0xff]
        %v622 = vld [vmem:[%s526 + $0xeb] sm:$0xff]
        %v623 = vld [vmem:[%s526 + $0xf3] sm:$0xff]
        %v624 = vld [vmem:[%s526 + $0x4] sm:$0xff]
        %v625 = vld [vmem:[%s526 + $0xc] sm:$0xff]
        %v626 = vld [vmem:[%s526 + $0x14] sm:$0xff]
        %v627 = vld [vmem:[%s526 + $0x24] sm:$0xff]
        %v628 = vld [vmem:[%s526 + $0x2c] sm:$0xff]
        %v629 = vld [vmem:[%s526 + $0x34] sm:$0xff]
        %v630 = vld [vmem:[%s526 + $0x44] sm:$0xff]
        %v631 = vld [vmem:[%s526 + $0x4c] sm:$0xff]
        %v632 = vld [vmem:[%s526 + $0x54] sm:$0xff]
        %v633 = vld [vmem:[%s526 + $0x64] sm:$0xff]
        %v634 = vld [vmem:[%s526 + $0x6c] sm:$0xff]
        %v635 = vld [vmem:[%s526 + $0x74] sm:$0xff]
        %v636 = vld [vmem:[%s526 + $0x84] sm:$0xff]
        %v637 = vld [vmem:[%s526 + $0x8c] sm:$0xff]
        %v638 = vld [vmem:[%s526 + $0x94] sm:$0xff]
        %v639 = vld [vmem:[%s526 + $0xa4] sm:$0xff]
        %v640 = vld [vmem:[%s526 + $0xac] sm:$0xff]
        %v641 = vld [vmem:[%s526 + $0xb4] sm:$0xff]
        %v642 = vld [vmem:[%s526 + $0xc4] sm:$0xff]
        %v643 = vld [vmem:[%s526 + $0xcc] sm:$0xff]
        %v644 = vld [vmem:[%s526 + $0xd4] sm:$0xff]
        %v645 = vld [vmem:[%s526 + $0xe4] sm:$0xff]
        %v646 = vld [vmem:[%s526 + $0xec] sm:$0xff]
        %v647 = vld [vmem:[%s526 + $0xf4] sm:$0xff]
        %672 = vrot.lane.b32.xlu0 %v552, 28
        %v673 = vpop.permute.xlu0 %672
        %674 = vrot.lane.b32.xlu0 %v553, 28
        %v675 = vpop.permute.xlu0 %674
        %676 = vrot.lane.b32.xlu0 %v554, 28
        %v677 = vpop.permute.xlu0 %676
        %678 = vrot.lane.b32.xlu0 %v555, 28
        %v679 = vpop.permute.xlu0 %678
        %680 = vrot.lane.b32.xlu0 %v556, 28
        %v681 = vpop.permute.xlu0 %680
        %682 = vrot.lane.b32.xlu0 %v557, 28
        %v683 = vpop.permute.xlu0 %682
        %684 = vrot.lane.b32.xlu0 %v558, 28
        %v685 = vpop.permute.xlu0 %684
        %686 = vrot.lane.b32.xlu0 %v559, 28
        %v687 = vpop.permute.xlu0 %686
        %688 = vrot.lane.b32.xlu0 %v560, 28
        %v689 = vpop.permute.xlu0 %688
        %690 = vrot.lane.b32.xlu0 %v561, 28
        %v691 = vpop.permute.xlu0 %690
        %692 = vrot.lane.b32.xlu0 %v562, 28
        %v693 = vpop.permute.xlu0 %692
        %694 = vrot.lane.b32.xlu0 %v563, 28
        %v695 = vpop.permute.xlu0 %694
        %696 = vrot.lane.b32.xlu0 %v564, 28
        %v697 = vpop.permute.xlu0 %696
        %698 = vrot.lane.b32.xlu0 %v565, 28
        %v699 = vpop.permute.xlu0 %698
        %700 = vrot.lane.b32.xlu0 %v566, 28
        %v701 = vpop.permute.xlu0 %700
        %702 = vrot.lane.b32.xlu0 %v567, 28
        %v703 = vpop.permute.xlu0 %702
        %704 = vrot.lane.b32.xlu0 %v568, 28
        %v705 = vpop.permute.xlu0 %704
        %706 = vrot.lane.b32.xlu0 %v569, 28
        %v707 = vpop.permute.xlu0 %706
        %708 = vrot.lane.b32.xlu0 %v570, 28
        %v709 = vpop.permute.xlu0 %708
        %710 = vrot.lane.b32.xlu0 %v571, 28
        %v711 = vpop.permute.xlu0 %710
        %712 = vrot.lane.b32.xlu0 %v572, 28
        %v713 = vpop.permute.xlu0 %712
        %714 = vrot.lane.b32.xlu0 %v573, 28
        %v715 = vpop.permute.xlu0 %714
        %716 = vrot.lane.b32.xlu0 %v574, 28
        %v717 = vpop.permute.xlu0 %716
        %718 = vrot.lane.b32.xlu0 %v575, 28
        %v719 = vpop.permute.xlu0 %718
        %768 = vrot.lane.b32.xlu0 %v576, 56
        %v769 = vpop.permute.xlu0 %768
        %770 = vrot.lane.b32.xlu0 %v577, 56
        %v771 = vpop.permute.xlu0 %770
        %772 = vrot.lane.b32.xlu0 %v578, 56
        %v773 = vpop.permute.xlu0 %772
        %774 = vrot.lane.b32.xlu0 %v579, 56
        %v775 = vpop.permute.xlu0 %774
        %776 = vrot.lane.b32.xlu0 %v580, 56
        %v777 = vpop.permute.xlu0 %776
        %778 = vrot.lane.b32.xlu0 %v581, 56
        %v779 = vpop.permute.xlu0 %778
        %780 = vrot.lane.b32.xlu0 %v582, 56
        %v781 = vpop.permute.xlu0 %780
        %782 = vrot.lane.b32.xlu0 %v583, 56
        %v783 = vpop.permute.xlu0 %782
        %784 = vrot.lane.b32.xlu0 %v584, 56
        %v785 = vpop.permute.xlu0 %784
        %786 = vrot.lane.b32.xlu0 %v585, 56
        %v787 = vpop.permute.xlu0 %786
        %788 = vrot.lane.b32.xlu0 %v586, 56
        %v789 = vpop.permute.xlu0 %788
        %790 = vrot.lane.b32.xlu0 %v587, 56
        %v791 = vpop.permute.xlu0 %790
        %792 = vrot.lane.b32.xlu0 %v588, 56
        %v793 = vpop.permute.xlu0 %792
        %794 = vrot.lane.b32.xlu0 %v589, 56
        %v795 = vpop.permute.xlu0 %794
        %796 = vrot.lane.b32.xlu0 %v590, 56
        %v797 = vpop.permute.xlu0 %796
        %798 = vrot.lane.b32.xlu0 %v591, 56
        %v799 = vpop.permute.xlu0 %798
        %800 = vrot.lane.b32.xlu0 %v592, 56
        %v801 = vpop.permute.xlu0 %800
        %802 = vrot.lane.b32.xlu0 %v593, 56
        %v803 = vpop.permute.xlu0 %802
        %804 = vrot.lane.b32.xlu0 %v594, 56
        %v805 = vpop.permute.xlu0 %804
        %806 = vrot.lane.b32.xlu0 %v595, 56
        %v807 = vpop.permute.xlu0 %806
        %808 = vrot.lane.b32.xlu0 %v596, 56
        %v809 = vpop.permute.xlu0 %808
        %810 = vrot.lane.b32.xlu0 %v597, 56
        %v811 = vpop.permute.xlu0 %810
        %812 = vrot.lane.b32.xlu0 %v598, 56
        %v813 = vpop.permute.xlu0 %812
        %814 = vrot.lane.b32.xlu0 %v599, 56
        %v815 = vpop.permute.xlu0 %814
        %864 = vrot.lane.b32.xlu0 %v600, 84
        %v865 = vpop.permute.xlu0 %864
        %866 = vrot.lane.b32.xlu0 %v601, 84
        %v867 = vpop.permute.xlu0 %866
        %868 = vrot.lane.b32.xlu0 %v602, 84
        %v869 = vpop.permute.xlu0 %868
        %870 = vrot.lane.b32.xlu0 %v603, 84
        %v871 = vpop.permute.xlu0 %870
        %872 = vrot.lane.b32.xlu0 %v604, 84
        %v873 = vpop.permute.xlu0 %872
        %874 = vrot.lane.b32.xlu0 %v605, 84
        %v875 = vpop.permute.xlu0 %874
        %876 = vrot.lane.b32.xlu0 %v606, 84
        %v877 = vpop.permute.xlu0 %876
        %878 = vrot.lane.b32.xlu0 %v607, 84
        %v879 = vpop.permute.xlu0 %878
        %880 = vrot.lane.b32.xlu0 %v608, 84
        %v881 = vpop.permute.xlu0 %880
        %882 = vrot.lane.b32.xlu0 %v609, 84
        %v883 = vpop.permute.xlu0 %882
        %884 = vrot.lane.b32.xlu0 %v610, 84
        %v885 = vpop.permute.xlu0 %884
        %886 = vrot.lane.b32.xlu0 %v611, 84
        %v887 = vpop.permute.xlu0 %886
        %888 = vrot.lane.b32.xlu0 %v612, 84
        %v889 = vpop.permute.xlu0 %888
        %890 = vrot.lane.b32.xlu0 %v613, 84
        %v891 = vpop.permute.xlu0 %890
        %892 = vrot.lane.b32.xlu0 %v614, 84
        %v893 = vpop.permute.xlu0 %892
        %894 = vrot.lane.b32.xlu0 %v615, 84
        %v895 = vpop.permute.xlu0 %894
        %896 = vrot.lane.b32.xlu0 %v616, 84
        %v897 = vpop.permute.xlu0 %896
        %898 = vrot.lane.b32.xlu0 %v617, 84
        %v899 = vpop.permute.xlu0 %898
        %900 = vrot.lane.b32.xlu0 %v618, 84
        %v901 = vpop.permute.xlu0 %900
        %902 = vrot.lane.b32.xlu0 %v619, 84
        %v903 = vpop.permute.xlu0 %902
        %904 = vrot.lane.b32.xlu0 %v620, 84
        %v905 = vpop.permute.xlu0 %904
        %906 = vrot.lane.b32.xlu0 %v621, 84
        %v907 = vpop.permute.xlu0 %906
        %908 = vrot.lane.b32.xlu0 %v622, 84
        %v909 = vpop.permute.xlu0 %908
        %910 = vrot.lane.b32.xlu0 %v623, 84
        %v911 = vpop.permute.xlu0 %910
        %960 = vrot.lane.b32.xlu0 %v624, 112
        %v961 = vpop.permute.xlu0 %960
        %962 = vrot.lane.b32.xlu0 %v625, 112
        %v963 = vpop.permute.xlu0 %962
        %964 = vrot.lane.b32.xlu0 %v626, 112
        %v965 = vpop.permute.xlu0 %964
        %966 = vrot.lane.b32.xlu0 %v627, 112
        %v967 = vpop.permute.xlu0 %966
        %968 = vrot.lane.b32.xlu0 %v628, 112
        %v969 = vpop.permute.xlu0 %968
        %970 = vrot.lane.b32.xlu0 %v629, 112
        %v971 = vpop.permute.xlu0 %970
        %972 = vrot.lane.b32.xlu0 %v630, 112
        %v973 = vpop.permute.xlu0 %972
        %974 = vrot.lane.b32.xlu0 %v631, 112
        %v975 = vpop.permute.xlu0 %974
        %976 = vrot.lane.b32.xlu0 %v632, 112
        %v977 = vpop.permute.xlu0 %976
        %978 = vrot.lane.b32.xlu0 %v633, 112
        %v979 = vpop.permute.xlu0 %978
        %980 = vrot.lane.b32.xlu0 %v634, 112
        %v981 = vpop.permute.xlu0 %980
        %982 = vrot.lane.b32.xlu0 %v635, 112
        %v983 = vpop.permute.xlu0 %982
        %984 = vrot.lane.b32.xlu0 %v636, 112
        %v985 = vpop.permute.xlu0 %984
        %986 = vrot.lane.b32.xlu0 %v637, 112
        %v987 = vpop.permute.xlu0 %986
        %988 = vrot.lane.b32.xlu0 %v638, 112
        %v989 = vpop.permute.xlu0 %988
        %990 = vrot.lane.b32.xlu0 %v639, 112
        %v991 = vpop.permute.xlu0 %990
        %992 = vrot.lane.b32.xlu0 %v640, 112
        %v993 = vpop.permute.xlu0 %992
        %994 = vrot.lane.b32.xlu0 %v641, 112
        %v995 = vpop.permute.xlu0 %994
        %996 = vrot.lane.b32.xlu0 %v642, 112
        %v997 = vpop.permute.xlu0 %996
        %998 = vrot.lane.b32.xlu0 %v643, 112
        %v999 = vpop.permute.xlu0 %998
        %1000 = vrot.lane.b32.xlu0 %v644, 112
        %v1001 = vpop.permute.xlu0 %1000
        %1002 = vrot.lane.b32.xlu0 %v645, 112
        %v1003 = vpop.permute.xlu0 %1002
        %1004 = vrot.lane.b32.xlu0 %v646, 112
        %v1005 = vpop.permute.xlu0 %1004
        %1006 = vrot.lane.b32.xlu0 %v647, 112
        %v1007 = vpop.permute.xlu0 %1006
        %vm1032 = vcmask 228352
        %v1033 = vsel %vm1032, %v528, %v673
        %v1034 = vsel %vm1032, %v529, %v675
        %v1035 = vsel %vm1032, %v530, %v677
        %v1036 = vsel %vm1032, %v531, %v679
        %v1037 = vsel %vm1032, %v532, %v681
        %v1038 = vsel %vm1032, %v533, %v683
        %v1039 = vsel %vm1032, %v534, %v685
        %v1040 = vsel %vm1032, %v535, %v687
        %v1041 = vsel %vm1032, %v536, %v689
        %v1042 = vsel %vm1032, %v537, %v691
        %v1043 = vsel %vm1032, %v538, %v693
        %v1044 = vsel %vm1032, %v539, %v695
        %v1045 = vsel %vm1032, %v540, %v697
        %v1046 = vsel %vm1032, %v541, %v699
        %v1047 = vsel %vm1032, %v542, %v701
        %v1048 = vsel %vm1032, %v543, %v703
        %v1049 = vsel %vm1032, %v544, %v705
        %v1050 = vsel %vm1032, %v545, %v707
        %v1051 = vsel %vm1032, %v546, %v709
        %v1052 = vsel %vm1032, %v547, %v711
        %v1053 = vsel %vm1032, %v548, %v713
        %v1054 = vsel %vm1032, %v549, %v715
        %v1055 = vsel %vm1032, %v550, %v717
        %v1056 = vsel %vm1032, %v551, %v719
        %vm1057 = vcmask 457728
        %v1058 = vsel %vm1057, %v1033, %v769
        %v1059 = vsel %vm1057, %v1034, %v771
        %v1060 = vsel %vm1057, %v1035, %v773
        %v1061 = vsel %vm1057, %v1036, %v775
        %v1062 = vsel %vm1057, %v1037, %v777
        %v1063 = vsel %vm1057, %v1038, %v779
        %v1064 = vsel %vm1057, %v1039, %v781
        %v1065 = vsel %vm1057, %v1040, %v783
        %v1066 = vsel %vm1057, %v1041, %v785
        %v1067 = vsel %vm1057, %v1042, %v787
        %v1068 = vsel %vm1057, %v1043, %v789
        %v1069 = vsel %vm1057, %v1044, %v791
        %v1070 = vsel %vm1057, %v1045, %v793
        %v1071 = vsel %vm1057, %v1046, %v795
        %v1072 = vsel %vm1057, %v1047, %v797
        %v1073 = vsel %vm1057, %v1048, %v799
        %v1074 = vsel %vm1057, %v1049, %v801
        %v1075 = vsel %vm1057, %v1050, %v803
        %v1076 = vsel %vm1057, %v1051, %v805
        %v1077 = vsel %vm1057, %v1052, %v807
        %v1078 = vsel %vm1057, %v1053, %v809
        %v1079 = vsel %vm1057, %v1054, %v811
        %v1080 = vsel %vm1057, %v1055, %v813
        %v1081 = vsel %vm1057, %v1056, %v815
        %vm1082 = vcmask 687104
        %v1083 = vsel %vm1082, %v1058, %v865
        %v1084 = vsel %vm1082, %v1059, %v867
        %v1085 = vsel %vm1082, %v1060, %v869
        %v1086 = vsel %vm1082, %v1061, %v871
        %v1087 = vsel %vm1082, %v1062, %v873
        %v1088 = vsel %vm1082, %v1063, %v875
        %v1089 = vsel %vm1082, %v1064, %v877
        %v1090 = vsel %vm1082, %v1065, %v879
        %v1091 = vsel %vm1082, %v1066, %v881
        %v1092 = vsel %vm1082, %v1067, %v883
        %v1093 = vsel %vm1082, %v1068, %v885
        %v1094 = vsel %vm1082, %v1069, %v887
        %v1095 = vsel %vm1082, %v1070, %v889
        %v1096 = vsel %vm1082, %v1071, %v891
        %v1097 = vsel %vm1082, %v1072, %v893
        %v1098 = vsel %vm1082, %v1073, %v895
        %v1099 = vsel %vm1082, %v1074, %v897
        %v1100 = vsel %vm1082, %v1075, %v899
        %v1101 = vsel %vm1082, %v1076, %v901
        %v1102 = vsel %vm1082, %v1077, %v903
        %v1103 = vsel %vm1082, %v1078, %v905
        %v1104 = vsel %vm1082, %v1079, %v907
        %v1105 = vsel %vm1082, %v1080, %v909
        %v1106 = vsel %vm1082, %v1081, %v911
        %vm1107 = vcmask 916480
        %v1108 = vsel %vm1107, %v1083, %v961
        %v1109 = vsel %vm1107, %v1084, %v963
        %v1110 = vsel %vm1107, %v1085, %v965
        %v1111 = vsel %vm1107, %v1086, %v967
        %v1112 = vsel %vm1107, %v1087, %v969
        %v1113 = vsel %vm1107, %v1088, %v971
        %v1114 = vsel %vm1107, %v1089, %v973
        %v1115 = vsel %vm1107, %v1090, %v975
        %v1116 = vsel %vm1107, %v1091, %v977
        %v1117 = vsel %vm1107, %v1092, %v979
        %v1118 = vsel %vm1107, %v1093, %v981
        %v1119 = vsel %vm1107, %v1094, %v983
        %v1120 = vsel %vm1107, %v1095, %v985
        %v1121 = vsel %vm1107, %v1096, %v987
        %v1122 = vsel %vm1107, %v1097, %v989
        %v1123 = vsel %vm1107, %v1098, %v991
        %v1124 = vsel %vm1107, %v1099, %v993
        %v1125 = vsel %vm1107, %v1100, %v995
        %v1126 = vsel %vm1107, %v1101, %v997
        %v1127 = vsel %vm1107, %v1102, %v999
        %v1128 = vsel %vm1107, %v1103, %v1001
        %v1129 = vsel %vm1107, %v1104, %v1003
        %v1130 = vsel %vm1107, %v1105, %v1005
        %v1131 = vsel %vm1107, %v1106, %v1007
        %v1132 = vld [vmem:[%s1] sm:$0xff]
        %v1133 = vld [vmem:[%s1 + $0x8] sm:$0xff]
        %v1134 = vld [vmem:[%s1 + $0x10] sm:$0xff]
        %v1135 = vld [vmem:[%s1 + $0x18] sm:$0xff]
        %v1136 = vld [vmem:[%s1 + $0x20] sm:$0xff]
        %v1137 = vld [vmem:[%s1 + $0x28] sm:$0xff]
        %v1138 = vld [vmem:[%s1 + $0x30] sm:$0xff]
        %v1139 = vld [vmem:[%s1 + $0x38] sm:$0xff]
        %v1140 = vld [vmem:[%s1 + $0x40] sm:$0xff]
        %v1141 = vld [vmem:[%s1 + $0x48] sm:$0xff]
        %v1142 = vld [vmem:[%s1 + $0x50] sm:$0xff]
        %v1143 = vld [vmem:[%s1 + $0x58] sm:$0xff]
        %v1144 = vld [vmem:[%s1 + $0x60] sm:$0xff]
        %v1145 = vld [vmem:[%s1 + $0x68] sm:$0xff]
        %v1146 = vld [vmem:[%s1 + $0x70] sm:$0xff]
        %v1147 = vld [vmem:[%s1 + $0x78] sm:$0xff]
        %v1148 = vld [vmem:[%s1 + $0x80] sm:$0xff]
        %v1149 = vld [vmem:[%s1 + $0x88] sm:$0xff]
        %v1150 = vld [vmem:[%s1 + $0x90] sm:$0xff]
        %v1151 = vld [vmem:[%s1 + $0x98] sm:$0xff]
        %v1152 = vld [vmem:[%s1 + $0xa0] sm:$0xff]
        %v1153 = vld [vmem:[%s1 + $0xa8] sm:$0xff]
        %v1154 = vld [vmem:[%s1 + $0xb0] sm:$0xff]
        %v1155 = vld [vmem:[%s1 + $0xb8] sm:$0xff]
        %v1156 = vld [vmem:[%s1 + $0xc0] sm:$0xff]
        %v1157 = vld [vmem:[%s1 + $0xc8] sm:$0xff]
        %v1158 = vld [vmem:[%s1 + $0xd0] sm:$0xff]
        %v1159 = vld [vmem:[%s1 + $0xd8] sm:$0xff]
        %v1160 = vld [vmem:[%s1 + $0xe0] sm:$0xff]
        %v1161 = vld [vmem:[%s1 + $0xe8] sm:$0xff]
        %v1162 = vld [vmem:[%s1 + $0xf0] sm:$0xff]
        %v1163 = vld [vmem:[%s1 + $0xf8] sm:$0xff]
        %v1164 = vld [vmem:[%s1 + $0x100] sm:$0xff]
        %v1165 = vld [vmem:[%s1 + $0x108] sm:$0xff]
        %v1166 = vld [vmem:[%s1 + $0x110] sm:$0xf]
        %v1167 = vld [vmem:[%s1 + $0x118] sm:$0xf]
        %v1168 = vld [vmem:[%s2] sm:$0x3]
        %v1170 = vlaneseq
        %v1171 = vshrl.u32 %v1170, 7
        %v1172 = vsub.s32 0, %v1171
        %v1173 = vrot.slane %v1168, %v1172
        %v1174 = vlaneseq
        %v1175 = vshrl.u32 %v1174, 7
        %v1176 = vsub.s32 1, %v1175
        %v1177 = vrot.slane %v1168, %v1176
        %vm1180 = vcmask 97280
        %v1181 = vsel %vm1180, %v961, 0
        %v1183 = vsel %vm1180, %v963, 0
        %v1185 = vsel %vm1180, %v965, 0
        %v1187 = vsel %vm1180, %v967, 0
        %v1189 = vsel %vm1180, %v969, 0
        %v1191 = vsel %vm1180, %v971, 0
        %v1193 = vsel %vm1180, %v973, 0
        %v1195 = vsel %vm1180, %v975, 0
        %v1197 = vsel %vm1180, %v977, 0
        %v1199 = vsel %vm1180, %v979, 0
        %v1201 = vsel %vm1180, %v981, 0
        %v1203 = vsel %vm1180, %v983, 0
        %v1205 = vsel %vm1180, %v985, 0
        %v1207 = vsel %vm1180, %v987, 0
        %v1209 = vsel %vm1180, %v989, 0
        %v1211 = vsel %vm1180, %v991, 0
        %v1213 = vsel %vm1180, %v993, 0
        %v1215 = vsel %vm1180, %v995, 0
        %v1217 = vsel %vm1180, %v997, 0
        %v1219 = vsel %vm1180, %v999, 0
        %v1221 = vsel %vm1180, %v1001, 0
        %v1223 = vsel %vm1180, %v1003, 0
        %v1225 = vsel %vm1180, %v1005, 0
        %v1227 = vsel %vm1180, %v1007, 0
        %vm1229 = vcmask 1043456
        %v1231 = vsel %vm1229, %v1166, 0
        %v1234 = vsel %vm1229, %v1167, 0
        %1236 = vmatprep.subr.mxu0 %v1163
        %1237 = vmatpush1.msra.mxu0 %v1162
        %1238 = vmatprep.subr.mxu0 %v1161
        %1239 = vmatpush1.msra.mxu0 %v1160
        %1240 = vmatprep.subr.mxu0 %v1159
        %1241 = vmatpush1.msra.mxu0 %v1158
        %1242 = vmatprep.subr.mxu0 %v1157
        %1243 = vmatpush1.msra.mxu0 %v1156
        %1244 = vmatprep.subr.mxu0 %v1155
        %1245 = vmatpush1.msra.mxu0 %v1154
        %1246 = vmatprep.subr.mxu0 %v1153
        %1247 = vmatpush1.msra.mxu0 %v1152
        %1248 = vmatprep.subr.mxu0 %v1151
        %1249 = vmatpush1.msra.mxu0 %v1150
        %1250 = vmatprep.subr.mxu0 %v1149
        %1251 = vmatpush1.msra.mxu0 %v1148
        %1252 = vmatprep.subr.mxu0 %v1147
        %1253 = vmatpush1.msra.mxu0 %v1146
        %1254 = vmatprep.subr.mxu0 %v1145
        %1255 = vmatpush1.msra.mxu0 %v1144
        %1256 = vmatprep.subr.mxu0 %v1143
        %1257 = vmatpush1.msra.mxu0 %v1142
        %1258 = vmatprep.subr.mxu0 %v1141
        %1259 = vmatpush1.msra.mxu0 %v1140
        %1260 = vmatprep.subr.mxu0 %v1139
        %1261 = vmatpush1.msra.mxu0 %v1138
        %1262 = vmatprep.subr.mxu0 %v1137
        %1263 = vmatpush1.msra.mxu0 %v1136
        %1264 = vmatprep.subr.mxu0 %v1135
        %1265 = vmatpush1.msra.mxu0 %v1134
        %1266 = vmatprep.subr.mxu0 %v1133
        %1267 = vmatpush1.msra.mxu0 %v1132
        %1268 = vmatprep.subr.mxu0 0.0
        %1269 = vmatpush2.msra.mxu0 0.0
        %1270 = vmatprep.subr.mxu0 0.0
        %1271 = vmatpush2.msra.mxu0 0.0
        %1272 = vmatprep.subr.mxu0 0.0
        %1273 = vmatpush2.msra.mxu0 0.0
        %1274 = vmatprep.subr.mxu0 0.0
        %1275 = vmatpush2.msra.mxu0 0.0
        %1276 = vmatprep.subr.mxu0 0.0
        %1277 = vmatpush2.msra.mxu0 0.0
        %1278 = vmatprep.subr.mxu0 0.0
        %1279 = vmatpush2.msra.mxu0 0.0
        %1280 = vmatprep.subr.mxu0 0.0
        %1281 = vmatpush2.msra.mxu0 0.0
        %1282 = vmatprep.subr.mxu0 0.0
        %1283 = vmatpush2.msra.mxu0 0.0
        %1284 = vmatprep.subr.mxu0 0.0
        %1285 = vmatpush2.msra.mxu0 0.0
        %1286 = vmatprep.subr.mxu0 0.0
        %1287 = vmatpush2.msra.mxu0 0.0
        %1288 = vmatprep.subr.mxu0 0.0
        %1289 = vmatpush2.msra.mxu0 0.0
        %1290 = vmatprep.subr.mxu0 0.0
        %1291 = vmatpush2.msra.mxu0 0.0
        %1292 = vmatprep.subr.mxu0 0.0
        %1293 = vmatpush2.msra.mxu0 0.0
        %1294 = vmatprep.subr.mxu0 0.0
        %1295 = vmatpush2.msra.mxu0 0.0
        %1296 = vmatprep.subr.mxu0 %v1234
        %1297 = vmatpush2.msra.mxu0 %v1231
        %1298 = vmatprep.subr.mxu0 %v1165
        %1299 = vmatpush2.msra.mxu0 %v1164
        %1300 = vmatprep.mubr.f32.mxu0 %v1181
        %1301 = vmatmul.mubr.f32.gmra.mxu0 %v1108
        %v1302 = vpop.f32.mrf.mxu0
        %v1303 = vadd.f32 %v1173, %v1302
        %v1304 = vpop.f32.mrf.mxu0
        %v1305 = vadd.f32 %v1177, %v1304
        %1306 = vmatprep.mubr.f32.mxu0 %v1183
        %1307 = vmatmul.mubr.f32.gmra.mxu0 %v1109
        %v1308 = vpop.f32.mrf.mxu0
        %v1309 = vadd.f32 %v1173, %v1308
        %v1310 = vpop.f32.mrf.mxu0
        %v1311 = vadd.f32 %v1177, %v1310
        %1312 = vmatprep.mubr.f32.mxu0 %v1185
        %1313 = vmatmul.mubr.f32.gmra.mxu0 %v1110
        %v1314 = vpop.f32.mrf.mxu0
        %v1315 = vadd.f32 %v1173, %v1314
        %v1316 = vpop.f32.mrf.mxu0
        %v1317 = vadd.f32 %v1177, %v1316
        %1318 = vmatprep.mubr.f32.mxu0 %v1187
        %1319 = vmatmul.mubr.f32.gmra.mxu0 %v1111
        %v1320 = vpop.f32.mrf.mxu0
        %v1321 = vadd.f32 %v1173, %v1320
        %v1322 = vpop.f32.mrf.mxu0
        %v1323 = vadd.f32 %v1177, %v1322
        %1324 = vmatprep.mubr.f32.mxu0 %v1189
        %1325 = vmatmul.mubr.f32.gmra.mxu0 %v1112
        %v1326 = vpop.f32.mrf.mxu0
        %v1327 = vadd.f32 %v1173, %v1326
        %v1328 = vpop.f32.mrf.mxu0
        %v1329 = vadd.f32 %v1177, %v1328
        %1330 = vmatprep.mubr.f32.mxu0 %v1191
        %1331 = vmatmul.mubr.f32.gmra.mxu0 %v1113
        %v1332 = vpop.f32.mrf.mxu0
        %v1333 = vadd.f32 %v1173, %v1332
        %v1334 = vpop.f32.mrf.mxu0
        %v1335 = vadd.f32 %v1177, %v1334
        %1336 = vmatprep.mubr.f32.mxu0 %v1193
        %1337 = vmatmul.mubr.f32.gmra.mxu0 %v1114
        %v1338 = vpop.f32.mrf.mxu0
        %v1339 = vadd.f32 %v1173, %v1338
        %v1340 = vpop.f32.mrf.mxu0
        %v1341 = vadd.f32 %v1177, %v1340
        %1342 = vmatprep.mubr.f32.mxu0 %v1195
        %1343 = vmatmul.mubr.f32.gmra.mxu0 %v1115
        %v1344 = vpop.f32.mrf.mxu0
        %v1345 = vadd.f32 %v1173, %v1344
        %v1346 = vpop.f32.mrf.mxu0
        %v1347 = vadd.f32 %v1177, %v1346
        %1348 = vmatprep.mubr.f32.mxu0 %v1197
        %1349 = vmatmul.mubr.f32.gmra.mxu0 %v1116
        %v1350 = vpop.f32.mrf.mxu0
        %v1351 = vadd.f32 %v1173, %v1350
        %v1352 = vpop.f32.mrf.mxu0
        %v1353 = vadd.f32 %v1177, %v1352
        %1354 = vmatprep.mubr.f32.mxu0 %v1199
        %1355 = vmatmul.mubr.f32.gmra.mxu0 %v1117
        %v1356 = vpop.f32.mrf.mxu0
        %v1357 = vadd.f32 %v1173, %v1356
        %v1358 = vpop.f32.mrf.mxu0
        %v1359 = vadd.f32 %v1177, %v1358
        %1360 = vmatprep.mubr.f32.mxu0 %v1201
        %1361 = vmatmul.mubr.f32.gmra.mxu0 %v1118
        %v1362 = vpop.f32.mrf.mxu0
        %v1363 = vadd.f32 %v1173, %v1362
        %v1364 = vpop.f32.mrf.mxu0
        %v1365 = vadd.f32 %v1177, %v1364
        %1366 = vmatprep.mubr.f32.mxu0 %v1203
        %1367 = vmatmul.mubr.f32.gmra.mxu0 %v1119
        %v1368 = vpop.f32.mrf.mxu0
        %v1369 = vadd.f32 %v1173, %v1368
        %v1370 = vpop.f32.mrf.mxu0
        %v1371 = vadd.f32 %v1177, %v1370
        %1372 = vmatprep.mubr.f32.mxu0 %v1205
        %1373 = vmatmul.mubr.f32.gmra.mxu0 %v1120
        %v1374 = vpop.f32.mrf.mxu0
        %v1375 = vadd.f32 %v1173, %v1374
        %v1376 = vpop.f32.mrf.mxu0
        %v1377 = vadd.f32 %v1177, %v1376
        %1378 = vmatprep.mubr.f32.mxu0 %v1207
        %1379 = vmatmul.mubr.f32.gmra.mxu0 %v1121
        %v1380 = vpop.f32.mrf.mxu0
        %v1381 = vadd.f32 %v1173, %v1380
        %v1382 = vpop.f32.mrf.mxu0
        %v1383 = vadd.f32 %v1177, %v1382
        %1384 = vmatprep.mubr.f32.mxu0 %v1209
        %1385 = vmatmul.mubr.f32.gmra.mxu0 %v1122
        %v1386 = vpop.f32.mrf.mxu0
        %v1387 = vadd.f32 %v1173, %v1386
        %v1388 = vpop.f32.mrf.mxu0
        %v1389 = vadd.f32 %v1177, %v1388
        %1390 = vmatprep.mubr.f32.mxu0 %v1211
        %1391 = vmatmul.mubr.f32.gmra.mxu0 %v1123
        %v1392 = vpop.f32.mrf.mxu0
        %v1393 = vadd.f32 %v1173, %v1392
        %v1394 = vpop.f32.mrf.mxu0
        %v1395 = vadd.f32 %v1177, %v1394
        %1396 = vmatprep.mubr.f32.mxu0 %v1213
        %1397 = vmatmul.mubr.f32.gmra.mxu0 %v1124
        %v1398 = vpop.f32.mrf.mxu0
        %v1399 = vadd.f32 %v1173, %v1398
        %v1400 = vpop.f32.mrf.mxu0
        %v1401 = vadd.f32 %v1177, %v1400
        %1402 = vmatprep.mubr.f32.mxu0 %v1215
        %1403 = vmatmul.mubr.f32.gmra.mxu0 %v1125
        %v1404 = vpop.f32.mrf.mxu0
        %v1405 = vadd.f32 %v1173, %v1404
        %v1406 = vpop.f32.mrf.mxu0
        %v1407 = vadd.f32 %v1177, %v1406
        %1408 = vmatprep.mubr.f32.mxu0 %v1217
        %1409 = vmatmul.mubr.f32.gmra.mxu0 %v1126
        %v1410 = vpop.f32.mrf.mxu0
        %v1411 = vadd.f32 %v1173, %v1410
        %v1412 = vpop.f32.mrf.mxu0
        %v1413 = vadd.f32 %v1177, %v1412
        %1414 = vmatprep.mubr.f32.mxu0 %v1219
        %1415 = vmatmul.mubr.f32.gmra.mxu0 %v1127
        %v1416 = vpop.f32.mrf.mxu0
        %v1417 = vadd.f32 %v1173, %v1416
        %v1418 = vpop.f32.mrf.mxu0
        %v1419 = vadd.f32 %v1177, %v1418
        %1420 = vmatprep.mubr.f32.mxu0 %v1221
        %1421 = vmatmul.mubr.f32.gmra.mxu0 %v1128
        %v1422 = vpop.f32.mrf.mxu0
        %v1423 = vadd.f32 %v1173, %v1422
        %v1424 = vpop.f32.mrf.mxu0
        %v1425 = vadd.f32 %v1177, %v1424
        %1426 = vmatprep.mubr.f32.mxu0 %v1223
        %1427 = vmatmul.mubr.f32.gmra.mxu0 %v1129
        %v1428 = vpop.f32.mrf.mxu0
        %v1429 = vadd.f32 %v1173, %v1428
        %v1430 = vpop.f32.mrf.mxu0
        %v1431 = vadd.f32 %v1177, %v1430
        %1432 = vmatprep.mubr.f32.mxu0 %v1225
        %1433 = vmatmul.mubr.f32.gmra.mxu0 %v1130
        %v1434 = vpop.f32.mrf.mxu0
        %v1435 = vadd.f32 %v1173, %v1434
        %v1436 = vpop.f32.mrf.mxu0
        %v1437 = vadd.f32 %v1177, %v1436
        %1438 = vmatprep.mubr.f32.mxu0 %v1227
        %1439 = vmatmul.mubr.f32.gmra.mxu0 %v1131
        %v1440 = vpop.f32.mrf.mxu0
        %v1441 = vadd.f32 %v1173, %v1440
        %v1442 = vpop.f32.mrf.mxu0
        %v1443 = vadd.f32 %v1177, %v1442
        %1444 = vdwg.mxu0
        %v1445 = vmax.f32 %v1303, 0.0
        %v1446 = vmax.f32 %v1305, 0.0
        %v1447 = vmax.f32 %v1309, 0.0
        %v1448 = vmax.f32 %v1311, 0.0
        %v1449 = vmax.f32 %v1315, 0.0
        %v1450 = vmax.f32 %v1317, 0.0
        %v1451 = vmax.f32 %v1321, 0.0
        %v1452 = vmax.f32 %v1323, 0.0
        %v1453 = vmax.f32 %v1327, 0.0
        %v1454 = vmax.f32 %v1329, 0.0
        %v1455 = vmax.f32 %v1333, 0.0
        %v1456 = vmax.f32 %v1335, 0.0
        %v1457 = vmax.f32 %v1339, 0.0
        %v1458 = vmax.f32 %v1341, 0.0
        %v1459 = vmax.f32 %v1345, 0.0
        %v1460 = vmax.f32 %v1347, 0.0
        %v1461 = vmax.f32 %v1351, 0.0
        %v1462 = vmax.f32 %v1353, 0.0
        %v1463 = vmax.f32 %v1357, 0.0
        %v1464 = vmax.f32 %v1359, 0.0
        %v1465 = vmax.f32 %v1363, 0.0
        %v1466 = vmax.f32 %v1365, 0.0
        %v1467 = vmax.f32 %v1369, 0.0
        %v1468 = vmax.f32 %v1371, 0.0
        %v1469 = vmax.f32 %v1375, 0.0
        %v1470 = vmax.f32 %v1377, 0.0
        %v1471 = vmax.f32 %v1381, 0.0
        %v1472 = vmax.f32 %v1383, 0.0
        %v1473 = vmax.f32 %v1387, 0.0
        %v1474 = vmax.f32 %v1389, 0.0
        %v1475 = vmax.f32 %v1393, 0.0
        %v1476 = vmax.f32 %v1395, 0.0
        %v1477 = vmax.f32 %v1399, 0.0
        %v1478 = vmax.f32 %v1401, 0.0
        %v1479 = vmax.f32 %v1405, 0.0
        %v1480 = vmax.f32 %v1407, 0.0
        %v1481 = vmax.f32 %v1411, 0.0
        %v1482 = vmax.f32 %v1413, 0.0
        %v1483 = vmax.f32 %v1417, 0.0
        %v1484 = vmax.f32 %v1419, 0.0
        %v1485 = vmax.f32 %v1423, 0.0
        %v1486 = vmax.f32 %v1425, 0.0
        %v1487 = vmax.f32 %v1429, 0.0
        %v1488 = vmax.f32 %v1431, 0.0
        %v1489 = vmax.f32 %v1435, 0.0
        %v1490 = vmax.f32 %v1437, 0.0
        %v1491 = vmax.f32 %v1441, 0.0
        %v1492 = vmax.f32 %v1443, 0.0
        %v1493 = vld [vmem:[%s3] sm:$0xff]
        %v1494 = vld [vmem:[%s3 + $0x8] sm:$0xff]
        %v1495 = vld [vmem:[%s3 + $0x10] sm:$0xff]
        %v1496 = vld [vmem:[%s3 + $0x18] sm:$0xff]
        %v1497 = vld [vmem:[%s3 + $0x20] sm:$0xff]
        %v1498 = vld [vmem:[%s3 + $0x28] sm:$0xff]
        %v1499 = vld [vmem:[%s3 + $0x30] sm:$0xff]
        %v1500 = vld [vmem:[%s3 + $0x38] sm:$0xff]
        %v1501 = vld [vmem:[%s3 + $0x40] sm:$0xff]
        %v1502 = vld [vmem:[%s3 + $0x48] sm:$0xff]
        %v1503 = vld [vmem:[%s3 + $0x50] sm:$0xff]
        %v1504 = vld [vmem:[%s3 + $0x58] sm:$0xff]
        %v1505 = vld [vmem:[%s3 + $0x60] sm:$0xff]
        %v1506 = vld [vmem:[%s3 + $0x68] sm:$0xff]
        %v1507 = vld [vmem:[%s3 + $0x70] sm:$0xff]
        %v1508 = vld [vmem:[%s3 + $0x78] sm:$0xff]
        %v1509 = vld [vmem:[%s3 + $0x80] sm:$0xff]
        %v1510 = vld [vmem:[%s3 + $0x88] sm:$0xff]
        %vm1511 = vcmask 130048
        %v1513 = vsel %vm1511, %v1446, 0
        %v1516 = vsel %vm1511, %v1448, 0
        %v1519 = vsel %vm1511, %v1450, 0
        %v1522 = vsel %vm1511, %v1452, 0
        %v1525 = vsel %vm1511, %v1454, 0
        %v1528 = vsel %vm1511, %v1456, 0
        %v1531 = vsel %vm1511, %v1458, 0
        %v1534 = vsel %vm1511, %v1460, 0
        %v1537 = vsel %vm1511, %v1462, 0
        %v1540 = vsel %vm1511, %v1464, 0
        %v1543 = vsel %vm1511, %v1466, 0
        %v1546 = vsel %vm1511, %v1468, 0
        %v1549 = vsel %vm1511, %v1470, 0
        %v1552 = vsel %vm1511, %v1472, 0
        %v1555 = vsel %vm1511, %v1474, 0
        %v1558 = vsel %vm1511, %v1476, 0
        %v1561 = vsel %vm1511, %v1478, 0
        %v1564 = vsel %vm1511, %v1480, 0
        %v1567 = vsel %vm1511, %v1482, 0
        %v1570 = vsel %vm1511, %v1484, 0
        %v1573 = vsel %vm1511, %v1486, 0
        %v1576 = vsel %vm1511, %v1488, 0
        %v1579 = vsel %vm1511, %v1490, 0
        %v1582 = vsel %vm1511, %v1492, 0
        %1584 = vmatprep.subr.mxu0 0.0
        %1585 = vmatpush1.msra.mxu0 %v1508
        %1586 = vmatprep.subr.mxu0 0.0
        %1587 = vmatpush1.msra.mxu0 %v1507
        %1588 = vmatprep.subr.mxu0 0.0
        %1589 = vmatpush1.msra.mxu0 %v1506
        %1590 = vmatprep.subr.mxu0 0.0
        %1591 = vmatpush1.msra.mxu0 %v1505
        %1592 = vmatprep.subr.mxu0 0.0
        %1593 = vmatpush1.msra.mxu0 %v1504
        %1594 = vmatprep.subr.mxu0 0.0
        %1595 = vmatpush1.msra.mxu0 %v1503
        %1596 = vmatprep.subr.mxu0 0.0
        %1597 = vmatpush1.msra.mxu0 %v1502
        %1598 = vmatprep.subr.mxu0 0.0
        %1599 = vmatpush1.msra.mxu0 %v1501
        %1600 = vmatprep.subr.mxu0 0.0
        %1601 = vmatpush1.msra.mxu0 %v1500
        %1602 = vmatprep.subr.mxu0 0.0
        %1603 = vmatpush1.msra.mxu0 %v1499
        %1604 = vmatprep.subr.mxu0 0.0
        %1605 = vmatpush1.msra.mxu0 %v1498
        %1606 = vmatprep.subr.mxu0 0.0
        %1607 = vmatpush1.msra.mxu0 %v1497
        %1608 = vmatprep.subr.mxu0 0.0
        %1609 = vmatpush1.msra.mxu0 %v1496
        %1610 = vmatprep.subr.mxu0 0.0
        %1611 = vmatpush1.msra.mxu0 %v1495
        %1612 = vmatprep.subr.mxu0 0.0
        %1613 = vmatpush1.msra.mxu0 %v1494
        %1614 = vmatprep.subr.mxu0 0.0
        %1615 = vmatpush1.msra.mxu0 %v1493
        %1616 = vmatprep.subr.mxu0 0.0
        %1617 = vmatpush2.msra.mxu0 0.0
        %1618 = vmatprep.subr.mxu0 0.0
        %1619 = vmatpush2.msra.mxu0 0.0
        %1620 = vmatprep.subr.mxu0 0.0
        %1621 = vmatpush2.msra.mxu0 0.0
        %1622 = vmatprep.subr.mxu0 0.0
        %1623 = vmatpush2.msra.mxu0 0.0
        %1624 = vmatprep.subr.mxu0 0.0
        %1625 = vmatpush2.msra.mxu0 0.0
        %1626 = vmatprep.subr.mxu0 0.0
        %1627 = vmatpush2.msra.mxu0 0.0
        %1628 = vmatprep.subr.mxu0 0.0
        %1629 = vmatpush2.msra.mxu0 0.0
        %1630 = vmatprep.subr.mxu0 0.0
        %1631 = vmatpush2.msra.mxu0 0.0
        %1632 = vmatprep.subr.mxu0 0.0
        %1633 = vmatpush2.msra.mxu0 0.0
        %1634 = vmatprep.subr.mxu0 0.0
        %1635 = vmatpush2.msra.mxu0 0.0
        %1636 = vmatprep.subr.mxu0 0.0
        %1637 = vmatpush2.msra.mxu0 0.0
        %1638 = vmatprep.subr.mxu0 0.0
        %1639 = vmatpush2.msra.mxu0 0.0
        %1640 = vmatprep.subr.mxu0 0.0
        %1641 = vmatpush2.msra.mxu0 0.0
        %1642 = vmatprep.subr.mxu0 0.0
        %1643 = vmatpush2.msra.mxu0 0.0
        %1644 = vmatprep.subr.mxu0 0.0
        %1645 = vmatpush2.msra.mxu0 %v1510
        %1646 = vmatprep.subr.mxu0 0.0
        %1647 = vmatpush2.msra.mxu0 %v1509
        %1648 = vmatprep.mubr.f32.mxu0 %v1513
        %1649 = vmatmul.mubr.f32.gmra.mxu0 %v1445
        %v1650 = vpop.f32.mrf.mxu0
        %v1651 = vadd.f32 0.0, %v1650
        %v1652 = vpop.f32.mrf.mxu0
        %1653 = vmatprep.mubr.f32.mxu0 %v1516
        %1654 = vmatmul.mubr.f32.gmra.mxu0 %v1447
        %v1655 = vpop.f32.mrf.mxu0
        %v1656 = vadd.f32 0.0, %v1655
        %v1657 = vpop.f32.mrf.mxu0
        %1658 = vmatprep.mubr.f32.mxu0 %v1519
        %1659 = vmatmul.mubr.f32.gmra.mxu0 %v1449
        %v1660 = vpop.f32.mrf.mxu0
        %v1661 = vadd.f32 0.0, %v1660
        %v1662 = vpop.f32.mrf.mxu0
        %1663 = vmatprep.mubr.f32.mxu0 %v1522
        %1664 = vmatmul.mubr.f32.gmra.mxu0 %v1451
        %v1665 = vpop.f32.mrf.mxu0
        %v1666 = vadd.f32 0.0, %v1665
        %v1667 = vpop.f32.mrf.mxu0
        %1668 = vmatprep.mubr.f32.mxu0 %v1525
        %1669 = vmatmul.mubr.f32.gmra.mxu0 %v1453
        %v1670 = vpop.f32.mrf.mxu0
        %v1671 = vadd.f32 0.0, %v1670
        %v1672 = vpop.f32.mrf.mxu0
        %1673 = vmatprep.mubr.f32.mxu0 %v1528
        %1674 = vmatmul.mubr.f32.gmra.mxu0 %v1455
        %v1675 = vpop.f32.mrf.mxu0
        %v1676 = vadd.f32 0.0, %v1675
        %v1677 = vpop.f32.mrf.mxu0
        %1678 = vmatprep.mubr.f32.mxu0 %v1531
        %1679 = vmatmul.mubr.f32.gmra.mxu0 %v1457
        %v1680 = vpop.f32.mrf.mxu0
        %v1681 = vadd.f32 0.0, %v1680
        %v1682 = vpop.f32.mrf.mxu0
        %1683 = vmatprep.mubr.f32.mxu0 %v1534
        %1684 = vmatmul.mubr.f32.gmra.mxu0 %v1459
        %v1685 = vpop.f32.mrf.mxu0
        %v1686 = vadd.f32 0.0, %v1685
        %v1687 = vpop.f32.mrf.mxu0
        %1688 = vmatprep.mubr.f32.mxu0 %v1537
        %1689 = vmatmul.mubr.f32.gmra.mxu0 %v1461
        %v1690 = vpop.f32.mrf.mxu0
        %v1691 = vadd.f32 0.0, %v1690
        %v1692 = vpop.f32.mrf.mxu0
        %1693 = vmatprep.mubr.f32.mxu0 %v1540
        %1694 = vmatmul.mubr.f32.gmra.mxu0 %v1463
        %v1695 = vpop.f32.mrf.mxu0
        %v1696 = vadd.f32 0.0, %v1695
        %v1697 = vpop.f32.mrf.mxu0
        %1698 = vmatprep.mubr.f32.mxu0 %v1543
        %1699 = vmatmul.mubr.f32.gmra.mxu0 %v1465
        %v1700 = vpop.f32.mrf.mxu0
        %v1701 = vadd.f32 0.0, %v1700
        %v1702 = vpop.f32.mrf.mxu0
        %1703 = vmatprep.mubr.f32.mxu0 %v1546
        %1704 = vmatmul.mubr.f32.gmra.mxu0 %v1467
        %v1705 = vpop.f32.mrf.mxu0
        %v1706 = vadd.f32 0.0, %v1705
        %v1707 = vpop.f32.mrf.mxu0
        %1708 = vmatprep.mubr.f32.mxu0 %v1549
        %1709 = vmatmul.mubr.f32.gmra.mxu0 %v1469
        %v1710 = vpop.f32.mrf.mxu0
        %v1711 = vadd.f32 0.0, %v1710
        %v1712 = vpop.f32.mrf.mxu0
        %1713 = vmatprep.mubr.f32.mxu0 %v1552
        %1714 = vmatmul.mubr.f32.gmra.mxu0 %v1471
        %v1715 = vpop.f32.mrf.mxu0
        %v1716 = vadd.f32 0.0, %v1715
        %v1717 = vpop.f32.mrf.mxu0
        %1718 = vmatprep.mubr.f32.mxu0 %v1555
        %1719 = vmatmul.mubr.f32.gmra.mxu0 %v1473
        %v1720 = vpop.f32.mrf.mxu0
        %v1721 = vadd.f32 0.0, %v1720
        %v1722 = vpop.f32.mrf.mxu0
        %1723 = vmatprep.mubr.f32.mxu0 %v1558
        %1724 = vmatmul.mubr.f32.gmra.mxu0 %v1475
        %v1725 = vpop.f32.mrf.mxu0
        %v1726 = vadd.f32 0.0, %v1725
        %v1727 = vpop.f32.mrf.mxu0
        %1728 = vmatprep.mubr.f32.mxu0 %v1561
        %1729 = vmatmul.mubr.f32.gmra.mxu0 %v1477
        %v1730 = vpop.f32.mrf.mxu0
        %v1731 = vadd.f32 0.0, %v1730
        %v1732 = vpop.f32.mrf.mxu0
        %1733 = vmatprep.mubr.f32.mxu0 %v1564
        %1734 = vmatmul.mubr.f32.gmra.mxu0 %v1479
        %v1735 = vpop.f32.mrf.mxu0
        %v1736 = vadd.f32 0.0, %v1735
        %v1737 = vpop.f32.mrf.mxu0
        %1738 = vmatprep.mubr.f32.mxu0 %v1567
        %1739 = vmatmul.mubr.f32.gmra.mxu0 %v1481
        %v1740 = vpop.f32.mrf.mxu0
        %v1741 = vadd.f32 0.0, %v1740
        %v1742 = vpop.f32.mrf.mxu0
        %1743 = vmatprep.mubr.f32.mxu0 %v1570
        %1744 = vmatmul.mubr.f32.gmra.mxu0 %v1483
        %v1745 = vpop.f32.mrf.mxu0
        %v1746 = vadd.f32 0.0, %v1745
        %v1747 = vpop.f32.mrf.mxu0
        %1748 = vmatprep.mubr.f32.mxu0 %v1573
        %1749 = vmatmul.mubr.f32.gmra.mxu0 %v1485
        %v1750 = vpop.f32.mrf.mxu0
        %v1751 = vadd.f32 0.0, %v1750
        %v1752 = vpop.f32.mrf.mxu0
        %1753 = vmatprep.mubr.f32.mxu0 %v1576
        %1754 = vmatmul.mubr.f32.gmra.mxu0 %v1487
        %v1755 = vpop.f32.mrf.mxu0
        %v1756 = vadd.f32 0.0, %v1755
        %v1757 = vpop.f32.mrf.mxu0
        %1758 = vmatprep.mubr.f32.mxu0 %v1579
        %1759 = vmatmul.mubr.f32.gmra.mxu0 %v1489
        %v1760 = vpop.f32.mrf.mxu0
        %v1761 = vadd.f32 0.0, %v1760
        %v1762 = vpop.f32.mrf.mxu0
        %1763 = vmatprep.mubr.f32.mxu0 %v1582
        %1764 = vmatmul.mubr.f32.gmra.mxu0 %v1491
        %v1765 = vpop.f32.mrf.mxu0
        %v1766 = vadd.f32 0.0, %v1765
        %v1767 = vpop.f32.mrf.mxu0
        %1768 = vdwg.mxu0
        %v1769 = vld [vmem:[#allocation4] sm:$0xff]
        %v1770 = vld [vmem:[#allocation4 + $0x8] sm:$0xff]
        %v1771 = vld [vmem:[#allocation4 + $0x10] sm:$0xff]
        %v1772 = vld [vmem:[#allocation4 + $0x18] sm:$0xff]
        %v1773 = vld [vmem:[#allocation4 + $0x20] sm:$0xff]
        %v1774 = vld [vmem:[#allocation4 + $0x28] sm:$0xff]
        %v1775 = vld [vmem:[#allocation4 + $0x30] sm:$0xff]
        %v1776 = vld [vmem:[#allocation4 + $0x38] sm:$0xff]
        %v1777 = vld [vmem:[#allocation4 + $0x40] sm:$0xff]
        %v1778 = vld [vmem:[#allocation4 + $0x48] sm:$0xff]
        %v1779 = vld [vmem:[#allocation4 + $0x50] sm:$0xff]
        %v1780 = vld [vmem:[#allocation4 + $0x58] sm:$0xff]
        %v1781 = vld [vmem:[#allocation4 + $0x60] sm:$0xff]
        %v1782 = vld [vmem:[#allocation4 + $0x68] sm:$0xff]
        %v1783 = vld [vmem:[#allocation4 + $0x70] sm:$0xff]
        %v1784 = vld [vmem:[#allocation4 + $0x78] sm:$0xff]
        %v1785 = vld [vmem:[#allocation4 + $0x80] sm:$0xff]
        %v1786 = vld [vmem:[#allocation4 + $0x88] sm:$0xff]
        %1787 = vmatprep.subr.mxu0 0.0
        %1788 = vmatpush1.msra.mxu0 %v1784
        %1789 = vmatprep.subr.mxu0 0.0
        %1790 = vmatpush1.msra.mxu0 %v1783
        %1791 = vmatprep.subr.mxu0 0.0
        %1792 = vmatpush1.msra.mxu0 %v1782
        %1793 = vmatprep.subr.mxu0 0.0
        %1794 = vmatpush1.msra.mxu0 %v1781
        %1795 = vmatprep.subr.mxu0 0.0
        %1796 = vmatpush1.msra.mxu0 %v1780
        %1797 = vmatprep.subr.mxu0 0.0
        %1798 = vmatpush1.msra.mxu0 %v1779
        %1799 = vmatprep.subr.mxu0 0.0
        %1800 = vmatpush1.msra.mxu0 %v1778
        %1801 = vmatprep.subr.mxu0 0.0
        %1802 = vmatpush1.msra.mxu0 %v1777
        %1803 = vmatprep.subr.mxu0 0.0
        %1804 = vmatpush1.msra.mxu0 %v1776
        %1805 = vmatprep.subr.mxu0 0.0
        %1806 = vmatpush1.msra.mxu0 %v1775
        %1807 = vmatprep.subr.mxu0 0.0
        %1808 = vmatpush1.msra.mxu0 %v1774
        %1809 = vmatprep.subr.mxu0 0.0
        %1810 = vmatpush1.msra.mxu0 %v1773
        %1811 = vmatprep.subr.mxu0 0.0
        %1812 = vmatpush1.msra.mxu0 %v1772
        %1813 = vmatprep.subr.mxu0 0.0
        %1814 = vmatpush1.msra.mxu0 %v1771
        %1815 = vmatprep.subr.mxu0 0.0
        %1816 = vmatpush1.msra.mxu0 %v1770
        %1817 = vmatprep.subr.mxu0 0.0
        %1818 = vmatpush1.msra.mxu0 %v1769
        %1819 = vmatprep.subr.mxu0 0.0
        %1820 = vmatpush2.msra.mxu0 0.0
        %1821 = vmatprep.subr.mxu0 0.0
        %1822 = vmatpush2.msra.mxu0 0.0
        %1823 = vmatprep.subr.mxu0 0.0
        %1824 = vmatpush2.msra.mxu0 0.0
        %1825 = vmatprep.subr.mxu0 0.0
        %1826 = vmatpush2.msra.mxu0 0.0
        %1827 = vmatprep.subr.mxu0 0.0
        %1828 = vmatpush2.msra.mxu0 0.0
        %1829 = vmatprep.subr.mxu0 0.0
        %1830 = vmatpush2.msra.mxu0 0.0
        %1831 = vmatprep.subr.mxu0 0.0
        %1832 = vmatpush2.msra.mxu0 0.0
        %1833 = vmatprep.subr.mxu0 0.0
        %1834 = vmatpush2.msra.mxu0 0.0
        %1835 = vmatprep.subr.mxu0 0.0
        %1836 = vmatpush2.msra.mxu0 0.0
        %1837 = vmatprep.subr.mxu0 0.0
        %1838 = vmatpush2.msra.mxu0 0.0
        %1839 = vmatprep.subr.mxu0 0.0
        %1840 = vmatpush2.msra.mxu0 0.0
        %1841 = vmatprep.subr.mxu0 0.0
        %1842 = vmatpush2.msra.mxu0 0.0
        %1843 = vmatprep.subr.mxu0 0.0
        %1844 = vmatpush2.msra.mxu0 0.0
        %1845 = vmatprep.subr.mxu0 0.0
        %1846 = vmatpush2.msra.mxu0 0.0
        %1847 = vmatprep.subr.mxu0 0.0
        %1848 = vmatpush2.msra.mxu0 %v1786
        %1849 = vmatprep.subr.mxu0 0.0
        %1850 = vmatpush2.msra.mxu0 %v1785
        %1851 = vmatprep.mubr.f32.mxu0 %v1513
        %1852 = vmatmul.mubr.f32.gmra.mxu0 %v1445
        %v1853 = vpop.f32.mrf.mxu0
        %v1854 = vadd.f32 0.0, %v1853
        %v1855 = vpop.f32.mrf.mxu0
        %1856 = vmatprep.mubr.f32.mxu0 %v1516
        %1857 = vmatmul.mubr.f32.gmra.mxu0 %v1447
        %v1858 = vpop.f32.mrf.mxu0
        %v1859 = vadd.f32 0.0, %v1858
        %v1860 = vpop.f32.mrf.mxu0
        %1861 = vmatprep.mubr.f32.mxu0 %v1519
        %1862 = vmatmul.mubr.f32.gmra.mxu0 %v1449
        %v1863 = vpop.f32.mrf.mxu0
        %v1864 = vadd.f32 0.0, %v1863
        %v1865 = vpop.f32.mrf.mxu0
        %1866 = vmatprep.mubr.f32.mxu0 %v1522
        %1867 = vmatmul.mubr.f32.gmra.mxu0 %v1451
        %v1868 = vpop.f32.mrf.mxu0
        %v1869 = vadd.f32 0.0, %v1868
        %v1870 = vpop.f32.mrf.mxu0
        %1871 = vmatprep.mubr.f32.mxu0 %v1525
        %1872 = vmatmul.mubr.f32.gmra.mxu0 %v1453
        %v1873 = vpop.f32.mrf.mxu0
        %v1874 = vadd.f32 0.0, %v1873
        %v1875 = vpop.f32.mrf.mxu0
        %1876 = vmatprep.mubr.f32.mxu0 %v1528
        %1877 = vmatmul.mubr.f32.gmra.mxu0 %v1455
        %v1878 = vpop.f32.mrf.mxu0
        %v1879 = vadd.f32 0.0, %v1878
        %v1880 = vpop.f32.mrf.mxu0
        %1881 = vmatprep.mubr.f32.mxu0 %v1531
        %1882 = vmatmul.mubr.f32.gmra.mxu0 %v1457
        %v1883 = vpop.f32.mrf.mxu0
        %v1884 = vadd.f32 0.0, %v1883
        %v1885 = vpop.f32.mrf.mxu0
        %1886 = vmatprep.mubr.f32.mxu0 %v1534
        %1887 = vmatmul.mubr.f32.gmra.mxu0 %v1459
        %v1888 = vpop.f32.mrf.mxu0
        %v1889 = vadd.f32 0.0, %v1888
        %v1890 = vpop.f32.mrf.mxu0
        %1891 = vmatprep.mubr.f32.mxu0 %v1537
        %1892 = vmatmul.mubr.f32.gmra.mxu0 %v1461
        %v1893 = vpop.f32.mrf.mxu0
        %v1894 = vadd.f32 0.0, %v1893
        %v1895 = vpop.f32.mrf.mxu0
        %1896 = vmatprep.mubr.f32.mxu0 %v1540
        %1897 = vmatmul.mubr.f32.gmra.mxu0 %v1463
        %v1898 = vpop.f32.mrf.mxu0
        %v1899 = vadd.f32 0.0, %v1898
        %v1900 = vpop.f32.mrf.mxu0
        %1901 = vmatprep.mubr.f32.mxu0 %v1543
        %1902 = vmatmul.mubr.f32.gmra.mxu0 %v1465
        %v1903 = vpop.f32.mrf.mxu0
        %v1904 = vadd.f32 0.0, %v1903
        %v1905 = vpop.f32.mrf.mxu0
        %1906 = vmatprep.mubr.f32.mxu0 %v1546
        %1907 = vmatmul.mubr.f32.gmra.mxu0 %v1467
        %v1908 = vpop.f32.mrf.mxu0
        %v1909 = vadd.f32 0.0, %v1908
        %v1910 = vpop.f32.mrf.mxu0
        %1911 = vmatprep.mubr.f32.mxu0 %v1549
        %1912 = vmatmul.mubr.f32.gmra.mxu0 %v1469
        %v1913 = vpop.f32.mrf.mxu0
        %v1914 = vadd.f32 0.0, %v1913
        %v1915 = vpop.f32.mrf.mxu0
        %1916 = vmatprep.mubr.f32.mxu0 %v1552
        %1917 = vmatmul.mubr.f32.gmra.mxu0 %v1471
        %v1918 = vpop.f32.mrf.mxu0
        %v1919 = vadd.f32 0.0, %v1918
        %v1920 = vpop.f32.mrf.mxu0
        %1921 = vmatprep.mubr.f32.mxu0 %v1555
        %1922 = vmatmul.mubr.f32.gmra.mxu0 %v1473
        %v1923 = vpop.f32.mrf.mxu0
        %v1924 = vadd.f32 0.0, %v1923
        %v1925 = vpop.f32.mrf.mxu0
        %1926 = vmatprep.mubr.f32.mxu0 %v1558
        %1927 = vmatmul.mubr.f32.gmra.mxu0 %v1475
        %v1928 = vpop.f32.mrf.mxu0
        %v1929 = vadd.f32 0.0, %v1928
        %v1930 = vpop.f32.mrf.mxu0
        %1931 = vmatprep.mubr.f32.mxu0 %v1561
        %1932 = vmatmul.mubr.f32.gmra.mxu0 %v1477
        %v1933 = vpop.f32.mrf.mxu0
        %v1934 = vadd.f32 0.0, %v1933
        %v1935 = vpop.f32.mrf.mxu0
        %1936 = vmatprep.mubr.f32.mxu0 %v1564
        %1937 = vmatmul.mubr.f32.gmra.mxu0 %v1479
        %v1938 = vpop.f32.mrf.mxu0
        %v1939 = vadd.f32 0.0, %v1938
        %v1940 = vpop.f32.mrf.mxu0
        %1941 = vmatprep.mubr.f32.mxu0 %v1567
        %1942 = vmatmul.mubr.f32.gmra.mxu0 %v1481
        %v1943 = vpop.f32.mrf.mxu0
        %v1944 = vadd.f32 0.0, %v1943
        %v1945 = vpop.f32.mrf.mxu0
        %1946 = vmatprep.mubr.f32.mxu0 %v1570
        %1947 = vmatmul.mubr.f32.gmra.mxu0 %v1483
        %v1948 = vpop.f32.mrf.mxu0
        %v1949 = vadd.f32 0.0, %v1948
        %v1950 = vpop.f32.mrf.mxu0
        %1951 = vmatprep.mubr.f32.mxu0 %v1573
        %1952 = vmatmul.mubr.f32.gmra.mxu0 %v1485
        %v1953 = vpop.f32.mrf.mxu0
        %v1954 = vadd.f32 0.0, %v1953
        %v1955 = vpop.f32.mrf.mxu0
        %1956 = vmatprep.mubr.f32.mxu0 %v1576
        %1957 = vmatmul.mubr.f32.gmra.mxu0 %v1487
        %v1958 = vpop.f32.mrf.mxu0
        %v1959 = vadd.f32 0.0, %v1958
        %v1960 = vpop.f32.mrf.mxu0
        %1961 = vmatprep.mubr.f32.mxu0 %v1579
        %1962 = vmatmul.mubr.f32.gmra.mxu0 %v1489
        %v1963 = vpop.f32.mrf.mxu0
        %v1964 = vadd.f32 0.0, %v1963
        %v1965 = vpop.f32.mrf.mxu0
        %1966 = vmatprep.mubr.f32.mxu0 %v1582
        %1967 = vmatmul.mubr.f32.gmra.mxu0 %v1491
        %v1968 = vpop.f32.mrf.mxu0
        %v1969 = vadd.f32 0.0, %v1968
        %v1970 = vpop.f32.mrf.mxu0
        %1971 = vdwg.mxu0
        %v1972 = vmax.f32 %v1651, %v1854
        %v1973 = vmax.f32 %v1656, %v1859
        %v1974 = vmax.f32 %v1661, %v1864
        %v1975 = vmax.f32 %v1666, %v1869
        %v1976 = vmax.f32 %v1671, %v1874
        %v1977 = vmax.f32 %v1676, %v1879
        %v1978 = vmax.f32 %v1681, %v1884
        %v1979 = vmax.f32 %v1686, %v1889
        %v1980 = vmax.f32 %v1691, %v1894
        %v1981 = vmax.f32 %v1696, %v1899
        %v1982 = vmax.f32 %v1701, %v1904
        %v1983 = vmax.f32 %v1706, %v1909
        %v1984 = vmax.f32 %v1711, %v1914
        %v1985 = vmax.f32 %v1716, %v1919
        %v1986 = vmax.f32 %v1721, %v1924
        %v1987 = vmax.f32 %v1726, %v1929
        %v1988 = vmax.f32 %v1731, %v1934
        %v1989 = vmax.f32 %v1736, %v1939
        %v1990 = vmax.f32 %v1741, %v1944
        %v1991 = vmax.f32 %v1746, %v1949
        %v1992 = vmax.f32 %v1751, %v1954
        %v1993 = vmax.f32 %v1756, %v1959
        %v1994 = vmax.f32 %v1761, %v1964
        %v1995 = vmax.f32 %v1766, %v1969
        %vm1996 = vcmask 588800
        %1997 = vst.msk [vmem:[#allocation2] sm:$0xff] %vm1996, %v1972
        %1998 = vst.msk [vmem:[#allocation2 + $0x8] sm:$0xff] %vm1996, %v1973
        %1999 = vst.msk [vmem:[#allocation2 + $0x10] sm:$0xff] %vm1996, %v1974
        %2000 = vst.msk [vmem:[#allocation2 + $0x18] sm:$0xff] %vm1996, %v1975
        %2001 = vst.msk [vmem:[#allocation2 + $0x20] sm:$0xff] %vm1996, %v1976
        %2002 = vst.msk [vmem:[#allocation2 + $0x28] sm:$0xff] %vm1996, %v1977
        %2003 = vst.msk [vmem:[#allocation2 + $0x30] sm:$0xff] %vm1996, %v1978
        %2004 = vst.msk [vmem:[#allocation2 + $0x38] sm:$0xff] %vm1996, %v1979
        %2005 = vst.msk [vmem:[#allocation2 + $0x40] sm:$0xff] %vm1996, %v1980
        %2006 = vst.msk [vmem:[#allocation2 + $0x48] sm:$0xff] %vm1996, %v1981
        %2007 = vst.msk [vmem:[#allocation2 + $0x50] sm:$0xff] %vm1996, %v1982
        %2008 = vst.msk [vmem:[#allocation2 + $0x58] sm:$0xff] %vm1996, %v1983
        %2009 = vst.msk [vmem:[#allocation2 + $0x60] sm:$0xff] %vm1996, %v1984
        %2010 = vst.msk [vmem:[#allocation2 + $0x68] sm:$0xff] %vm1996, %v1985
        %2011 = vst.msk [vmem:[#allocation2 + $0x70] sm:$0xff] %vm1996, %v1986
        %2012 = vst.msk [vmem:[#allocation2 + $0x78] sm:$0xff] %vm1996, %v1987
        %2013 = vst.msk [vmem:[#allocation2 + $0x80] sm:$0xff] %vm1996, %v1988
        %2014 = vst.msk [vmem:[#allocation2 + $0x88] sm:$0xff] %vm1996, %v1989
        %2015 = vst.msk [vmem:[#allocation2 + $0x90] sm:$0xff] %vm1996, %v1990
        %2016 = vst.msk [vmem:[#allocation2 + $0x98] sm:$0xff] %vm1996, %v1991
        %2017 = vst.msk [vmem:[#allocation2 + $0xa0] sm:$0xff] %vm1996, %v1992
        %2018 = vst.msk [vmem:[#allocation2 + $0xa8] sm:$0xff] %vm1996, %v1993
        %2019 = vst.msk [vmem:[#allocation2 + $0xb0] sm:$0xff] %vm1996, %v1994
        %2020 = vst.msk [vmem:[#allocation2 + $0xb8] sm:$0xff] %vm1996, %v1995
        %v2021 = vld [vmem:[#allocation2] ss:$2 sm:$0xff]
        %s2022 = scalar_lea.vmem [#allocation2], 24
        %v2023 = vld [vmem:[%s2022] ss:$2 sm:$0xff]
        %s2024 = scalar_lea.vmem [#allocation2], 48
        %v2025 = vld [vmem:[%s2024] ss:$2 sm:$0xff]
        %s2026 = scalar_lea.vmem [#allocation2], 72
        %v2027 = vld [vmem:[%s2026] ss:$2 sm:$0xff]
        %s2028 = scalar_lea.vmem [#allocation2], 96
        %v2029 = vld [vmem:[%s2028] ss:$2 sm:$0xff]
        %s2030 = scalar_lea.vmem [#allocation2], 120
        %v2031 = vld [vmem:[%s2030] ss:$2 sm:$0xff]
        %s2032 = scalar_lea.vmem [#allocation2], 144
        %v2033 = vld [vmem:[%s2032] ss:$2 sm:$0xff]
        %s2034 = scalar_lea.vmem [#allocation2], 168
        %v2035 = vld [vmem:[%s2034] ss:$2 sm:$0xff]
        %s2036 = scalar_lea.vmem [#allocation2], 1
        %v2037 = vld [vmem:[%s2036] ss:$2 sm:$0xff]
        %s2038 = scalar_lea.vmem [#allocation2], 25
        %v2039 = vld [vmem:[%s2038] ss:$2 sm:$0xff]
        %s2040 = scalar_lea.vmem [#allocation2], 49
        %v2041 = vld [vmem:[%s2040] ss:$2 sm:$0xff]
        %s2042 = scalar_lea.vmem [#allocation2], 73
        %v2043 = vld [vmem:[%s2042] ss:$2 sm:$0xff]
        %s2044 = scalar_lea.vmem [#allocation2], 97
        %v2045 = vld [vmem:[%s2044] ss:$2 sm:$0xff]
        %s2046 = scalar_lea.vmem [#allocation2], 121
        %v2047 = vld [vmem:[%s2046] ss:$2 sm:$0xff]
        %s2048 = scalar_lea.vmem [#allocation2], 145
        %v2049 = vld [vmem:[%s2048] ss:$2 sm:$0xff]
        %s2050 = scalar_lea.vmem [#allocation2], 169
        %v2051 = vld [vmem:[%s2050] ss:$2 sm:$0xff]
        %v2052 = vmax.f32 %v2021, %v2037
        %v2053 = vmax.f32 %v2023, %v2039
        %v2054 = vmax.f32 %v2025, %v2041
        %v2055 = vmax.f32 %v2027, %v2043
        %v2056 = vmax.f32 %v2029, %v2045
        %v2057 = vmax.f32 %v2031, %v2047
        %v2058 = vmax.f32 %v2033, %v2049
        %v2059 = vmax.f32 %v2035, %v2051
        %s2060 = scalar_lea.vmem [#allocation2], 2
        %v2061 = vld [vmem:[%s2060] ss:$2 sm:$0xff]
        %s2062 = scalar_lea.vmem [#allocation2], 26
        %v2063 = vld [vmem:[%s2062] ss:$2 sm:$0xff]
        %s2064 = scalar_lea.vmem [#allocation2], 50
        %v2065 = vld [vmem:[%s2064] ss:$2 sm:$0xff]
        %s2066 = scalar_lea.vmem [#allocation2], 74
        %v2067 = vld [vmem:[%s2066] ss:$2 sm:$0xff]
        %s2068 = scalar_lea.vmem [#allocation2], 98
        %v2069 = vld [vmem:[%s2068] ss:$2 sm:$0xff]
        %s2070 = scalar_lea.vmem [#allocation2], 122
        %v2071 = vld [vmem:[%s2070] ss:$2 sm:$0xff]
        %s2072 = scalar_lea.vmem [#allocation2], 146
        %v2073 = vld [vmem:[%s2072] ss:$2 sm:$0xff]
        %s2074 = scalar_lea.vmem [#allocation2], 170
        %v2075 = vld [vmem:[%s2074] ss:$2 sm:$0xff]
        %s2076 = scalar_lea.vmem [#allocation2], 3
        %v2077 = vld [vmem:[%s2076] ss:$2 sm:$0xff]
        %s2078 = scalar_lea.vmem [#allocation2], 27
        %v2079 = vld [vmem:[%s2078] ss:$2 sm:$0xff]
        %s2080 = scalar_lea.vmem [#allocation2], 51
        %v2081 = vld [vmem:[%s2080] ss:$2 sm:$0xff]
        %s2082 = scalar_lea.vmem [#allocation2], 75
        %v2083 = vld [vmem:[%s2082] ss:$2 sm:$0xff]
        %s2084 = scalar_lea.vmem [#allocation2], 99
        %v2085 = vld [vmem:[%s2084] ss:$2 sm:$0xff]
        %s2086 = scalar_lea.vmem [#allocation2], 123
        %v2087 = vld [vmem:[%s2086] ss:$2 sm:$0xff]
        %s2088 = scalar_lea.vmem [#allocation2], 147
        %v2089 = vld [vmem:[%s2088] ss:$2 sm:$0xff]
        %s2090 = scalar_lea.vmem [#allocation2], 171
        %v2091 = vld [vmem:[%s2090] ss:$2 sm:$0xff]
        %v2092 = vmax.f32 %v2061, %v2077
        %v2093 = vmax.f32 %v2063, %v2079
        %v2094 = vmax.f32 %v2065, %v2081
        %v2095 = vmax.f32 %v2067, %v2083
        %v2096 = vmax.f32 %v2069, %v2085
        %v2097 = vmax.f32 %v2071, %v2087
        %v2098 = vmax.f32 %v2073, %v2089
        %v2099 = vmax.f32 %v2075, %v2091
        %s2100 = scalar_lea.vmem [#allocation2], 4
        %v2101 = vld [vmem:[%s2100] ss:$2 sm:$0xff]
        %s2102 = scalar_lea.vmem [#allocation2], 28
        %v2103 = vld [vmem:[%s2102] ss:$2 sm:$0xff]
        %s2104 = scalar_lea.vmem [#allocation2], 52
        %v2105 = vld [vmem:[%s2104] ss:$2 sm:$0xff]
        %s2106 = scalar_lea.vmem [#allocation2], 76
        %v2107 = vld [vmem:[%s2106] ss:$2 sm:$0xff]
        %s2108 = scalar_lea.vmem [#allocation2], 100
        %v2109 = vld [vmem:[%s2108] ss:$2 sm:$0xff]
        %s2110 = scalar_lea.vmem [#allocation2], 124
        %v2111 = vld [vmem:[%s2110] ss:$2 sm:$0xff]
        %s2112 = scalar_lea.vmem [#allocation2], 148
        %v2113 = vld [vmem:[%s2112] ss:$2 sm:$0xff]
        %s2114 = scalar_lea.vmem [#allocation2], 172
        %v2115 = vld [vmem:[%s2114] ss:$2 sm:$0xff]
        %s2116 = scalar_lea.vmem [#allocation2], 5
        %v2117 = vld [vmem:[%s2116] ss:$2 sm:$0xff]
        %s2118 = scalar_lea.vmem [#allocation2], 29
        %v2119 = vld [vmem:[%s2118] ss:$2 sm:$0xff]
        %s2120 = scalar_lea.vmem [#allocation2], 53
        %v2121 = vld [vmem:[%s2120] ss:$2 sm:$0xff]
        %s2122 = scalar_lea.vmem [#allocation2], 77
        %v2123 = vld [vmem:[%s2122] ss:$2 sm:$0xff]
        %s2124 = scalar_lea.vmem [#allocation2], 101
        %v2125 = vld [vmem:[%s2124] ss:$2 sm:$0xff]
        %s2126 = scalar_lea.vmem [#allocation2], 125
        %v2127 = vld [vmem:[%s2126] ss:$2 sm:$0xff]
        %s2128 = scalar_lea.vmem [#allocation2], 149
        %v2129 = vld [vmem:[%s2128] ss:$2 sm:$0xff]
        %s2130 = scalar_lea.vmem [#allocation2], 173
        %v2131 = vld [vmem:[%s2130] ss:$2 sm:$0xff]
        %v2132 = vmax.f32 %v2101, %v2117
        %v2133 = vmax.f32 %v2103, %v2119
        %v2134 = vmax.f32 %v2105, %v2121
        %v2135 = vmax.f32 %v2107, %v2123
        %v2136 = vmax.f32 %v2109, %v2125
        %v2137 = vmax.f32 %v2111, %v2127
        %v2138 = vmax.f32 %v2113, %v2129
        %v2139 = vmax.f32 %v2115, %v2131
        %s2140 = scalar_lea.vmem [#allocation2], 6
        %v2141 = vld [vmem:[%s2140] ss:$2 sm:$0xff]
        %s2142 = scalar_lea.vmem [#allocation2], 30
        %v2143 = vld [vmem:[%s2142] ss:$2 sm:$0xff]
        %s2144 = scalar_lea.vmem [#allocation2], 54
        %v2145 = vld [vmem:[%s2144] ss:$2 sm:$0xff]
        %s2146 = scalar_lea.vmem [#allocation2], 78
        %v2147 = vld [vmem:[%s2146] ss:$2 sm:$0xff]
        %s2148 = scalar_lea.vmem [#allocation2], 102
        %v2149 = vld [vmem:[%s2148] ss:$2 sm:$0xff]
        %s2150 = scalar_lea.vmem [#allocation2], 126
        %v2151 = vld [vmem:[%s2150] ss:$2 sm:$0xff]
        %s2152 = scalar_lea.vmem [#allocation2], 150
        %v2153 = vld [vmem:[%s2152] ss:$2 sm:$0xff]
        %s2154 = scalar_lea.vmem [#allocation2], 174
        %v2155 = vld [vmem:[%s2154] ss:$2 sm:$0xff]
        %s2156 = scalar_lea.vmem [#allocation2], 7
        %v2157 = vld [vmem:[%s2156] ss:$2 sm:$0xff]
        %s2158 = scalar_lea.vmem [#allocation2], 31
        %v2159 = vld [vmem:[%s2158] ss:$2 sm:$0xff]
        %s2160 = scalar_lea.vmem [#allocation2], 55
        %v2161 = vld [vmem:[%s2160] ss:$2 sm:$0xff]
        %s2162 = scalar_lea.vmem [#allocation2], 79
        %v2163 = vld [vmem:[%s2162] ss:$2 sm:$0xff]
        %s2164 = scalar_lea.vmem [#allocation2], 103
        %v2165 = vld [vmem:[%s2164] ss:$2 sm:$0xff]
        %s2166 = scalar_lea.vmem [#allocation2], 127
        %v2167 = vld [vmem:[%s2166] ss:$2 sm:$0xff]
        %s2168 = scalar_lea.vmem [#allocation2], 151
        %v2169 = vld [vmem:[%s2168] ss:$2 sm:$0xff]
        %s2170 = scalar_lea.vmem [#allocation2], 175
        %v2171 = vld [vmem:[%s2170] ss:$2 sm:$0xff]
        %v2172 = vmax.f32 %v2141, %v2157
        %v2173 = vmax.f32 %v2143, %v2159
        %v2174 = vmax.f32 %v2145, %v2161
        %v2175 = vmax.f32 %v2147, %v2163
        %v2176 = vmax.f32 %v2149, %v2165
        %v2177 = vmax.f32 %v2151, %v2167
        %v2178 = vmax.f32 %v2153, %v2169
        %v2179 = vmax.f32 %v2155, %v2171
        %s2180 = scalar_lea.vmem [#allocation2], 8
        %v2181 = vld [vmem:[%s2180] ss:$2 sm:$0xff]
        %s2182 = scalar_lea.vmem [#allocation2], 32
        %v2183 = vld [vmem:[%s2182] ss:$2 sm:$0xff]
        %s2184 = scalar_lea.vmem [#allocation2], 56
        %v2185 = vld [vmem:[%s2184] ss:$2 sm:$0xff]
        %s2186 = scalar_lea.vmem [#allocation2], 80
        %v2187 = vld [vmem:[%s2186] ss:$2 sm:$0xff]
        %s2188 = scalar_lea.vmem [#allocation2], 104
        %v2189 = vld [vmem:[%s2188] ss:$2 sm:$0xff]
        %s2190 = scalar_lea.vmem [#allocation2], 128
        %v2191 = vld [vmem:[%s2190] ss:$2 sm:$0xff]
        %s2192 = scalar_lea.vmem [#allocation2], 152
        %v2193 = vld [vmem:[%s2192] ss:$2 sm:$0xff]
        %s2194 = scalar_lea.vmem [#allocation2], 176
        %v2195 = vld [vmem:[%s2194] ss:$2 sm:$0xff]
        %s2196 = scalar_lea.vmem [#allocation2], 9
        %v2197 = vld [vmem:[%s2196] ss:$2 sm:$0xff]
        %s2198 = scalar_lea.vmem [#allocation2], 33
        %v2199 = vld [vmem:[%s2198] ss:$2 sm:$0xff]
        %s2200 = scalar_lea.vmem [#allocation2], 57
        %v2201 = vld [vmem:[%s2200] ss:$2 sm:$0xff]
        %s2202 = scalar_lea.vmem [#allocation2], 81
        %v2203 = vld [vmem:[%s2202] ss:$2 sm:$0xff]
        %s2204 = scalar_lea.vmem [#allocation2], 105
        %v2205 = vld [vmem:[%s2204] ss:$2 sm:$0xff]
        %s2206 = scalar_lea.vmem [#allocation2], 129
        %v2207 = vld [vmem:[%s2206] ss:$2 sm:$0xff]
        %s2208 = scalar_lea.vmem [#allocation2], 153
        %v2209 = vld [vmem:[%s2208] ss:$2 sm:$0xff]
        %s2210 = scalar_lea.vmem [#allocation2], 177
        %v2211 = vld [vmem:[%s2210] ss:$2 sm:$0xff]
        %v2212 = vmax.f32 %v2181, %v2197
        %v2213 = vmax.f32 %v2183, %v2199
        %v2214 = vmax.f32 %v2185, %v2201
        %v2215 = vmax.f32 %v2187, %v2203
        %v2216 = vmax.f32 %v2189, %v2205
        %v2217 = vmax.f32 %v2191, %v2207
        %v2218 = vmax.f32 %v2193, %v2209
        %v2219 = vmax.f32 %v2195, %v2211
        %2228 = vrot.lane.b32.xlu0 %v2092, 72
        %v2229 = vpop.permute.xlu0 %2228
        %2230 = vrot.lane.b32.xlu0 %v2093, 72
        %v2231 = vpop.permute.xlu0 %2230
        %2232 = vrot.lane.b32.xlu0 %v2094, 72
        %v2233 = vpop.permute.xlu0 %2232
        %2234 = vrot.lane.b32.xlu0 %v2095, 72
        %v2235 = vpop.permute.xlu0 %2234
        %2236 = vrot.lane.b32.xlu0 %v2096, 72
        %v2237 = vpop.permute.xlu0 %2236
        %2238 = vrot.lane.b32.xlu0 %v2097, 72
        %v2239 = vpop.permute.xlu0 %2238
        %2240 = vrot.lane.b32.xlu0 %v2098, 72
        %v2241 = vpop.permute.xlu0 %2240
        %2242 = vrot.lane.b32.xlu0 %v2099, 72
        %v2243 = vpop.permute.xlu0 %2242
        %2260 = vrot.lane.b32.xlu0 %v2132, 16
        %v2261 = vpop.permute.xlu0 %2260
        %2262 = vrot.lane.b32.xlu0 %v2133, 16
        %v2263 = vpop.permute.xlu0 %2262
        %2264 = vrot.lane.b32.xlu0 %v2134, 16
        %v2265 = vpop.permute.xlu0 %2264
        %2266 = vrot.lane.b32.xlu0 %v2135, 16
        %v2267 = vpop.permute.xlu0 %2266
        %2268 = vrot.lane.b32.xlu0 %v2136, 16
        %v2269 = vpop.permute.xlu0 %2268
        %2270 = vrot.lane.b32.xlu0 %v2137, 16
        %v2271 = vpop.permute.xlu0 %2270
        %2272 = vrot.lane.b32.xlu0 %v2138, 16
        %v2273 = vpop.permute.xlu0 %2272
        %2274 = vrot.lane.b32.xlu0 %v2139, 16
        %v2275 = vpop.permute.xlu0 %2274
        %2292 = vrot.lane.b32.xlu0 %v2172, 88
        %v2293 = vpop.permute.xlu0 %2292
        %2294 = vrot.lane.b32.xlu0 %v2173, 88
        %v2295 = vpop.permute.xlu0 %2294
        %2296 = vrot.lane.b32.xlu0 %v2174, 88
        %v2297 = vpop.permute.xlu0 %2296
        %2298 = vrot.lane.b32.xlu0 %v2175, 88
        %v2299 = vpop.permute.xlu0 %2298
        %2300 = vrot.lane.b32.xlu0 %v2176, 88
        %v2301 = vpop.permute.xlu0 %2300
        %2302 = vrot.lane.b32.xlu0 %v2177, 88
        %v2303 = vpop.permute.xlu0 %2302
        %2304 = vrot.lane.b32.xlu0 %v2178, 88
        %v2305 = vpop.permute.xlu0 %2304
        %2306 = vrot.lane.b32.xlu0 %v2179, 88
        %v2307 = vpop.permute.xlu0 %2306
        %2324 = vrot.lane.b32.xlu0 %v2212, 32
        %v2325 = vpop.permute.xlu0 %2324
        %2326 = vrot.lane.b32.xlu0 %v2213, 32
        %v2327 = vpop.permute.xlu0 %2326
        %2328 = vrot.lane.b32.xlu0 %v2214, 32
        %v2329 = vpop.permute.xlu0 %2328
        %2330 = vrot.lane.b32.xlu0 %v2215, 32
        %v2331 = vpop.permute.xlu0 %2330
        %2332 = vrot.lane.b32.xlu0 %v2216, 32
        %v2333 = vpop.permute.xlu0 %2332
        %2334 = vrot.lane.b32.xlu0 %v2217, 32
        %v2335 = vpop.permute.xlu0 %2334
        %2336 = vrot.lane.b32.xlu0 %v2218, 32
        %v2337 = vpop.permute.xlu0 %2336
        %2338 = vrot.lane.b32.xlu0 %v2219, 32
        %v2339 = vpop.permute.xlu0 %2338
        %v2348 = vsel %vm1996, %v2052, %v2229
        %v2349 = vsel %vm1996, %v2053, %v2231
        %v2350 = vsel %vm1996, %v2054, %v2233
        %v2351 = vsel %vm1996, %v2055, %v2235
        %v2352 = vsel %vm1996, %v2056, %v2237
        %v2353 = vsel %vm1996, %v2057, %v2239
        %v2354 = vsel %vm1996, %v2058, %v2241
        %v2355 = vsel %vm1996, %v2059, %v2243
        %v2356 = vsel %vm1511, %v2229, %v2261
        %v2357 = vsel %vm1511, %v2231, %v2263
        %v2358 = vsel %vm1511, %v2233, %v2265
        %v2359 = vsel %vm1511, %v2235, %v2267
        %v2360 = vsel %vm1511, %v2237, %v2269
        %v2361 = vsel %vm1511, %v2239, %v2271
        %v2362 = vsel %vm1511, %v2241, %v2273
        %v2363 = vsel %vm1511, %v2243, %v2275
        %vm2364 = vcmask 719872
        %v2365 = vsel %vm2364, %v2356, %v2293
        %v2366 = vsel %vm2364, %v2357, %v2295
        %v2367 = vsel %vm2364, %v2358, %v2297
        %v2368 = vsel %vm2364, %v2359, %v2299
        %v2369 = vsel %vm2364, %v2360, %v2301
        %v2370 = vsel %vm2364, %v2361, %v2303
        %v2371 = vsel %vm2364, %v2362, %v2305
        %v2372 = vsel %vm2364, %v2363, %v2307
        %vm2373 = vcmask 261120
        %v2374 = vsel %vm2373, %v2293, %v2325
        %v2375 = vsel %vm2373, %v2295, %v2327
        %v2376 = vsel %vm2373, %v2297, %v2329
        %v2377 = vsel %vm2373, %v2299, %v2331
        %v2378 = vsel %vm2373, %v2301, %v2333
        %v2379 = vsel %vm2373, %v2303, %v2335
        %v2380 = vsel %vm2373, %v2305, %v2337
        %v2381 = vsel %vm2373, %v2307, %v2339
        %v2382 = vld [vmem:[%s5] sm:$0xff]
        %v2383 = vld [vmem:[%s5 + $0x8] sm:$0xff]
        %v2384 = vld [vmem:[%s5 + $0x10] sm:$0xff]
        %v2385 = vld [vmem:[%s5 + $0x18] sm:$0xff]
        %v2386 = vld [vmem:[%s5 + $0x20] sm:$0xff]
        %v2387 = vld [vmem:[%s5 + $0x28] sm:$0xff]
        %v2388 = vld [vmem:[%s5 + $0x30] sm:$0xff]
        %v2389 = vld [vmem:[%s5 + $0x38] sm:$0xff]
        %v2390 = vld [vmem:[%s5 + $0x40] sm:$0xff]
        %v2391 = vld [vmem:[%s5 + $0x48] sm:$0xff]
        %v2392 = vld [vmem:[%s5 + $0x50] sm:$0xff]
        %v2393 = vld [vmem:[%s5 + $0x58] sm:$0xff]
        %v2394 = vld [vmem:[%s5 + $0x60] sm:$0xff]
        %v2395 = vld [vmem:[%s5 + $0x68] sm:$0xff]
        %v2396 = vld [vmem:[%s5 + $0x70] sm:$0xff]
        %v2397 = vld [vmem:[%s5 + $0x78] sm:$0xff]
        %v2398 = vld [vmem:[%s5 + $0x80] sm:$0xff]
        %v2399 = vld [vmem:[%s5 + $0x88] sm:$0xff]
        %v2400 = vld [vmem:[%s5 + $0x90] sm:$0xff]
        %v2401 = vld [vmem:[%s5 + $0x98] sm:$0xff]
        %v2402 = vld [vmem:[%s5 + $0xa0] sm:$0xff]
        %v2403 = vld [vmem:[%s5 + $0xa8] sm:$0xff]
        %v2404 = vld [vmem:[%s5 + $0xb0] sm:$0xff]
        %v2405 = vld [vmem:[%s5 + $0xb8] sm:$0xff]
        %v2406 = vld [vmem:[%s5 + $0xc0] sm:$0xff]
        %v2407 = vld [vmem:[%s5 + $0xc8] sm:$0xff]
        %v2408 = vld [vmem:[%s5 + $0xd0] sm:$0xff]
        %v2409 = vld [vmem:[%s5 + $0xd8] sm:$0xff]
        %v2410 = vld [vmem:[%s5 + $0xe0] sm:$0xff]
        %v2411 = vld [vmem:[%s5 + $0xe8] sm:$0xff]
        %v2412 = vld [vmem:[%s5 + $0xf0] sm:$0xff]
        %v2413 = vld [vmem:[%s5 + $0xf8] sm:$0xff]
        %v2414 = vld [vmem:[%s5 + $0x100] sm:$0xff]
        %v2415 = vld [vmem:[%s5 + $0x108] sm:$0xff]
        %v2416 = vld [vmem:[%s5 + $0x110] sm:$0xff]
        %v2417 = vld [vmem:[%s5 + $0x118] sm:$0xff]
        %v2418 = vld [vmem:[%s5 + $0x120] sm:$0xff]
        %v2419 = vld [vmem:[%s5 + $0x128] sm:$0xff]
        %v2420 = vld [vmem:[%s5 + $0x130] sm:$0xff]
        %v2421 = vld [vmem:[%s5 + $0x138] sm:$0xff]
        %v2422 = vld [vmem:[%s5 + $0x140] sm:$0xff]
        %v2423 = vld [vmem:[%s5 + $0x148] sm:$0xff]
        %v2424 = vld [vmem:[%s5 + $0x150] sm:$0xff]
        %v2425 = vld [vmem:[%s5 + $0x158] sm:$0xff]
        %v2426 = vld [vmem:[%s5 + $0x160] sm:$0xff]
        %v2427 = vld [vmem:[%s6] sm:$0x1]
        %v2429 = vlaneseq
        %v2430 = vshrl.u32 %v2429, 7
        %v2431 = vsub.s32 0, %v2430
        %v2432 = vrot.slane %v2427, %v2431
        %vm2434 = vcmask 850944
        %v2436 = vsel %vm2434, %v2374, 0
        %v2439 = vsel %vm2434, %v2375, 0
        %v2442 = vsel %vm2434, %v2376, 0
        %v2445 = vsel %vm2434, %v2377, 0
        %v2448 = vsel %vm2434, %v2378, 0
        %v2451 = vsel %vm2434, %v2379, 0
        %v2454 = vsel %vm2434, %v2380, 0
        %v2457 = vsel %vm2434, %v2381, 0
        %2459 = vmatprep.subr.mxu0 0.0
        %2460 = vmatpush1.msra.mxu0 %v2397
        %2461 = vmatprep.subr.mxu0 0.0
        %2462 = vmatpush1.msra.mxu0 %v2396
        %2463 = vmatprep.subr.mxu0 0.0
        %2464 = vmatpush1.msra.mxu0 %v2395
        %2465 = vmatprep.subr.mxu0 0.0
        %2466 = vmatpush1.msra.mxu0 %v2394
        %2467 = vmatprep.subr.mxu0 0.0
        %2468 = vmatpush1.msra.mxu0 %v2393
        %2469 = vmatprep.subr.mxu0 0.0
        %2470 = vmatpush1.msra.mxu0 %v2392
        %2471 = vmatprep.subr.mxu0 0.0
        %2472 = vmatpush1.msra.mxu0 %v2391
        %2473 = vmatprep.subr.mxu0 0.0
        %2474 = vmatpush1.msra.mxu0 %v2390
        %2475 = vmatprep.subr.mxu0 0.0
        %2476 = vmatpush1.msra.mxu0 %v2389
        %2477 = vmatprep.subr.mxu0 0.0
        %2478 = vmatpush1.msra.mxu0 %v2388
        %2479 = vmatprep.subr.mxu0 0.0
        %2480 = vmatpush1.msra.mxu0 %v2387
        %2481 = vmatprep.subr.mxu0 0.0
        %2482 = vmatpush1.msra.mxu0 %v2386
        %2483 = vmatprep.subr.mxu0 0.0
        %2484 = vmatpush1.msra.mxu0 %v2385
        %2485 = vmatprep.subr.mxu0 0.0
        %2486 = vmatpush1.msra.mxu0 %v2384
        %2487 = vmatprep.subr.mxu0 0.0
        %2488 = vmatpush1.msra.mxu0 %v2383
        %2489 = vmatprep.subr.mxu0 0.0
        %2490 = vmatpush1.msra.mxu0 %v2382
        %2491 = vmatprep.subr.mxu0 0.0
        %2492 = vmatpush2.msra.mxu0 %v2413
        %2493 = vmatprep.subr.mxu0 0.0
        %2494 = vmatpush2.msra.mxu0 %v2412
        %2495 = vmatprep.subr.mxu0 0.0
        %2496 = vmatpush2.msra.mxu0 %v2411
        %2497 = vmatprep.subr.mxu0 0.0
        %2498 = vmatpush2.msra.mxu0 %v2410
        %2499 = vmatprep.subr.mxu0 0.0
        %2500 = vmatpush2.msra.mxu0 %v2409
        %2501 = vmatprep.subr.mxu0 0.0
        %2502 = vmatpush2.msra.mxu0 %v2408
        %2503 = vmatprep.subr.mxu0 0.0
        %2504 = vmatpush2.msra.mxu0 %v2407
        %2505 = vmatprep.subr.mxu0 0.0
        %2506 = vmatpush2.msra.mxu0 %v2406
        %2507 = vmatprep.subr.mxu0 0.0
        %2508 = vmatpush2.msra.mxu0 %v2405
        %2509 = vmatprep.subr.mxu0 0.0
        %2510 = vmatpush2.msra.mxu0 %v2404
        %2511 = vmatprep.subr.mxu0 0.0
        %2512 = vmatpush2.msra.mxu0 %v2403
        %2513 = vmatprep.subr.mxu0 0.0
        %2514 = vmatpush2.msra.mxu0 %v2402
        %2515 = vmatprep.subr.mxu0 0.0
        %2516 = vmatpush2.msra.mxu0 %v2401
        %2517 = vmatprep.subr.mxu0 0.0
        %2518 = vmatpush2.msra.mxu0 %v2400
        %2519 = vmatprep.subr.mxu0 0.0
        %2520 = vmatpush2.msra.mxu0 %v2399
        %2521 = vmatprep.subr.mxu0 0.0
        %2522 = vmatpush2.msra.mxu0 %v2398
        %2523 = vmatprep.mubr.f32.mxu0 %v2365
        %2524 = vmatmul.mubr.f32.gmra.mxu0 %v2348
        %v2525 = vpop.f32.mrf.mxu0
        %v2526 = vadd.f32 %v2432, %v2525
        %v2527 = vpop.f32.mrf.mxu0
        %2528 = vmatprep.mubr.f32.mxu0 %v2366
        %2529 = vmatmul.mubr.f32.gmra.mxu0 %v2349
        %v2530 = vpop.f32.mrf.mxu0
        %v2531 = vadd.f32 %v2432, %v2530
        %v2532 = vpop.f32.mrf.mxu0
        %2533 = vmatprep.mubr.f32.mxu0 %v2367
        %2534 = vmatmul.mubr.f32.gmra.mxu0 %v2350
        %v2535 = vpop.f32.mrf.mxu0
        %v2536 = vadd.f32 %v2432, %v2535
        %v2537 = vpop.f32.mrf.mxu0
        %2538 = vmatprep.mubr.f32.mxu0 %v2368
        %2539 = vmatmul.mubr.f32.gmra.mxu0 %v2351
        %v2540 = vpop.f32.mrf.mxu0
        %v2541 = vadd.f32 %v2432, %v2540
        %v2542 = vpop.f32.mrf.mxu0
        %2543 = vmatprep.mubr.f32.mxu0 %v2369
        %2544 = vmatmul.mubr.f32.gmra.mxu0 %v2352
        %v2545 = vpop.f32.mrf.mxu0
        %v2546 = vadd.f32 %v2432, %v2545
        %v2547 = vpop.f32.mrf.mxu0
        %2548 = vmatprep.mubr.f32.mxu0 %v2370
        %2549 = vmatmul.mubr.f32.gmra.mxu0 %v2353
        %v2550 = vpop.f32.mrf.mxu0
        %v2551 = vadd.f32 %v2432, %v2550
        %v2552 = vpop.f32.mrf.mxu0
        %2553 = vmatprep.mubr.f32.mxu0 %v2371
        %2554 = vmatmul.mubr.f32.gmra.mxu0 %v2354
        %v2555 = vpop.f32.mrf.mxu0
        %v2556 = vadd.f32 %v2432, %v2555
        %v2557 = vpop.f32.mrf.mxu0
        %2558 = vmatprep.mubr.f32.mxu0 %v2372
        %2559 = vmatmul.mubr.f32.gmra.mxu0 %v2355
        %v2560 = vpop.f32.mrf.mxu0
        %v2561 = vadd.f32 %v2432, %v2560
        %v2562 = vpop.f32.mrf.mxu0
        %2563 = vdwg.mxu0
        %2564 = vmatprep.subr.mxu0 0.0
        %2565 = vmatpush1.msra.mxu0 0.0
        %2566 = vmatprep.subr.mxu0 0.0
        %2567 = vmatpush1.msra.mxu0 0.0
        %2568 = vmatprep.subr.mxu0 0.0
        %2569 = vmatpush1.msra.mxu0 0.0
        %2570 = vmatprep.subr.mxu0 0.0
        %2571 = vmatpush1.msra.mxu0 %v2426
        %2572 = vmatprep.subr.mxu0 0.0
        %2573 = vmatpush1.msra.mxu0 %v2425
        %2574 = vmatprep.subr.mxu0 0.0
        %2575 = vmatpush1.msra.mxu0 %v2424
        %2576 = vmatprep.subr.mxu0 0.0
        %2577 = vmatpush1.msra.mxu0 %v2423
        %2578 = vmatprep.subr.mxu0 0.0
        %2579 = vmatpush1.msra.mxu0 %v2422
        %2580 = vmatprep.subr.mxu0 0.0
        %2581 = vmatpush1.msra.mxu0 %v2421
        %2582 = vmatprep.subr.mxu0 0.0
        %2583 = vmatpush1.msra.mxu0 %v2420
        %2584 = vmatprep.subr.mxu0 0.0
        %2585 = vmatpush1.msra.mxu0 %v2419
        %2586 = vmatprep.subr.mxu0 0.0
        %2587 = vmatpush1.msra.mxu0 %v2418
        %2588 = vmatprep.subr.mxu0 0.0
        %2589 = vmatpush1.msra.mxu0 %v2417
        %2590 = vmatprep.subr.mxu0 0.0
        %2591 = vmatpush1.msra.mxu0 %v2416
        %2592 = vmatprep.subr.mxu0 0.0
        %2593 = vmatpush1.msra.mxu0 %v2415
        %2594 = vmatprep.subr.mxu0 0.0
        %2595 = vmatpush1.msra.mxu0 %v2414
        %2596 = vmatprep.subr.mxu0 0.0
        %2597 = vmatpush2.msra.mxu0 0.0
        %2598 = vmatprep.subr.mxu0 0.0
        %2599 = vmatpush2.msra.mxu0 0.0
        %2600 = vmatprep.subr.mxu0 0.0
        %2601 = vmatpush2.msra.mxu0 0.0
        %2602 = vmatprep.subr.mxu0 0.0
        %2603 = vmatpush2.msra.mxu0 0.0
        %2604 = vmatprep.subr.mxu0 0.0
        %2605 = vmatpush2.msra.mxu0 0.0
        %2606 = vmatprep.subr.mxu0 0.0
        %2607 = vmatpush2.msra.mxu0 0.0
        %2608 = vmatprep.subr.mxu0 0.0
        %2609 = vmatpush2.msra.mxu0 0.0
        %2610 = vmatprep.subr.mxu0 0.0
        %2611 = vmatpush2.msra.mxu0 0.0
        %2612 = vmatprep.subr.mxu0 0.0
        %2613 = vmatpush2.msra.mxu0 0.0
        %2614 = vmatprep.subr.mxu0 0.0
        %2615 = vmatpush2.msra.mxu0 0.0
        %2616 = vmatprep.subr.mxu0 0.0
        %2617 = vmatpush2.msra.mxu0 0.0
        %2618 = vmatprep.subr.mxu0 0.0
        %2619 = vmatpush2.msra.mxu0 0.0
        %2620 = vmatprep.subr.mxu0 0.0
        %2621 = vmatpush2.msra.mxu0 0.0
        %2622 = vmatprep.subr.mxu0 0.0
        %2623 = vmatpush2.msra.mxu0 0.0
        %2624 = vmatprep.subr.mxu0 0.0
        %2625 = vmatpush2.msra.mxu0 0.0
        %2626 = vmatprep.subr.mxu0 0.0
        %2627 = vmatpush2.msra.mxu0 0.0
        %2628 = vmatprep.mubr.f32.mxu0 0.0
        %2629 = vmatmul.mubr.f32.gmra.mxu0 %v2436
        %v2630 = vpop.f32.mrf.mxu0
        %v2631 = vadd.f32 %v2526, %v2630
        %v2632 = vpop.f32.mrf.mxu0
        %2633 = vmatprep.mubr.f32.mxu0 0.0
        %2634 = vmatmul.mubr.f32.gmra.mxu0 %v2439
        %v2635 = vpop.f32.mrf.mxu0
        %v2636 = vadd.f32 %v2531, %v2635
        %v2637 = vpop.f32.mrf.mxu0
        %2638 = vmatprep.mubr.f32.mxu0 0.0
        %2639 = vmatmul.mubr.f32.gmra.mxu0 %v2442
        %v2640 = vpop.f32.mrf.mxu0
        %v2641 = vadd.f32 %v2536, %v2640
        %v2642 = vpop.f32.mrf.mxu0
        %2643 = vmatprep.mubr.f32.mxu0 0.0
        %2644 = vmatmul.mubr.f32.gmra.mxu0 %v2445
        %v2645 = vpop.f32.mrf.mxu0
        %v2646 = vadd.f32 %v2541, %v2645
        %v2647 = vpop.f32.mrf.mxu0
        %2648 = vmatprep.mubr.f32.mxu0 0.0
        %2649 = vmatmul.mubr.f32.gmra.mxu0 %v2448
        %v2650 = vpop.f32.mrf.mxu0
        %v2651 = vadd.f32 %v2546, %v2650
        %v2652 = vpop.f32.mrf.mxu0
        %2653 = vmatprep.mubr.f32.mxu0 0.0
        %2654 = vmatmul.mubr.f32.gmra.mxu0 %v2451
        %v2655 = vpop.f32.mrf.mxu0
        %v2656 = vadd.f32 %v2551, %v2655
        %v2657 = vpop.f32.mrf.mxu0
        %2658 = vmatprep.mubr.f32.mxu0 0.0
        %2659 = vmatmul.mubr.f32.gmra.mxu0 %v2454
        %v2660 = vpop.f32.mrf.mxu0
        %v2661 = vadd.f32 %v2556, %v2660
        %v2662 = vpop.f32.mrf.mxu0
        %2663 = vmatprep.mubr.f32.mxu0 0.0
        %2664 = vmatmul.mubr.f32.gmra.mxu0 %v2457
        %v2665 = vpop.f32.mrf.mxu0
        %v2666 = vadd.f32 %v2561, %v2665
        %v2667 = vpop.f32.mrf.mxu0
        %2668 = vdwg.mxu0
        %v2669 = vmax.f32 %v2631, 0.0
        %v2670 = vmax.f32 %v2636, 0.0
        %v2671 = vmax.f32 %v2641, 0.0
        %v2672 = vmax.f32 %v2646, 0.0
        %v2673 = vmax.f32 %v2651, 0.0
        %v2674 = vmax.f32 %v2656, 0.0
        %v2675 = vmax.f32 %v2661, 0.0
        %v2676 = vmax.f32 %v2666, 0.0
        %v2677 = vld [vmem:[%s7] sm:$0xff]
        %v2678 = vld [vmem:[%s7 + $0x8] sm:$0xff]
        %v2679 = vld [vmem:[%s7 + $0x10] sm:$0xff]
        %v2680 = vld [vmem:[%s7 + $0x18] sm:$0xff]
        %v2681 = vld [vmem:[%s7 + $0x20] sm:$0xff]
        %v2682 = vld [vmem:[%s7 + $0x28] sm:$0xff]
        %v2683 = vld [vmem:[%s7 + $0x30] sm:$0xff]
        %v2684 = vld [vmem:[%s7 + $0x38] sm:$0xff]
        %v2685 = vld [vmem:[%s7 + $0x40] sm:$0xff]
        %v2686 = vld [vmem:[%s7 + $0x48] sm:$0xff]
        %v2687 = vld [vmem:[%s7 + $0x50] sm:$0xff]
        %v2688 = vld [vmem:[%s7 + $0x58] sm:$0xff]
        %v2689 = vld [vmem:[%s7 + $0x60] sm:$0xff]
        %v2690 = vld [vmem:[%s7 + $0x68] sm:$0xff]
        %v2691 = vld [vmem:[%s7 + $0x70] sm:$0xff]
        %v2692 = vld [vmem:[%s7 + $0x78] sm:$0xff]
        %2693 = vmatprep.subr.mxu0 0.0
        %2694 = vmatpush1.msra.mxu0 %v2692
        %2695 = vmatprep.subr.mxu0 0.0
        %2696 = vmatpush1.msra.mxu0 %v2691
        %2697 = vmatprep.subr.mxu0 0.0
        %2698 = vmatpush1.msra.mxu0 %v2690
        %2699 = vmatprep.subr.mxu0 0.0
        %2700 = vmatpush1.msra.mxu0 %v2689
        %2701 = vmatprep.subr.mxu0 0.0
        %2702 = vmatpush1.msra.mxu0 %v2688
        %2703 = vmatprep.subr.mxu0 0.0
        %2704 = vmatpush1.msra.mxu0 %v2687
        %2705 = vmatprep.subr.mxu0 0.0
        %2706 = vmatpush1.msra.mxu0 %v2686
        %2707 = vmatprep.subr.mxu0 0.0
        %2708 = vmatpush1.msra.mxu0 %v2685
        %2709 = vmatprep.subr.mxu0 0.0
        %2710 = vmatpush1.msra.mxu0 %v2684
        %2711 = vmatprep.subr.mxu0 0.0
        %2712 = vmatpush1.msra.mxu0 %v2683
        %2713 = vmatprep.subr.mxu0 0.0
        %2714 = vmatpush1.msra.mxu0 %v2682
        %2715 = vmatprep.subr.mxu0 0.0
        %2716 = vmatpush1.msra.mxu0 %v2681
        %2717 = vmatprep.subr.mxu0 0.0
        %2718 = vmatpush1.msra.mxu0 %v2680
        %2719 = vmatprep.subr.mxu0 0.0
        %2720 = vmatpush1.msra.mxu0 %v2679
        %2721 = vmatprep.subr.mxu0 0.0
        %2722 = vmatpush1.msra.mxu0 %v2678
        %2723 = vmatprep.subr.mxu0 0.0
        %2724 = vmatpush1.msra.mxu0 %v2677
        %2725 = vmatprep.subr.mxu0 0.0
        %2726 = vmatpush2.msra.mxu0 0.0
        %2727 = vmatprep.subr.mxu0 0.0
        %2728 = vmatpush2.msra.mxu0 0.0
        %2729 = vmatprep.subr.mxu0 0.0
        %2730 = vmatpush2.msra.mxu0 0.0
        %2731 = vmatprep.subr.mxu0 0.0
        %2732 = vmatpush2.msra.mxu0 0.0
        %2733 = vmatprep.subr.mxu0 0.0
        %2734 = vmatpush2.msra.mxu0 0.0
        %2735 = vmatprep.subr.mxu0 0.0
        %2736 = vmatpush2.msra.mxu0 0.0
        %2737 = vmatprep.subr.mxu0 0.0
        %2738 = vmatpush2.msra.mxu0 0.0
        %2739 = vmatprep.subr.mxu0 0.0
        %2740 = vmatpush2.msra.mxu0 0.0
        %2741 = vmatprep.subr.mxu0 0.0
        %2742 = vmatpush2.msra.mxu0 0.0
        %2743 = vmatprep.subr.mxu0 0.0
        %2744 = vmatpush2.msra.mxu0 0.0
        %2745 = vmatprep.subr.mxu0 0.0
        %2746 = vmatpush2.msra.mxu0 0.0
        %2747 = vmatprep.subr.mxu0 0.0
        %2748 = vmatpush2.msra.mxu0 0.0
        %2749 = vmatprep.subr.mxu0 0.0
        %2750 = vmatpush2.msra.mxu0 0.0
        %2751 = vmatprep.subr.mxu0 0.0
        %2752 = vmatpush2.msra.mxu0 0.0
        %2753 = vmatprep.subr.mxu0 0.0
        %2754 = vmatpush2.msra.mxu0 0.0
        %2755 = vmatprep.subr.mxu0 0.0
        %2756 = vmatpush2.msra.mxu0 0.0
        %2757 = vmatprep.mubr.f32.mxu0 0.0
        %2758 = vmatmul.mubr.f32.gmra.mxu0 %v2669
        %v2759 = vpop.f32.mrf.mxu0
        %v2760 = vadd.f32 0.0, %v2759
        %v2761 = vpop.f32.mrf.mxu0
        %2762 = vmatprep.mubr.f32.mxu0 0.0
        %2763 = vmatmul.mubr.f32.gmra.mxu0 %v2670
        %v2764 = vpop.f32.mrf.mxu0
        %v2765 = vadd.f32 0.0, %v2764
        %v2766 = vpop.f32.mrf.mxu0
        %2767 = vmatprep.mubr.f32.mxu0 0.0
        %2768 = vmatmul.mubr.f32.gmra.mxu0 %v2671
        %v2769 = vpop.f32.mrf.mxu0
        %v2770 = vadd.f32 0.0, %v2769
        %v2771 = vpop.f32.mrf.mxu0
        %2772 = vmatprep.mubr.f32.mxu0 0.0
        %2773 = vmatmul.mubr.f32.gmra.mxu0 %v2672
        %v2774 = vpop.f32.mrf.mxu0
        %v2775 = vadd.f32 0.0, %v2774
        %v2776 = vpop.f32.mrf.mxu0
        %2777 = vmatprep.mubr.f32.mxu0 0.0
        %2778 = vmatmul.mubr.f32.gmra.mxu0 %v2673
        %v2779 = vpop.f32.mrf.mxu0
        %v2780 = vadd.f32 0.0, %v2779
        %v2781 = vpop.f32.mrf.mxu0
        %2782 = vmatprep.mubr.f32.mxu0 0.0
        %2783 = vmatmul.mubr.f32.gmra.mxu0 %v2674
        %v2784 = vpop.f32.mrf.mxu0
        %v2785 = vadd.f32 0.0, %v2784
        %v2786 = vpop.f32.mrf.mxu0
        %2787 = vmatprep.mubr.f32.mxu0 0.0
        %2788 = vmatmul.mubr.f32.gmra.mxu0 %v2675
        %v2789 = vpop.f32.mrf.mxu0
        %v2790 = vadd.f32 0.0, %v2789
        %v2791 = vpop.f32.mrf.mxu0
        %2792 = vmatprep.mubr.f32.mxu0 0.0
        %2793 = vmatmul.mubr.f32.gmra.mxu0 %v2676
        %v2794 = vpop.f32.mrf.mxu0
        %v2795 = vadd.f32 0.0, %v2794
        %v2796 = vpop.f32.mrf.mxu0
        %2797 = vdwg.mxu0
        %v2798 = vld [vmem:[%s8] sm:$0xff]
        %v2799 = vld [vmem:[%s8 + $0x8] sm:$0xff]
        %v2800 = vld [vmem:[%s8 + $0x10] sm:$0xff]
        %v2801 = vld [vmem:[%s8 + $0x18] sm:$0xff]
        %v2802 = vld [vmem:[%s8 + $0x20] sm:$0xff]
        %v2803 = vld [vmem:[%s8 + $0x28] sm:$0xff]
        %v2804 = vld [vmem:[%s8 + $0x30] sm:$0xff]
        %v2805 = vld [vmem:[%s8 + $0x38] sm:$0xff]
        %v2806 = vld [vmem:[%s8 + $0x40] sm:$0xff]
        %v2807 = vld [vmem:[%s8 + $0x48] sm:$0xff]
        %v2808 = vld [vmem:[%s8 + $0x50] sm:$0xff]
        %v2809 = vld [vmem:[%s8 + $0x58] sm:$0xff]
        %v2810 = vld [vmem:[%s8 + $0x60] sm:$0xff]
        %v2811 = vld [vmem:[%s8 + $0x68] sm:$0xff]
        %v2812 = vld [vmem:[%s8 + $0x70] sm:$0xff]
        %v2813 = vld [vmem:[%s8 + $0x78] sm:$0xff]
        %2814 = vmatprep.subr.mxu0 0.0
        %2815 = vmatpush1.msra.mxu0 %v2813
        %2816 = vmatprep.subr.mxu0 0.0
        %2817 = vmatpush1.msra.mxu0 %v2812
        %2818 = vmatprep.subr.mxu0 0.0
        %2819 = vmatpush1.msra.mxu0 %v2811
        %2820 = vmatprep.subr.mxu0 0.0
        %2821 = vmatpush1.msra.mxu0 %v2810
        %2822 = vmatprep.subr.mxu0 0.0
        %2823 = vmatpush1.msra.mxu0 %v2809
        %2824 = vmatprep.subr.mxu0 0.0
        %2825 = vmatpush1.msra.mxu0 %v2808
        %2826 = vmatprep.subr.mxu0 0.0
        %2827 = vmatpush1.msra.mxu0 %v2807
        %2828 = vmatprep.subr.mxu0 0.0
        %2829 = vmatpush1.msra.mxu0 %v2806
        %2830 = vmatprep.subr.mxu0 0.0
        %2831 = vmatpush1.msra.mxu0 %v2805
        %2832 = vmatprep.subr.mxu0 0.0
        %2833 = vmatpush1.msra.mxu0 %v2804
        %2834 = vmatprep.subr.mxu0 0.0
        %2835 = vmatpush1.msra.mxu0 %v2803
        %2836 = vmatprep.subr.mxu0 0.0
        %2837 = vmatpush1.msra.mxu0 %v2802
        %2838 = vmatprep.subr.mxu0 0.0
        %2839 = vmatpush1.msra.mxu0 %v2801
        %2840 = vmatprep.subr.mxu0 0.0
        %2841 = vmatpush1.msra.mxu0 %v2800
        %2842 = vmatprep.subr.mxu0 0.0
        %2843 = vmatpush1.msra.mxu0 %v2799
        %2844 = vmatprep.subr.mxu0 0.0
        %2845 = vmatpush1.msra.mxu0 %v2798
        %2846 = vmatprep.subr.mxu0 0.0
        %2847 = vmatpush2.msra.mxu0 0.0
        %2848 = vmatprep.subr.mxu0 0.0
        %2849 = vmatpush2.msra.mxu0 0.0
        %2850 = vmatprep.subr.mxu0 0.0
        %2851 = vmatpush2.msra.mxu0 0.0
        %2852 = vmatprep.subr.mxu0 0.0
        %2853 = vmatpush2.msra.mxu0 0.0
        %2854 = vmatprep.subr.mxu0 0.0
        %2855 = vmatpush2.msra.mxu0 0.0
        %2856 = vmatprep.subr.mxu0 0.0
        %2857 = vmatpush2.msra.mxu0 0.0
        %2858 = vmatprep.subr.mxu0 0.0
        %2859 = vmatpush2.msra.mxu0 0.0
        %2860 = vmatprep.subr.mxu0 0.0
        %2861 = vmatpush2.msra.mxu0 0.0
        %2862 = vmatprep.subr.mxu0 0.0
        %2863 = vmatpush2.msra.mxu0 0.0
        %2864 = vmatprep.subr.mxu0 0.0
        %2865 = vmatpush2.msra.mxu0 0.0
        %2866 = vmatprep.subr.mxu0 0.0
        %2867 = vmatpush2.msra.mxu0 0.0
        %2868 = vmatprep.subr.mxu0 0.0
        %2869 = vmatpush2.msra.mxu0 0.0
        %2870 = vmatprep.subr.mxu0 0.0
        %2871 = vmatpush2.msra.mxu0 0.0
        %2872 = vmatprep.subr.mxu0 0.0
        %2873 = vmatpush2.msra.mxu0 0.0
        %2874 = vmatprep.subr.mxu0 0.0
        %2875 = vmatpush2.msra.mxu0 0.0
        %2876 = vmatprep.subr.mxu0 0.0
        %2877 = vmatpush2.msra.mxu0 0.0
        %2878 = vmatprep.mubr.f32.mxu0 0.0
        %2879 = vmatmul.mubr.f32.gmra.mxu0 %v2669
        %v2880 = vpop.f32.mrf.mxu0
        %v2881 = vadd.f32 0.0, %v2880
        %v2882 = vpop.f32.mrf.mxu0
        %2883 = vmatprep.mubr.f32.mxu0 0.0
        %2884 = vmatmul.mubr.f32.gmra.mxu0 %v2670
        %v2885 = vpop.f32.mrf.mxu0
        %v2886 = vadd.f32 0.0, %v2885
        %v2887 = vpop.f32.mrf.mxu0
        %2888 = vmatprep.mubr.f32.mxu0 0.0
        %2889 = vmatmul.mubr.f32.gmra.mxu0 %v2671
        %v2890 = vpop.f32.mrf.mxu0
        %v2891 = vadd.f32 0.0, %v2890
        %v2892 = vpop.f32.mrf.mxu0
        %2893 = vmatprep.mubr.f32.mxu0 0.0
        %2894 = vmatmul.mubr.f32.gmra.mxu0 %v2672
        %v2895 = vpop.f32.mrf.mxu0
        %v2896 = vadd.f32 0.0, %v2895
        %v2897 = vpop.f32.mrf.mxu0
        %2898 = vmatprep.mubr.f32.mxu0 0.0
        %2899 = vmatmul.mubr.f32.gmra.mxu0 %v2673
        %v2900 = vpop.f32.mrf.mxu0
        %v2901 = vadd.f32 0.0, %v2900
        %v2902 = vpop.f32.mrf.mxu0
        %2903 = vmatprep.mubr.f32.mxu0 0.0
        %2904 = vmatmul.mubr.f32.gmra.mxu0 %v2674
        %v2905 = vpop.f32.mrf.mxu0
        %v2906 = vadd.f32 0.0, %v2905
        %v2907 = vpop.f32.mrf.mxu0
        %2908 = vmatprep.mubr.f32.mxu0 0.0
        %2909 = vmatmul.mubr.f32.gmra.mxu0 %v2675
        %v2910 = vpop.f32.mrf.mxu0
        %v2911 = vadd.f32 0.0, %v2910
        %v2912 = vpop.f32.mrf.mxu0
        %2913 = vmatprep.mubr.f32.mxu0 0.0
        %2914 = vmatmul.mubr.f32.gmra.mxu0 %v2676
        %v2915 = vpop.f32.mrf.mxu0
        %v2916 = vadd.f32 0.0, %v2915
        %v2917 = vpop.f32.mrf.mxu0
        %2918 = vdwg.mxu0
        %v2919 = vmax.f32 %v2760, %v2881
        %v2920 = vmax.f32 %v2765, %v2886
        %v2921 = vmax.f32 %v2770, %v2891
        %v2922 = vmax.f32 %v2775, %v2896
        %v2923 = vmax.f32 %v2780, %v2901
        %v2924 = vmax.f32 %v2785, %v2906
        %v2925 = vmax.f32 %v2790, %v2911
        %v2926 = vmax.f32 %v2795, %v2916
        %vm2927 = vcmask 523264
        %2928 = vst.msk [vmem:[#allocation3] sm:$0xff] %vm2927, %v2919
        %2929 = vst.msk [vmem:[#allocation3 + $0x8] sm:$0xff] %vm2927, %v2920
        %2930 = vst.msk [vmem:[#allocation3 + $0x10] sm:$0xff] %vm2927, %v2921
        %2931 = vst.msk [vmem:[#allocation3 + $0x18] sm:$0xff] %vm2927, %v2922
        %2932 = vst.msk [vmem:[#allocation3 + $0x20] sm:$0xff] %vm2927, %v2923
        %2933 = vst.msk [vmem:[#allocation3 + $0x28] sm:$0xff] %vm2927, %v2924
        %2934 = vst.msk [vmem:[#allocation3 + $0x30] sm:$0xff] %vm2927, %v2925
        %2935 = vst.msk [vmem:[#allocation3 + $0x38] sm:$0xff] %vm2927, %v2926
        %v2936 = vld [vmem:[%s10] sm:$0x1]
        %v2937 = vld [vmem:[#allocation3] sm:$0x1]
        %v2938 = vld [vmem:[#allocation3 + $0x8] sm:$0x1]
        %v2939 = vld [vmem:[#allocation3 + $0x10] sm:$0x1]
        %v2940 = vld [vmem:[#allocation3 + $0x18] sm:$0x1]
        %v2941 = vld [vmem:[#allocation3 + $0x20] sm:$0x1]
        %v2942 = vld [vmem:[#allocation3 + $0x28] sm:$0x1]
        %v2943 = vld [vmem:[#allocation3 + $0x30] sm:$0x1]
        %v2944 = vld [vmem:[#allocation3 + $0x38] sm:$0x1]
        %v2945 = vld [vmem:[#allocation3 + $0x1] sm:$0x1]
        %v2946 = vld [vmem:[#allocation3 + $0x9] sm:$0x1]
        %v2947 = vld [vmem:[#allocation3 + $0x11] sm:$0x1]
        %v2948 = vld [vmem:[#allocation3 + $0x19] sm:$0x1]
        %v2949 = vld [vmem:[#allocation3 + $0x21] sm:$0x1]
        %v2950 = vld [vmem:[#allocation3 + $0x29] sm:$0x1]
        %v2951 = vld [vmem:[#allocation3 + $0x31] sm:$0x1]
        %v2952 = vld [vmem:[#allocation3 + $0x39] sm:$0x1]
        %v2953 = vmax.f32 %v2937, %v2945
        %v2954 = vmax.f32 %v2938, %v2946
        %v2955 = vmax.f32 %v2939, %v2947
        %v2956 = vmax.f32 %v2940, %v2948
        %v2957 = vmax.f32 %v2941, %v2949
        %v2958 = vmax.f32 %v2942, %v2950
        %v2959 = vmax.f32 %v2943, %v2951
        %v2960 = vmax.f32 %v2944, %v2952
        %v2961 = vld [vmem:[%s9] sm:$0xff]
        %v2962 = vld [vmem:[%s9 + $0x8] sm:$0xff]
        %v2963 = vld [vmem:[%s9 + $0x10] sm:$0xff]
        %v2964 = vld [vmem:[%s9 + $0x18] sm:$0xff]
        %v2965 = vld [vmem:[%s9 + $0x20] sm:$0xff]
        %v2966 = vld [vmem:[%s9 + $0x28] sm:$0xff]
        %v2967 = vld [vmem:[%s9 + $0x30] sm:$0xff]
        %v2968 = vld [vmem:[%s9 + $0x38] sm:$0xff]
        %v2977 = vrot.slane %v2954, 7
        %vm2978 = vcmask 1041409
        %v2979 = vsel %vm2978, %v2977, %v2953
        %v2980 = vrot.slane %v2955, 6
        %vm2981 = vcmask 1042434
        %v2982 = vsel %vm2981, %v2980, %v2979
        %v2983 = vrot.slane %v2956, 5
        %vm2984 = vcmask 1043459
        %v2985 = vsel %vm2984, %v2983, %v2982
        %v2986 = vrot.slane %v2957, 4
        %vm2987 = vcmask 1044484
        %v2988 = vsel %vm2987, %v2986, %v2985
        %v2989 = vrot.slane %v2958, 3
        %vm2990 = vcmask 1045509
        %v2991 = vsel %vm2990, %v2989, %v2988
        %v2992 = vrot.slane %v2959, 2
        %vm2993 = vcmask 1046534
        %v2994 = vsel %vm2993, %v2992, %v2991
        %v2995 = vrot.slane %v2960, 1
        %vm2996 = vcmask 1047559
        %v2997 = vsel %vm2996, %v2995, %v2994
        %v2998 = vsel %vm2927, %v2997, 0
        %3000 = vmatprep.subr.mxu0 0.0
        %3001 = vmatpush1.msra.mxu0 0.0
        %3002 = vmatprep.subr.mxu0 0.0
        %3003 = vmatpush1.msra.mxu0 0.0
        %3004 = vmatprep.subr.mxu0 0.0
        %3005 = vmatpush1.msra.mxu0 0.0
        %3006 = vmatprep.subr.mxu0 0.0
        %3007 = vmatpush1.msra.mxu0 0.0
        %3008 = vmatprep.subr.mxu0 0.0
        %3009 = vmatpush1.msra.mxu0 0.0
        %3010 = vmatprep.subr.mxu0 0.0
        %3011 = vmatpush1.msra.mxu0 0.0
        %3012 = vmatprep.subr.mxu0 0.0
        %3013 = vmatpush1.msra.mxu0 0.0
        %3014 = vmatprep.subr.mxu0 0.0
        %3015 = vmatpush1.msra.mxu0 0.0
        %3016 = vmatprep.subr.mxu0 0.0
        %3017 = vmatpush1.msra.mxu0 %v2968
        %3018 = vmatprep.subr.mxu0 0.0
        %3019 = vmatpush1.msra.mxu0 %v2967
        %3020 = vmatprep.subr.mxu0 0.0
        %3021 = vmatpush1.msra.mxu0 %v2966
        %3022 = vmatprep.subr.mxu0 0.0
        %3023 = vmatpush1.msra.mxu0 %v2965
        %3024 = vmatprep.subr.mxu0 0.0
        %3025 = vmatpush1.msra.mxu0 %v2964
        %3026 = vmatprep.subr.mxu0 0.0
        %3027 = vmatpush1.msra.mxu0 %v2963
        %3028 = vmatprep.subr.mxu0 0.0
        %3029 = vmatpush1.msra.mxu0 %v2962
        %3030 = vmatprep.subr.mxu0 0.0
        %3031 = vmatpush1.msra.mxu0 %v2961
        %3032 = vmatprep.subr.mxu0 0.0
        %3033 = vmatpush2.msra.mxu0 0.0
        %3034 = vmatprep.subr.mxu0 0.0
        %3035 = vmatpush2.msra.mxu0 0.0
        %3036 = vmatprep.subr.mxu0 0.0
        %3037 = vmatpush2.msra.mxu0 0.0
        %3038 = vmatprep.subr.mxu0 0.0
        %3039 = vmatpush2.msra.mxu0 0.0
        %3040 = vmatprep.subr.mxu0 0.0
        %3041 = vmatpush2.msra.mxu0 0.0
        %3042 = vmatprep.subr.mxu0 0.0
        %3043 = vmatpush2.msra.mxu0 0.0
        %3044 = vmatprep.subr.mxu0 0.0
        %3045 = vmatpush2.msra.mxu0 0.0
        %3046 = vmatprep.subr.mxu0 0.0
        %3047 = vmatpush2.msra.mxu0 0.0
        %3048 = vmatprep.subr.mxu0 0.0
        %3049 = vmatpush2.msra.mxu0 0.0
        %3050 = vmatprep.subr.mxu0 0.0
        %3051 = vmatpush2.msra.mxu0 0.0
        %3052 = vmatprep.subr.mxu0 0.0
        %3053 = vmatpush2.msra.mxu0 0.0
        %3054 = vmatprep.subr.mxu0 0.0
        %3055 = vmatpush2.msra.mxu0 0.0
        %3056 = vmatprep.subr.mxu0 0.0
        %3057 = vmatpush2.msra.mxu0 0.0
        %3058 = vmatprep.subr.mxu0 0.0
        %3059 = vmatpush2.msra.mxu0 0.0
        %3060 = vmatprep.subr.mxu0 0.0
        %3061 = vmatpush2.msra.mxu0 0.0
        %3062 = vmatprep.subr.mxu0 0.0
        %3063 = vmatpush2.msra.mxu0 0.0
        %3064 = vmatprep.mubr.f32.mxu0 0.0
        %3065 = vmatmul.mubr.f32.gmra.mxu0 %v2998
        %v3066 = vpop.f32.mrf.mxu0
        %v3067 = vadd.f32 0.0, %v3066
        %v3068 = vpop.f32.mrf.mxu0
        %3069 = vdwg.mxu0
        %v3071 = vlaneseq
        %v3072 = vshrl.u32 %v3071, 7
        %v3073 = vsub.s32 0, %v3072
        %v3074 = vrot.slane %v2936, %v3073
        %v3076 = vadd.f32 %v3074, %v3067
        %v3077 = vld [vmem:[#allocation3 + $0x2] sm:$0x1]
        %v3078 = vld [vmem:[#allocation3 + $0xa] sm:$0x1]
        %v3079 = vld [vmem:[#allocation3 + $0x12] sm:$0x1]
        %v3080 = vld [vmem:[#allocation3 + $0x1a] sm:$0x1]
        %v3081 = vld [vmem:[#allocation3 + $0x22] sm:$0x1]
        %v3082 = vld [vmem:[#allocation3 + $0x2a] sm:$0x1]
        %v3083 = vld [vmem:[#allocation3 + $0x32] sm:$0x1]
        %v3084 = vld [vmem:[#allocation3 + $0x3a] sm:$0x1]
        %v3085 = vld [vmem:[#allocation3 + $0x3] sm:$0x1]
        %v3086 = vld [vmem:[#allocation3 + $0xb] sm:$0x1]
        %v3087 = vld [vmem:[#allocation3 + $0x13] sm:$0x1]
        %v3088 = vld [vmem:[#allocation3 + $0x1b] sm:$0x1]
        %v3089 = vld [vmem:[#allocation3 + $0x23] sm:$0x1]
        %v3090 = vld [vmem:[#allocation3 + $0x2b] sm:$0x1]
        %v3091 = vld [vmem:[#allocation3 + $0x33] sm:$0x1]
        %v3092 = vld [vmem:[#allocation3 + $0x3b] sm:$0x1]
        %v3093 = vmax.f32 %v3077, %v3085
        %v3094 = vmax.f32 %v3078, %v3086
        %v3095 = vmax.f32 %v3079, %v3087
        %v3096 = vmax.f32 %v3080, %v3088
        %v3097 = vmax.f32 %v3081, %v3089
        %v3098 = vmax.f32 %v3082, %v3090
        %v3099 = vmax.f32 %v3083, %v3091
        %v3100 = vmax.f32 %v3084, %v3092
        %s3101 = scalar_lea.vmem %s9, 64
        %v3102 = vld [vmem:[%s3101] sm:$0xff]
        %v3103 = vld [vmem:[%s3101 + $0x8] sm:$0xff]
        %v3104 = vld [vmem:[%s3101 + $0x10] sm:$0xff]
        %v3105 = vld [vmem:[%s3101 + $0x18] sm:$0xff]
        %v3106 = vld [vmem:[%s3101 + $0x20] sm:$0xff]
        %v3107 = vld [vmem:[%s3101 + $0x28] sm:$0xff]
        %v3108 = vld [vmem:[%s3101 + $0x30] sm:$0xff]
        %v3109 = vld [vmem:[%s3101 + $0x38] sm:$0xff]
        %v3118 = vrot.slane %v3094, 7
        %v3119 = vsel %vm2978, %v3118, %v3093
        %v3120 = vrot.slane %v3095, 6
        %v3121 = vsel %vm2981, %v3120, %v3119
        %v3122 = vrot.slane %v3096, 5
        %v3123 = vsel %vm2984, %v3122, %v3121
        %v3124 = vrot.slane %v3097, 4
        %v3125 = vsel %vm2987, %v3124, %v3123
        %v3126 = vrot.slane %v3098, 3
        %v3127 = vsel %vm2990, %v3126, %v3125
        %v3128 = vrot.slane %v3099, 2
        %v3129 = vsel %vm2993, %v3128, %v3127
        %v3130 = vrot.slane %v3100, 1
        %v3131 = vsel %vm2996, %v3130, %v3129
        %v3132 = vsel %vm2927, %v3131, 0
        %3134 = vmatprep.subr.mxu0 0.0
        %3135 = vmatpush1.msra.mxu0 0.0
        %3136 = vmatprep.subr.mxu0 0.0
        %3137 = vmatpush1.msra.mxu0 0.0
        %3138 = vmatprep.subr.mxu0 0.0
        %3139 = vmatpush1.msra.mxu0 0.0
        %3140 = vmatprep.subr.mxu0 0.0
        %3141 = vmatpush1.msra.mxu0 0.0
        %3142 = vmatprep.subr.mxu0 0.0
        %3143 = vmatpush1.msra.mxu0 0.0
        %3144 = vmatprep.subr.mxu0 0.0
        %3145 = vmatpush1.msra.mxu0 0.0
        %3146 = vmatprep.subr.mxu0 0.0
        %3147 = vmatpush1.msra.mxu0 0.0
        %3148 = vmatprep.subr.mxu0 0.0
        %3149 = vmatpush1.msra.mxu0 0.0
        %3150 = vmatprep.subr.mxu0 0.0
        %3151 = vmatpush1.msra.mxu0 %v3109
        %3152 = vmatprep.subr.mxu0 0.0
        %3153 = vmatpush1.msra.mxu0 %v3108
        %3154 = vmatprep.subr.mxu0 0.0
        %3155 = vmatpush1.msra.mxu0 %v3107
        %3156 = vmatprep.subr.mxu0 0.0
        %3157 = vmatpush1.msra.mxu0 %v3106
        %3158 = vmatprep.subr.mxu0 0.0
        %3159 = vmatpush1.msra.mxu0 %v3105
        %3160 = vmatprep.subr.mxu0 0.0
        %3161 = vmatpush1.msra.mxu0 %v3104
        %3162 = vmatprep.subr.mxu0 0.0
        %3163 = vmatpush1.msra.mxu0 %v3103
        %3164 = vmatprep.subr.mxu0 0.0
        %3165 = vmatpush1.msra.mxu0 %v3102
        %3166 = vmatprep.subr.mxu0 0.0
        %3167 = vmatpush2.msra.mxu0 0.0
        %3168 = vmatprep.subr.mxu0 0.0
        %3169 = vmatpush2.msra.mxu0 0.0
        %3170 = vmatprep.subr.mxu0 0.0
        %3171 = vmatpush2.msra.mxu0 0.0
        %3172 = vmatprep.subr.mxu0 0.0
        %3173 = vmatpush2.msra.mxu0 0.0
        %3174 = vmatprep.subr.mxu0 0.0
        %3175 = vmatpush2.msra.mxu0 0.0
        %3176 = vmatprep.subr.mxu0 0.0
        %3177 = vmatpush2.msra.mxu0 0.0
        %3178 = vmatprep.subr.mxu0 0.0
        %3179 = vmatpush2.msra.mxu0 0.0
        %3180 = vmatprep.subr.mxu0 0.0
        %3181 = vmatpush2.msra.mxu0 0.0
        %3182 = vmatprep.subr.mxu0 0.0
        %3183 = vmatpush2.msra.mxu0 0.0
        %3184 = vmatprep.subr.mxu0 0.0
        %3185 = vmatpush2.msra.mxu0 0.0
        %3186 = vmatprep.subr.mxu0 0.0
        %3187 = vmatpush2.msra.mxu0 0.0
        %3188 = vmatprep.subr.mxu0 0.0
        %3189 = vmatpush2.msra.mxu0 0.0
        %3190 = vmatprep.subr.mxu0 0.0
        %3191 = vmatpush2.msra.mxu0 0.0
        %3192 = vmatprep.subr.mxu0 0.0
        %3193 = vmatpush2.msra.mxu0 0.0
        %3194 = vmatprep.subr.mxu0 0.0
        %3195 = vmatpush2.msra.mxu0 0.0
        %3196 = vmatprep.subr.mxu0 0.0
        %3197 = vmatpush2.msra.mxu0 0.0
        %3198 = vmatprep.mubr.f32.mxu0 0.0
        %3199 = vmatmul.mubr.f32.gmra.mxu0 %v3132
        %v3200 = vpop.f32.mrf.mxu0
        %v3201 = vadd.f32 0.0, %v3200
        %v3202 = vpop.f32.mrf.mxu0
        %3203 = vdwg.mxu0
        %v3204 = vadd.f32 %v3076, %v3201
        %v3205 = vld [vmem:[#allocation3 + $0x4] sm:$0x1]
        %v3206 = vld [vmem:[#allocation3 + $0xc] sm:$0x1]
        %v3207 = vld [vmem:[#allocation3 + $0x14] sm:$0x1]
        %v3208 = vld [vmem:[#allocation3 + $0x1c] sm:$0x1]
        %v3209 = vld [vmem:[#allocation3 + $0x24] sm:$0x1]
        %v3210 = vld [vmem:[#allocation3 + $0x2c] sm:$0x1]
        %v3211 = vld [vmem:[#allocation3 + $0x34] sm:$0x1]
        %v3212 = vld [vmem:[#allocation3 + $0x3c] sm:$0x1]
        %v3213 = vld [vmem:[#allocation3 + $0x5] sm:$0x1]
        %v3214 = vld [vmem:[#allocation3 + $0xd] sm:$0x1]
        %v3215 = vld [vmem:[#allocation3 + $0x15] sm:$0x1]
        %v3216 = vld [vmem:[#allocation3 + $0x1d] sm:$0x1]
        %v3217 = vld [vmem:[#allocation3 + $0x25] sm:$0x1]
        %v3218 = vld [vmem:[#allocation3 + $0x2d] sm:$0x1]
        %v3219 = vld [vmem:[#allocation3 + $0x35] sm:$0x1]
        %v3220 = vld [vmem:[#allocation3 + $0x3d] sm:$0x1]
        %v3221 = vmax.f32 %v3205, %v3213
        %v3222 = vmax.f32 %v3206, %v3214
        %v3223 = vmax.f32 %v3207, %v3215
        %v3224 = vmax.f32 %v3208, %v3216
        %v3225 = vmax.f32 %v3209, %v3217
        %v3226 = vmax.f32 %v3210, %v3218
        %v3227 = vmax.f32 %v3211, %v3219
        %v3228 = vmax.f32 %v3212, %v3220
        %s3229 = scalar_lea.vmem %s9, 128
        %v3230 = vld [vmem:[%s3229] sm:$0xff]
        %v3231 = vld [vmem:[%s3229 + $0x8] sm:$0xff]
        %v3232 = vld [vmem:[%s3229 + $0x10] sm:$0xff]
        %v3233 = vld [vmem:[%s3229 + $0x18] sm:$0xff]
        %v3234 = vld [vmem:[%s3229 + $0x20] sm:$0xff]
        %v3235 = vld [vmem:[%s3229 + $0x28] sm:$0xff]
        %v3236 = vld [vmem:[%s3229 + $0x30] sm:$0xff]
        %v3237 = vld [vmem:[%s3229 + $0x38] sm:$0xff]
        %v3246 = vrot.slane %v3222, 7
        %v3247 = vsel %vm2978, %v3246, %v3221
        %v3248 = vrot.slane %v3223, 6
        %v3249 = vsel %vm2981, %v3248, %v3247
        %v3250 = vrot.slane %v3224, 5
        %v3251 = vsel %vm2984, %v3250, %v3249
        %v3252 = vrot.slane %v3225, 4
        %v3253 = vsel %vm2987, %v3252, %v3251
        %v3254 = vrot.slane %v3226, 3
        %v3255 = vsel %vm2990, %v3254, %v3253
        %v3256 = vrot.slane %v3227, 2
        %v3257 = vsel %vm2993, %v3256, %v3255
        %v3258 = vrot.slane %v3228, 1
        %v3259 = vsel %vm2996, %v3258, %v3257
        %v3260 = vsel %vm2927, %v3259, 0
        %3262 = vmatprep.subr.mxu0 0.0
        %3263 = vmatpush1.msra.mxu0 0.0
        %3264 = vmatprep.subr.mxu0 0.0
        %3265 = vmatpush1.msra.mxu0 0.0
        %3266 = vmatprep.subr.mxu0 0.0
        %3267 = vmatpush1.msra.mxu0 0.0
        %3268 = vmatprep.subr.mxu0 0.0
        %3269 = vmatpush1.msra.mxu0 0.0
        %3270 = vmatprep.subr.mxu0 0.0
        %3271 = vmatpush1.msra.mxu0 0.0
        %3272 = vmatprep.subr.mxu0 0.0
        %3273 = vmatpush1.msra.mxu0 0.0
        %3274 = vmatprep.subr.mxu0 0.0
        %3275 = vmatpush1.msra.mxu0 0.0
        %3276 = vmatprep.subr.mxu0 0.0
        %3277 = vmatpush1.msra.mxu0 0.0
        %3278 = vmatprep.subr.mxu0 0.0
        %3279 = vmatpush1.msra.mxu0 %v3237
        %3280 = vmatprep.subr.mxu0 0.0
        %3281 = vmatpush1.msra.mxu0 %v3236
        %3282 = vmatprep.subr.mxu0 0.0
        %3283 = vmatpush1.msra.mxu0 %v3235
        %3284 = vmatprep.subr.mxu0 0.0
        %3285 = vmatpush1.msra.mxu0 %v3234
        %3286 = vmatprep.subr.mxu0 0.0
        %3287 = vmatpush1.msra.mxu0 %v3233
        %3288 = vmatprep.subr.mxu0 0.0
        %3289 = vmatpush1.msra.mxu0 %v3232
        %3290 = vmatprep.subr.mxu0 0.0
        %3291 = vmatpush1.msra.mxu0 %v3231
        %3292 = vmatprep.subr.mxu0 0.0
        %3293 = vmatpush1.msra.mxu0 %v3230
        %3294 = vmatprep.subr.mxu0 0.0
        %3295 = vmatpush2.msra.mxu0 0.0
        %3296 = vmatprep.subr.mxu0 0.0
        %3297 = vmatpush2.msra.mxu0 0.0
        %3298 = vmatprep.subr.mxu0 0.0
        %3299 = vmatpush2.msra.mxu0 0.0
        %3300 = vmatprep.subr.mxu0 0.0
        %3301 = vmatpush2.msra.mxu0 0.0
        %3302 = vmatprep.subr.mxu0 0.0
        %3303 = vmatpush2.msra.mxu0 0.0
        %3304 = vmatprep.subr.mxu0 0.0
        %3305 = vmatpush2.msra.mxu0 0.0
        %3306 = vmatprep.subr.mxu0 0.0
        %3307 = vmatpush2.msra.mxu0 0.0
        %3308 = vmatprep.subr.mxu0 0.0
        %3309 = vmatpush2.msra.mxu0 0.0
        %3310 = vmatprep.subr.mxu0 0.0
        %3311 = vmatpush2.msra.mxu0 0.0
        %3312 = vmatprep.subr.mxu0 0.0
        %3313 = vmatpush2.msra.mxu0 0.0
        %3314 = vmatprep.subr.mxu0 0.0
        %3315 = vmatpush2.msra.mxu0 0.0
        %3316 = vmatprep.subr.mxu0 0.0
        %3317 = vmatpush2.msra.mxu0 0.0
        %3318 = vmatprep.subr.mxu0 0.0
        %3319 = vmatpush2.msra.mxu0 0.0
        %3320 = vmatprep.subr.mxu0 0.0
        %3321 = vmatpush2.msra.mxu0 0.0
        %3322 = vmatprep.subr.mxu0 0.0
        %3323 = vmatpush2.msra.mxu0 0.0
        %3324 = vmatprep.subr.mxu0 0.0
        %3325 = vmatpush2.msra.mxu0 0.0
        %3326 = vmatprep.mubr.f32.mxu0 0.0
        %3327 = vmatmul.mubr.f32.gmra.mxu0 %v3260
        %v3328 = vpop.f32.mrf.mxu0
        %v3329 = vadd.f32 0.0, %v3328
        %v3330 = vpop.f32.mrf.mxu0
        %3331 = vdwg.mxu0
        %v3332 = vadd.f32 %v3204, %v3329
        %v3333 = vld [vmem:[#allocation3 + $0x6] sm:$0x1]
        %v3334 = vld [vmem:[#allocation3 + $0xe] sm:$0x1]
        %v3335 = vld [vmem:[#allocation3 + $0x16] sm:$0x1]
        %v3336 = vld [vmem:[#allocation3 + $0x1e] sm:$0x1]
        %v3337 = vld [vmem:[#allocation3 + $0x26] sm:$0x1]
        %v3338 = vld [vmem:[#allocation3 + $0x2e] sm:$0x1]
        %v3339 = vld [vmem:[#allocation3 + $0x36] sm:$0x1]
        %v3340 = vld [vmem:[#allocation3 + $0x3e] sm:$0x1]
        %v3341 = vld [vmem:[#allocation3 + $0x7] sm:$0x1]
        %v3342 = vld [vmem:[#allocation3 + $0xf] sm:$0x1]
        %v3343 = vld [vmem:[#allocation3 + $0x17] sm:$0x1]
        %v3344 = vld [vmem:[#allocation3 + $0x1f] sm:$0x1]
        %v3345 = vld [vmem:[#allocation3 + $0x27] sm:$0x1]
        %v3346 = vld [vmem:[#allocation3 + $0x2f] sm:$0x1]
        %v3347 = vld [vmem:[#allocation3 + $0x37] sm:$0x1]
        %v3348 = vld [vmem:[#allocation3 + $0x3f] sm:$0x1]
        %v3349 = vmax.f32 %v3333, %v3341
        %v3350 = vmax.f32 %v3334, %v3342
        %v3351 = vmax.f32 %v3335, %v3343
        %v3352 = vmax.f32 %v3336, %v3344
        %v3353 = vmax.f32 %v3337, %v3345
        %v3354 = vmax.f32 %v3338, %v3346
        %v3355 = vmax.f32 %v3339, %v3347
        %v3356 = vmax.f32 %v3340, %v3348
        %s3357 = scalar_lea.vmem %s9, 192
        %v3358 = vld [vmem:[%s3357] sm:$0xff]
        %v3359 = vld [vmem:[%s3357 + $0x8] sm:$0xff]
        %v3360 = vld [vmem:[%s3357 + $0x10] sm:$0xff]
        %v3361 = vld [vmem:[%s3357 + $0x18] sm:$0xff]
        %v3362 = vld [vmem:[%s3357 + $0x20] sm:$0xff]
        %v3363 = vld [vmem:[%s3357 + $0x28] sm:$0xff]
        %v3364 = vld [vmem:[%s3357 + $0x30] sm:$0xff]
        %v3365 = vld [vmem:[%s3357 + $0x38] sm:$0xff]
        %v3374 = vrot.slane %v3350, 7
        %v3375 = vsel %vm2978, %v3374, %v3349
        %v3376 = vrot.slane %v3351, 6
        %v3377 = vsel %vm2981, %v3376, %v3375
        %v3378 = vrot.slane %v3352, 5
        %v3379 = vsel %vm2984, %v3378, %v3377
        %v3380 = vrot.slane %v3353, 4
        %v3381 = vsel %vm2987, %v3380, %v3379
        %v3382 = vrot.slane %v3354, 3
        %v3383 = vsel %vm2990, %v3382, %v3381
        %v3384 = vrot.slane %v3355, 2
        %v3385 = vsel %vm2993, %v3384, %v3383
        %v3386 = vrot.slane %v3356, 1
        %v3387 = vsel %vm2996, %v3386, %v3385
        %v3388 = vsel %vm2927, %v3387, 0
        %3390 = vmatprep.subr.mxu0 0.0
        %3391 = vmatpush1.msra.mxu0 0.0
        %3392 = vmatprep.subr.mxu0 0.0
        %3393 = vmatpush1.msra.mxu0 0.0
        %3394 = vmatprep.subr.mxu0 0.0
        %3395 = vmatpush1.msra.mxu0 0.0
        %3396 = vmatprep.subr.mxu0 0.0
        %3397 = vmatpush1.msra.mxu0 0.0
        %3398 = vmatprep.subr.mxu0 0.0
        %3399 = vmatpush1.msra.mxu0 0.0
        %3400 = vmatprep.subr.mxu0 0.0
        %3401 = vmatpush1.msra.mxu0 0.0
        %3402 = vmatprep.subr.mxu0 0.0
        %3403 = vmatpush1.msra.mxu0 0.0
        %3404 = vmatprep.subr.mxu0 0.0
        %3405 = vmatpush1.msra.mxu0 0.0
        %3406 = vmatprep.subr.mxu0 0.0
        %3407 = vmatpush1.msra.mxu0 %v3365
        %3408 = vmatprep.subr.mxu0 0.0
        %3409 = vmatpush1.msra.mxu0 %v3364
        %3410 = vmatprep.subr.mxu0 0.0
        %3411 = vmatpush1.msra.mxu0 %v3363
        %3412 = vmatprep.subr.mxu0 0.0
        %3413 = vmatpush1.msra.mxu0 %v3362
        %3414 = vmatprep.subr.mxu0 0.0
        %3415 = vmatpush1.msra.mxu0 %v3361
        %3416 = vmatprep.subr.mxu0 0.0
        %3417 = vmatpush1.msra.mxu0 %v3360
        %3418 = vmatprep.subr.mxu0 0.0
        %3419 = vmatpush1.msra.mxu0 %v3359
        %3420 = vmatprep.subr.mxu0 0.0
        %3421 = vmatpush1.msra.mxu0 %v3358
        %3422 = vmatprep.subr.mxu0 0.0
        %3423 = vmatpush2.msra.mxu0 0.0
        %3424 = vmatprep.subr.mxu0 0.0
        %3425 = vmatpush2.msra.mxu0 0.0
        %3426 = vmatprep.subr.mxu0 0.0
        %3427 = vmatpush2.msra.mxu0 0.0
        %3428 = vmatprep.subr.mxu0 0.0
        %3429 = vmatpush2.msra.mxu0 0.0
        %3430 = vmatprep.subr.mxu0 0.0
        %3431 = vmatpush2.msra.mxu0 0.0
        %3432 = vmatprep.subr.mxu0 0.0
        %3433 = vmatpush2.msra.mxu0 0.0
        %3434 = vmatprep.subr.mxu0 0.0
        %3435 = vmatpush2.msra.mxu0 0.0
        %3436 = vmatprep.subr.mxu0 0.0
        %3437 = vmatpush2.msra.mxu0 0.0
        %3438 = vmatprep.subr.mxu0 0.0
        %3439 = vmatpush2.msra.mxu0 0.0
        %3440 = vmatprep.subr.mxu0 0.0
        %3441 = vmatpush2.msra.mxu0 0.0
        %3442 = vmatprep.subr.mxu0 0.0
        %3443 = vmatpush2.msra.mxu0 0.0
        %3444 = vmatprep.subr.mxu0 0.0
        %3445 = vmatpush2.msra.mxu0 0.0
        %3446 = vmatprep.subr.mxu0 0.0
        %3447 = vmatpush2.msra.mxu0 0.0
        %3448 = vmatprep.subr.mxu0 0.0
        %3449 = vmatpush2.msra.mxu0 0.0
        %3450 = vmatprep.subr.mxu0 0.0
        %3451 = vmatpush2.msra.mxu0 0.0
        %3452 = vmatprep.subr.mxu0 0.0
        %3453 = vmatpush2.msra.mxu0 0.0
        %3454 = vmatprep.mubr.f32.mxu0 0.0
        %3455 = vmatmul.mubr.f32.gmra.mxu0 %v3388
        %v3456 = vpop.f32.mrf.mxu0
        %v3457 = vadd.f32 0.0, %v3456
        %v3458 = vpop.f32.mrf.mxu0
        %3459 = vdwg.mxu0
        %v3460 = vadd.f32 %v3332, %v3457
        %v3461 = vmax.f32 %v3460, 0.0
        %v3462 = vld [vmem:[%s11] sm:$0xff]
        %v3463 = vld [vmem:[%s11 + $0x8] sm:$0xff]
        %v3464 = vld [vmem:[%s11 + $0x10] sm:$0xff]
        %v3465 = vld [vmem:[%s11 + $0x18] sm:$0xff]
        %v3466 = vld [vmem:[%s11 + $0x20] sm:$0xff]
        %v3467 = vld [vmem:[%s11 + $0x28] sm:$0xff]
        %v3468 = vld [vmem:[%s11 + $0x30] sm:$0xff]
        %v3469 = vld [vmem:[%s11 + $0x38] sm:$0xff]
        %v3470 = vld [vmem:[%s11 + $0x40] sm:$0xff]
        %v3471 = vld [vmem:[%s11 + $0x48] sm:$0xff]
        %v3472 = vld [vmem:[%s11 + $0x50] sm:$0xff]
        %v3473 = vld [vmem:[%s11 + $0x58] sm:$0xff]
        %v3474 = vld [vmem:[%s11 + $0x60] sm:$0xff]
        %v3475 = vld [vmem:[%s11 + $0x68] sm:$0xff]
        %v3476 = vld [vmem:[%s11 + $0x70] sm:$0xff]
        %v3477 = vld [vmem:[%s12] sm:$0x1]
        %v3479 = vlaneseq
        %v3480 = vshrl.u32 %v3479, 7
        %v3481 = vsub.s32 0, %v3480
        %v3482 = vrot.slane %v3477, %v3481
        %vm3484 = vcmask 982016
        %v3486 = vsel %vm3484, %v3461, 0
        %3488 = vmatprep.subr.mxu0 0.0
        %3489 = vmatpush1.msra.mxu0 0.0
        %3490 = vmatprep.subr.mxu0 0.0
        %3491 = vmatpush1.msra.mxu0 %v3476
        %3492 = vmatprep.subr.mxu0 0.0
        %3493 = vmatpush1.msra.mxu0 %v3475
        %3494 = vmatprep.subr.mxu0 0.0
        %3495 = vmatpush1.msra.mxu0 %v3474
        %3496 = vmatprep.subr.mxu0 0.0
        %3497 = vmatpush1.msra.mxu0 %v3473
        %3498 = vmatprep.subr.mxu0 0.0
        %3499 = vmatpush1.msra.mxu0 %v3472
        %3500 = vmatprep.subr.mxu0 0.0
        %3501 = vmatpush1.msra.mxu0 %v3471
        %3502 = vmatprep.subr.mxu0 0.0
        %3503 = vmatpush1.msra.mxu0 %v3470
        %3504 = vmatprep.subr.mxu0 0.0
        %3505 = vmatpush1.msra.mxu0 %v3469
        %3506 = vmatprep.subr.mxu0 0.0
        %3507 = vmatpush1.msra.mxu0 %v3468
        %3508 = vmatprep.subr.mxu0 0.0
        %3509 = vmatpush1.msra.mxu0 %v3467
        %3510 = vmatprep.subr.mxu0 0.0
        %3511 = vmatpush1.msra.mxu0 %v3466
        %3512 = vmatprep.subr.mxu0 0.0
        %3513 = vmatpush1.msra.mxu0 %v3465
        %3514 = vmatprep.subr.mxu0 0.0
        %3515 = vmatpush1.msra.mxu0 %v3464
        %3516 = vmatprep.subr.mxu0 0.0
        %3517 = vmatpush1.msra.mxu0 %v3463
        %3518 = vmatprep.subr.mxu0 0.0
        %3519 = vmatpush1.msra.mxu0 %v3462
        %3520 = vmatprep.subr.mxu0 0.0
        %3521 = vmatpush2.msra.mxu0 0.0
        %3522 = vmatprep.subr.mxu0 0.0
        %3523 = vmatpush2.msra.mxu0 0.0
        %3524 = vmatprep.subr.mxu0 0.0
        %3525 = vmatpush2.msra.mxu0 0.0
        %3526 = vmatprep.subr.mxu0 0.0
        %3527 = vmatpush2.msra.mxu0 0.0
        %3528 = vmatprep.subr.mxu0 0.0
        %3529 = vmatpush2.msra.mxu0 0.0
        %3530 = vmatprep.subr.mxu0 0.0
        %3531 = vmatpush2.msra.mxu0 0.0
        %3532 = vmatprep.subr.mxu0 0.0
        %3533 = vmatpush2.msra.mxu0 0.0
        %3534 = vmatprep.subr.mxu0 0.0
        %3535 = vmatpush2.msra.mxu0 0.0
        %3536 = vmatprep.subr.mxu0 0.0
        %3537 = vmatpush2.msra.mxu0 0.0
        %3538 = vmatprep.subr.mxu0 0.0
        %3539 = vmatpush2.msra.mxu0 0.0
        %3540 = vmatprep.subr.mxu0 0.0
        %3541 = vmatpush2.msra.mxu0 0.0
        %3542 = vmatprep.subr.mxu0 0.0
        %3543 = vmatpush2.msra.mxu0 0.0
        %3544 = vmatprep.subr.mxu0 0.0
        %3545 = vmatpush2.msra.mxu0 0.0
        %3546 = vmatprep.subr.mxu0 0.0
        %3547 = vmatpush2.msra.mxu0 0.0
        %3548 = vmatprep.subr.mxu0 0.0
        %3549 = vmatpush2.msra.mxu0 0.0
        %3550 = vmatprep.subr.mxu0 0.0
        %3551 = vmatpush2.msra.mxu0 0.0
        %3552 = vmatprep.mubr.f32.mxu0 0.0
        %3553 = vmatmul.mubr.f32.gmra.mxu0 %v3486
        %v3554 = vpop.f32.mrf.mxu0
        %v3555 = vadd.f32 %v3482, %v3554
        %v3556 = vpop.f32.mrf.mxu0
        %3557 = vdwg.mxu0
        %v3558 = vmax.f32 %v3555, 0.0
        %v3559 = vld [vmem:[#allocation7] sm:$0xff]
        %v3560 = vld [vmem:[#allocation7 + $0x8] sm:$0xff]
        %v3561 = vld [vmem:[#allocation7 + $0x10] sm:$0xff]
        %v3562 = vld [vmem:[#allocation7 + $0x18] sm:$0xff]
        %v3563 = vld [vmem:[#allocation7 + $0x20] sm:$0xff]
        %v3564 = vld [vmem:[#allocation7 + $0x28] sm:$0xff]
        %v3565 = vld [vmem:[#allocation7 + $0x30] sm:$0xff]
        %v3566 = vld [vmem:[#allocation7 + $0x38] sm:$0xff]
        %v3567 = vld [vmem:[#allocation7 + $0x40] sm:$0xff]
        %v3568 = vld [vmem:[#allocation7 + $0x48] sm:$0xff]
        %v3569 = vld [vmem:[#allocation7 + $0x50] sm:$0xf]
        %v3570 = vld [vmem:[%s14] sm:$0x1]
        %v3572 = vlaneseq
        %v3573 = vshrl.u32 %v3572, 7
        %v3574 = vsub.s32 0, %v3573
        %v3575 = vrot.slane %v3570, %v3574
        %v3578 = vsel %vm1082, %v3558, 0
        %v3581 = vsel %vm1229, %v3569, 0
        %3583 = vmatprep.subr.mxu0 0.0
        %3584 = vmatpush1.msra.mxu0 0.0
        %3585 = vmatprep.subr.mxu0 0.0
        %3586 = vmatpush1.msra.mxu0 0.0
        %3587 = vmatprep.subr.mxu0 0.0
        %3588 = vmatpush1.msra.mxu0 0.0
        %3589 = vmatprep.subr.mxu0 0.0
        %3590 = vmatpush1.msra.mxu0 0.0
        %3591 = vmatprep.subr.mxu0 0.0
        %3592 = vmatpush1.msra.mxu0 0.0
        %3593 = vmatprep.subr.mxu0 0.0
        %3594 = vmatpush1.msra.mxu0 %v3581
        %3595 = vmatprep.subr.mxu0 0.0
        %3596 = vmatpush1.msra.mxu0 %v3568
        %3597 = vmatprep.subr.mxu0 0.0
        %3598 = vmatpush1.msra.mxu0 %v3567
        %3599 = vmatprep.subr.mxu0 0.0
        %3600 = vmatpush1.msra.mxu0 %v3566
        %3601 = vmatprep.subr.mxu0 0.0
        %3602 = vmatpush1.msra.mxu0 %v3565
        %3603 = vmatprep.subr.mxu0 0.0
        %3604 = vmatpush1.msra.mxu0 %v3564
        %3605 = vmatprep.subr.mxu0 0.0
        %3606 = vmatpush1.msra.mxu0 %v3563
        %3607 = vmatprep.subr.mxu0 0.0
        %3608 = vmatpush1.msra.mxu0 %v3562
        %3609 = vmatprep.subr.mxu0 0.0
        %3610 = vmatpush1.msra.mxu0 %v3561
        %3611 = vmatprep.subr.mxu0 0.0
        %3612 = vmatpush1.msra.mxu0 %v3560
        %3613 = vmatprep.subr.mxu0 0.0
        %3614 = vmatpush1.msra.mxu0 %v3559
        %3615 = vmatprep.subr.mxu0 0.0
        %3616 = vmatpush2.msra.mxu0 0.0
        %3617 = vmatprep.subr.mxu0 0.0
        %3618 = vmatpush2.msra.mxu0 0.0
        %3619 = vmatprep.subr.mxu0 0.0
        %3620 = vmatpush2.msra.mxu0 0.0
        %3621 = vmatprep.subr.mxu0 0.0
        %3622 = vmatpush2.msra.mxu0 0.0
        %3623 = vmatprep.subr.mxu0 0.0
        %3624 = vmatpush2.msra.mxu0 0.0
        %3625 = vmatprep.subr.mxu0 0.0
        %3626 = vmatpush2.msra.mxu0 0.0
        %3627 = vmatprep.subr.mxu0 0.0
        %3628 = vmatpush2.msra.mxu0 0.0
        %3629 = vmatprep.subr.mxu0 0.0
        %3630 = vmatpush2.msra.mxu0 0.0
        %3631 = vmatprep.subr.mxu0 0.0
        %3632 = vmatpush2.msra.mxu0 0.0
        %3633 = vmatprep.subr.mxu0 0.0
        %3634 = vmatpush2.msra.mxu0 0.0
        %3635 = vmatprep.subr.mxu0 0.0
        %3636 = vmatpush2.msra.mxu0 0.0
        %3637 = vmatprep.subr.mxu0 0.0
        %3638 = vmatpush2.msra.mxu0 0.0
        %3639 = vmatprep.subr.mxu0 0.0
        %3640 = vmatpush2.msra.mxu0 0.0
        %3641 = vmatprep.subr.mxu0 0.0
        %3642 = vmatpush2.msra.mxu0 0.0
        %3643 = vmatprep.subr.mxu0 0.0
        %3644 = vmatpush2.msra.mxu0 0.0
        %3645 = vmatprep.subr.mxu0 0.0
        %3646 = vmatpush2.msra.mxu0 0.0
        %3647 = vmatprep.mubr.f32.mxu0 0.0
        %3648 = vmatmul.mubr.f32.gmra.mxu0 %v3578
        %v3649 = vpop.f32.mrf.mxu0
        %v3650 = vadd.f32 %v3575, %v3649
        %v3651 = vpop.f32.mrf.mxu0
        %3652 = vdwg.mxu0
        %3653 = vst [vmem:[%s520] sm:$0xff] %v3650
        %s3654 = sand.u32 %s359, 1
        %s3655 = scalar_lea.sflag [#allocation6], %s3654
        %s3656 = sand.u32 %s359, 1
        %s3657 = smul.addr %s3656, 8
        %s3658 = scalar_lea.vmem [#allocation9], %s3657
        // Predicated region
        $region89: #{lenet_forward.1} parent=79 // pred_check
          %p3659 = pneg %p369
        $region90: #{lenet_forward.1} parent=79 // pred_check_branch
          %3661 = sbr.rel (%p3659) target = $region92
        $region91: #{lenet_forward.1} parent=79 // pred_region
          %s3663 = ssub.s32 128, 128
          %3664 = vsyncadd %s3655, %s3663
          %s3665 = smul.addr %s31, 128
          %s3666 = scalar_lea.hbm %s15, %s3665
          %s3668 = sshll.u32 %s3658, 4
          %s3669 = int_to_ptr.vmem [resolvable:$true] %s3668
          %3671 = dma.vmem_to_hbm [thread:$0]  %s3669, 128, %s3666, %s3655
        $region92: #{lenet_forward.1} parent=79 // pred_fallthru
          _
      $region80: #{lenet_forward.1} parent=5 // pred_fallthru
        _
      %p3672 = scmp.le.s32.totalorder 2, %s26
      // Predicated region
      $region93: #{lenet_forward.1} parent=5 // pred_check
        %p3673 = pneg %p3672
      $region94: #{lenet_forward.1} parent=5 // pred_check_branch
        %3675 = sbr.rel (%p3673) target = $region96
      $region95: #{lenet_forward.1} parent=5 // pred_region
        %s3676 = ssub.s32 %s26, 2
        // Predicated region
        $region97: #{lenet_forward.1} parent=95 // pred_check
          %p3677 = pneg %p375
        $region98: #{lenet_forward.1} parent=95 // pred_check_branch
          %3679 = sbr.rel (%p3677) target = $region100
        $region99: #{lenet_forward.1} parent=95 // pred_region
          %s3680 = sand.u32 %s360, 1
          %s3681 = scalar_lea.sflag [#allocation6], %s3680
          %s3682 = sand.u32 %s360, 1
          %s3683 = smul.addr %s3682, 8
          %s3684 = scalar_lea.vmem [#allocation9], %s3683
          %3685 = dma.done %s3681, 128
        $region100: #{lenet_forward.1} parent=95 // pred_fallthru
          _
      $region96: #{lenet_forward.1} parent=5 // pred_fallthru
        _
    $region6: #{lenet_forward.1} parent=1 // loop_footer
      %s30 = sadd.s32 1, %s26
    $region7: #{lenet_forward.1} parent=1 // loop_footer_branch
      %25 = sbr.rel target = $region3
    $region8: #{lenet_forward.1} parent=1 // loop_exit
      _
    %3686 = vsyncpa [#allocation5], 1
    %s3687 = scalar_lea.sflag [#allocation5], 1
    %3688 = vsyncpa %s3687, 1
    %3689 = vsyncpa [#allocation8], 1
    %3690 = vsyncpa [#allocation6], 1
    %s3691 = scalar_lea.sflag [#allocation6], 1
    %3692 = vsyncpa %s3691, 1

</llo_original>
